<compile_context>
chip_gen: v7x
topology: tpu7x:2x2x1
jax: 0.10.0
libtpu: 0.0.40
codegen_flags: <defaults>
</compile_context>

<pallas_src>
import functools

import jax
import jax.numpy as jnp
from jax.experimental import pallas as pl
from jax.experimental.pallas import tpu as pltpu


_BN_EPS = 1e-5


# ----------------------------- Pallas kernels ------------------------------

def _gemm_bias_stats_kernel(m_real, p_ref, w_ref, b_ref, z_ref, sum_ref, sq_ref):
    """Pass 1 (per phase p, per M tile i):
         z = W_p @ patches_p + bias   (bf16 operands, f32 MXU accumulation)
         emit z as bf16; accumulate per-phase, per-channel sum / sumsq in f32.
    Padded (col >= m_real) lanes are masked out of the statistics."""
    i = pl.program_id(1)
    tile_m = z_ref.shape[-1]

    @pl.when(i == 0)
    def _init():
        sum_ref[...] = jnp.zeros_like(sum_ref)
        sq_ref[...] = jnp.zeros_like(sq_ref)

    z = jnp.dot(w_ref[0], p_ref[0], preferred_element_type=jnp.float32)
    z = z + b_ref[...]                              # (C, tile_m)
    z_ref[0] = z.astype(z_ref.dtype)                # bf16 writeback

    col = i * tile_m + jax.lax.broadcasted_iota(jnp.int32, (1, tile_m), 1)
    valid = (col < m_real).astype(jnp.float32)      # mask padded lanes
    zm = z * valid
    sum_ref[0] += jnp.sum(zm, axis=-1, keepdims=True)
    sq_ref[0] += jnp.sum(zm * z, axis=-1, keepdims=True)


def _bn_relu_kernel(z_ref, scale_ref, shift_ref, o_ref):
    """Pass 2: y = max(z*scale + shift, 0), bf16 in / bf16 out, f32 math."""
    y = z_ref[0].astype(jnp.float32) * scale_ref[...] + shift_ref[...]
    o_ref[0] = jnp.maximum(y, 0.0).astype(o_ref.dtype)


def _gemm_bias_tanh_kernel(p_ref, w_ref, b_ref, o_ref):
    """Last layer: fused GEMM + bias + tanh (C padded to 8 sublanes)."""
    z = jnp.dot(w_ref[...], p_ref[...], preferred_element_type=jnp.float32)
    o_ref[...] = jnp.tanh(z + b_ref[...])


# ----------------------------- tiling helpers -------------------------------

@functools.lru_cache(maxsize=1)
def _vmem_caps():
    """(vmem_limit_bytes, block budget) derived from the chip's VMEM size."""
    cap = 64 * 1024 * 1024          # conservative default (v7x per-TC VMEM)
    try:
        info = pltpu.get_tpu_info()
        v = getattr(info, "vmem_capacity_bytes", None)
        if v:
            cap = int(v)
    except Exception:
        pass
    limit = min(int(cap * 3 // 4), 100 * 1024 * 1024)
    return limit, limit // 2


def _pick_tile_m(m, k, c, budget, out_bytes=2):
    """Largest lane tile (multiple of 128, <=4096) whose double-buffered
    patch-in + z-out blocks fit the budget; also returns padded M."""
    fixed = 8 * c * k + (1 << 20)                 # resident weight bufs + slack
    per_lane = 4 * k + 2 * out_bytes * c          # 2x-buffered bf16 in + out
    t = (budget - fixed) // per_lane
    t = max(128, min(int(t), 4096))
    t = (t // 128) * 128
    m128 = -(-m // 128) * 128
    if m128 <= t:
        return m128, m128
    return t, -(-m // t) * t


def _pick_tile2(m_pad, c, budget):
    """Pass-2 lane tile: largest multiple of 128 dividing m_pad within budget."""
    t = max(128, min(m_pad, budget // (8 * c)))
    t = (t // 128) * 128
    while t > 128 and m_pad % t:
        t -= 128
    return t


# ----------------------------- layer wrappers --------------------------------

def _conv_bn_relu_phases(patches, weights, bias, gamma, beta, m_real):
    """patches (Pp, K, M) bf16 (Pp == P, or 1 when shared across phases),
    weights (P, C, K) bf16, bias/gamma/beta (C,) f32.  Returns (P, C, M_pad) bf16."""
    P, C, K = weights.shape
    Pp, _, M = patches.shape
    limit, budget = _vmem_caps()

    tile_m, m_pad = _pick_tile_m(M, K, C, budget, out_bytes=2)
    if m_pad != M:
        patches = jnp.pad(patches, ((0, 0), (0, 0), (0, m_pad - M)))
    n_tiles = m_pad // tile_m

    b2 = bias.reshape(C, 1).astype(jnp.float32)
    patch_idx = (lambda p, i: (0, 0, i)) if Pp == 1 else (lambda p, i: (p, 0, i))

    # Pass 1: GEMM + bias + per-phase partial BN stats.  Phase axis is
    # "parallel" (both v7x TensorCores), M-tile axis is the accumulator axis.
    z, psum, psq = pl.pallas_call(
        functools.partial(_gemm_bias_stats_kernel, m_real),
        grid=(P, n_tiles),
        in_specs=[
            pl.BlockSpec((1, K, tile_m), patch_idx),
            pl.BlockSpec((1, C, K), lambda p, i: (p, 0, 0)),
            pl.BlockSpec((C, 1), lambda p, i: (0, 0)),
        ],
        out_specs=(
            pl.BlockSpec((1, C, tile_m), lambda p, i: (p, 0, i)),
            pl.BlockSpec((1, C, 1), lambda p, i: (p, 0, 0)),
            pl.BlockSpec((1, C, 1), lambda p, i: (p, 0, 0)),
        ),
        out_shape=(
            jax.ShapeDtypeStruct((P, C, m_pad), jnp.bfloat16),
            jax.ShapeDtypeStruct((P, C, 1), jnp.float32),
            jax.ShapeDtypeStruct((P, C, 1), jnp.float32),
        ),
        compiler_params=pltpu.CompilerParams(
            dimension_semantics=("parallel", "arbitrary"),
            vmem_limit_bytes=limit),
    )(patches, weights, b2)

    # Combine per-phase partial stats -> BN scale/shift (tiny, plain JAX).
    cnt = jnp.float32(P * m_real)
    s = jnp.sum(psum[:, :, 0], axis=0)
    sq = jnp.sum(psq[:, :, 0], axis=0)
    mean = s / cnt
    var = jnp.maximum(sq / cnt - mean * mean, 0.0)   # biased var (PyTorch fwd)
    scale = gamma.astype(jnp.float32) * jax.lax.rsqrt(var + _BN_EPS)
    shift = beta.astype(jnp.float32) - mean * scale
    scale = scale.reshape(C, 1)
    shift = shift.reshape(C, 1)

    # Pass 2: elementwise normalize + ReLU, larger (decoupled) lane tile.
    tile2 = _pick_tile2(m_pad, C, min(budget, 16 * 1024 * 1024))
    n2 = m_pad // tile2
    h = pl.pallas_call(
        _bn_relu_kernel,
        grid=(P, n2),
        in_specs=[
            pl.BlockSpec((1, C, tile2), lambda p, i: (p, 0, i)),
            pl.BlockSpec((C, 1), lambda p, i: (0, 0)),
            pl.BlockSpec((C, 1), lambda p, i: (0, 0)),
        ],
        out_specs=pl.BlockSpec((1, C, tile2), lambda p, i: (p, 0, i)),
        out_shape=jax.ShapeDtypeStruct((P, C, m_pad), jnp.bfloat16),
        compiler_params=pltpu.CompilerParams(
            dimension_semantics=("parallel", "parallel"),
            vmem_limit_bytes=limit),
    )(z, scale, shift)
    return h


def _conv_tanh(patches, wmat, bias, m_real):
    """patches (K, M) bf16, wmat (C, K) f32, bias (C,) f32 -> (C, m_real) f32."""
    K, M = patches.shape
    C = wmat.shape[0]
    c_pad = ((C + 7) // 8) * 8
    limit, budget = _vmem_caps()

    tile_m, m_pad = _pick_tile_m(M, K, c_pad, budget, out_bytes=4)
    if m_pad != M:
        patches = jnp.pad(patches, ((0, 0), (0, m_pad - M)))
    if c_pad != C:
        wmat = jnp.pad(wmat, ((0, c_pad - C), (0, 0)))
        bias = jnp.pad(bias, ((0, c_pad - C),))
    n_tiles = m_pad // tile_m

    out = pl.pallas_call(
        _gemm_bias_tanh_kernel,
        grid=(n_tiles,),
        in_specs=[
            pl.BlockSpec((K, tile_m), lambda i: (0, i)),
            pl.BlockSpec((c_pad, K), lambda i: (0, 0)),
            pl.BlockSpec((c_pad, 1), lambda i: (0, 0)),
        ],
        out_specs=pl.BlockSpec((c_pad, tile_m), lambda i: (0, i)),
        out_shape=jax.ShapeDtypeStruct((c_pad, m_pad), jnp.float32),
        compiler_params=pltpu.CompilerParams(
            dimension_semantics=("parallel",),
            vmem_limit_bytes=limit),
    )(patches, wmat.astype(jnp.bfloat16),
      bias.reshape(c_pad, 1).astype(jnp.float32))
    return out[:C, :m_real]


# ----------------------------- JAX glue (phase / tap extraction) ------------

def _layer0_inputs(x, w):
    """ConvTranspose2d(k=4, s=1, p=0) on a 1x1 input: one dense matmul per
    output pixel; all 16 "phases" share the same (nz, N) operand."""
    N, nz = x.shape[0], x.shape[1]
    k = w.shape[2]
    patches = x.reshape(N, nz).T.astype(jnp.bfloat16)[None]          # (1, nz, N)
    wp = jnp.transpose(w, (2, 3, 1, 0)).reshape(k * k, w.shape[1], nz)
    return patches, wp.astype(jnp.bfloat16)


# For ConvTranspose2d(k=4, s=2, p=1):  out[2a + r] = sum_t in[a + d(r,t)] * W[kidx(r,t)]
_S2_OFF = ((1, 0), (1, 2))    # [parity r][tap t] -> window offset into pad-1 input
_S2_KIDX = ((1, 3), (2, 0))   # [parity r][tap t] -> original kernel index


def _stride2_inputs(h, w):
    """Sub-pixel phase decomposition: 4 stride-1 convs with 2x2 taps each.
    h: (C_in, N, H, W) bf16, w: (C_in, C_out, 4, 4) f32."""
    C, N, H, W = h.shape
    c_out = w.shape[1]
    hp = jnp.pad(h, ((0, 0), (0, 0), (1, 1), (1, 1)))
    patches, weights = [], []
    for rh in (0, 1):
        for rw in (0, 1):
            taps, wt = [], []
            for th in (0, 1):
                for tw in (0, 1):
                    oh, ow = _S2_OFF[rh][th], _S2_OFF[rw][tw]
                    taps.append(hp[:, :, oh:oh + H, ow:ow + W])
                    wt.append(w[:, :, _S2_KIDX[rh][th], _S2_KIDX[rw][tw]])
            patches.append(jnp.stack(taps, axis=1).reshape(C * 4, N * H * W))
            weights.append(jnp.stack(wt, axis=0).transpose(2, 1, 0)
                           .reshape(c_out, C * 4))
    return (jnp.stack(patches, 0),
            jnp.stack(weights, 0).astype(jnp.bfloat16),
            (N, H, W))


def _layer4_inputs(h, w):
    """ConvTranspose2d(k=3, s=1, p=1) as a stride-1 im2col GEMM.
    h: (C_in, N, H, W) bf16, w: (C_in, C_out, 3, 3) f32."""
    C, N, H, W = h.shape
    c_out, k = w.shape[1], w.shape[2]
    hp = jnp.pad(h, ((0, 0), (0, 0), (1, 1), (1, 1)))
    taps = []
    for kh in range(k):
        for kw in range(k):
            taps.append(hp[:, :, 2 - kh:2 - kh + H, 2 - kw:2 - kw + W])
    patches = jnp.stack(taps, axis=1).reshape(C * k * k, N * H * W)
    wmat = jnp.transpose(w, (1, 0, 2, 3)).reshape(c_out, C * k * k)
    return patches, wmat, (N, H, W)


# ----------------------------- Generator forward ----------------------------

def generator_forward(x, params):
    """x: (N, nz, 1, 1) f32 NCHW. Returns (N, out_ch, 32, 32) f32."""
    N = x.shape[0]

    # Layer 0: ConvTranspose(nz, ngf*8, 4, 1, 0) + BN + ReLU (16 phases).
    patches, weights = _layer0_inputs(x, params["w0"])
    c0 = weights.shape[1]
    h2 = _conv_bn_relu_phases(patches, weights, params["b0"],
                              params["g0"], params["beta0"], m_real=N)
    h = h2[:, :, :N].reshape(4, 4, c0, N).transpose(2, 3, 0, 1)   # (C, N, 4, 4)

    # Layers 1-3: ConvTranspose(k=4, s=2, p=1) + BN + ReLU via 4 sub-pixel phases.
    for li in (1, 2, 3):
        patches, weights, (N, H, W) = _stride2_inputs(h, params[f"w{li}"])
        c = weights.shape[1]
        m_real = N * H * W
        h2 = _conv_bn_relu_phases(patches, weights, params[f"b{li}"],
                                  params[f"g{li}"], params[f"beta{li}"], m_real)
        h = (h2[:, :, :m_real]
             .reshape(2, 2, c, N, H, W)
             .transpose(2, 3, 4, 0, 5, 1)
             .reshape(c, N, 2 * H, 2 * W))

    # Layer 4: ConvTranspose(ngf, out_ch, 3, 1, 1) + tanh.
    patches, wmat, (N, H, W) = _layer4_inputs(h, params["w4"])
    c_out = wmat.shape[0]
    y = _conv_tanh(patches, wmat, params["b4"], m_real=N * H * W)
    return y.reshape(c_out, N, H, W).transpose(1, 0, 2, 3).astype(jnp.float32)


def init_params(key, nz, ngf, out_ch):
    chans = [nz, ngf * 8, ngf * 4, ngf * 2, ngf, out_ch]
    ks = [4, 4, 4, 4, 3]
    params = {}
    for li in range(5):
        cin, cout, k = chans[li], chans[li + 1], ks[li]
        key, k1, k2 = jax.random.split(key, 3)
        params[f"w{li}"] = 0.05 * jax.random.normal(
            k1, (cin, cout, k, k), jnp.float32)   # ConvTranspose2d weight layout
        params[f"b{li}"] = 0.05 * jax.random.normal(k2, (cout,), jnp.float32)
        if li < 4:
            params[f"g{li}"] = jnp.ones((cout,), jnp.float32)      # BN gamma
            params[f"beta{li}"] = jnp.zeros((cout,), jnp.float32)  # BN beta
    return params


# ----------------------------- pure-JAX reference ---------------------------

def _reference_forward(x, params):
    """f32 reference: ConvTranspose2d == dilated conv with flipped kernel."""
    h = x.astype(jnp.float32)
    cfg = [(4, 1, 0, True), (4, 2, 1, True), (4, 2, 1, True),
           (4, 2, 1, True), (3, 1, 1, False)]
    for li, (k, s, p, bn) in enumerate(cfg):
        w = params[f"w{li}"].astype(jnp.float32)                 # (Cin, Cout, k, k)
        kern = jnp.flip(w, axis=(2, 3)).transpose(1, 0, 2, 3)    # (Cout, Cin, k, k)
        pe = k - 1 - p
        h = jax.lax.conv_general_dilated(
            h, kern, window_strides=(1, 1), padding=[(pe, pe), (pe, pe)],
            lhs_dilation=(s, s), dimension_numbers=("NCHW", "OIHW", "NCHW"))
        h = h + params[f"b{li}"].reshape(1, -1, 1, 1)
        if bn:
            mean = h.mean(axis=(0, 2, 3), keepdims=True)
            var = h.var(axis=(0, 2, 3), keepdims=True)
            h = (h - mean) * jax.lax.rsqrt(var + _BN_EPS)
            h = (h * params[f"g{li}"].reshape(1, -1, 1, 1)
                 + params[f"beta{li}"].reshape(1, -1, 1, 1))
            h = jnp.maximum(h, 0.0)
        else:
            h = jnp.tanh(h)
    return h


if __name__ == "__main__":
    key = jax.random.PRNGKey(0)
    nz, ngf, out_ch, N = 8, 8, 3, 2

    pkey, xkey = jax.random.split(key)
    params = init_params(pkey, nz, ngf, out_ch)
    x = jax.random.normal(xkey, (N, nz, 1, 1), jnp.float32)

    fwd = jax.jit(generator_forward)
    y = fwd(x, params)
    jax.block_until_ready(y)

    assert y.shape == (N, out_ch, 32, 32), y.shape
    assert bool(jnp.all(jnp.isfinite(y)))
    assert bool(jnp.all(jnp.abs(y) <= 1.0 + 1e-5))   # tanh range sanity check

    # Loose-tolerance check vs. an f32 reference (kernel uses bf16 operands).
    y_ref = _reference_forward(x, params)
    diff = jnp.abs(y - y_ref)
    assert float(jnp.max(diff)) < 0.30, float(jnp.max(diff))
    assert float(jnp.mean(diff)) < 0.08, float(jnp.mean(diff))

    print("KERNEL_OK")
</pallas_src>

<mosaic_0001>
module attributes {stable_mosaic.version = 11 : i64} {
  func.func @_gemm_bias_stats_kernel(%arg0: i32, %arg1: i32, %arg2: memref<1x8x128xbf16, #tpu.memory_space<vmem>>, %arg3: memref<1x64x8xbf16, #tpu.memory_space<vmem>>, %arg4: memref<64x1xf32, #tpu.memory_space<vmem>>, %arg5: memref<1x64x128xbf16, #tpu.memory_space<vmem>>, %arg6: memref<1x64x1xf32, #tpu.memory_space<vmem>>, %arg7: memref<1x64x1xf32, #tpu.memory_space<vmem>>) attributes {dimension_semantics = [#tpu.dimension_semantics<parallel>, #tpu.dimension_semantics<arbitrary>], iteration_bounds = array<i64: 16, 1>, scalar_prefetch = 0 : i64, scratch_operands = 0 : i64, tpu.core_type = #tpu.core_type<tc>, window_params = [{transform_indices = @transform_0, window_bounds = array<i64: 1, 8, 128>}, {transform_indices = @transform_1, window_bounds = array<i64: 1, 64, 8>}, {pipeline_mode = #tpu.pipeline_mode<synchronous>, transform_indices = @transform_2, window_bounds = array<i64: 64, 1>}, {transform_indices = @transform_3, window_bounds = array<i64: 1, 64, 128>}, {transform_indices = @transform_4, window_bounds = array<i64: 1, 64, 1>}, {transform_indices = @transform_5, window_bounds = array<i64: 1, 64, 1>}]} {
    %c0_i32 = arith.constant 0 : i32
    %0 = arith.cmpi eq, %arg1, %c0_i32 : i32
    %1 = arith.extui %0 : i1 to i32
    %c0_i32_0 = arith.constant 0 : i32
    %2 = arith.cmpi ne, %1, %c0_i32_0 : i32
    scf.if %2 {
      %cst_25 = arith.constant 0.000000e+00 : f32
      %42 = vector.broadcast %cst_25 : f32 to vector<1x64x1xf32>
      %c0_26 = arith.constant 0 : index
      %c0_27 = arith.constant 0 : index
      %c0_28 = arith.constant 0 : index
      %43 = vector.load %arg6[%c0_26, %c0_27, %c0_28] : memref<1x64x1xf32, #tpu.memory_space<vmem>>, vector<1x64x1xf32>
      tpu.vector_store %arg6[%c0_26, %c0_27, %c0_28], %42 {strides = array<i32>} : memref<1x64x1xf32, #tpu.memory_space<vmem>>, vector<1x64x1xf32>,
      %cst_29 = arith.constant 0.000000e+00 : f32
      %44 = vector.broadcast %cst_29 : f32 to vector<1x64x1xf32>
      %c0_30 = arith.constant 0 : index
      %c0_31 = arith.constant 0 : index
      %c0_32 = arith.constant 0 : index
      %45 = vector.load %arg7[%c0_30, %c0_31, %c0_32] : memref<1x64x1xf32, #tpu.memory_space<vmem>>, vector<1x64x1xf32>
      tpu.vector_store %arg7[%c0_30, %c0_31, %c0_32], %44 {strides = array<i32>} : memref<1x64x1xf32, #tpu.memory_space<vmem>>, vector<1x64x1xf32>,
    } else {
    }
    %c0 = arith.constant 0 : index
    %c0_1 = arith.constant 0 : index
    %c0_2 = arith.constant 0 : index
    %3 = vector.load %arg3[%c0, %c0_1, %c0_2] : memref<1x64x8xbf16, #tpu.memory_space<vmem>>, vector<1x64x8xbf16>
    %4 = vector.shape_cast %3 : vector<1x64x8xbf16> to vector<64x8xbf16>
    %c0_3 = arith.constant 0 : index
    %c0_4 = arith.constant 0 : index
    %c0_5 = arith.constant 0 : index
    %5 = vector.load %arg2[%c0_3, %c0_4, %c0_5] : memref<1x8x128xbf16, #tpu.memory_space<vmem>>, vector<1x8x128xbf16>
    %6 = vector.shape_cast %5 : vector<1x8x128xbf16> to vector<8x128xbf16>
    %cst = arith.constant dense<0.000000e+00> : vector<64x128xf32>
    %7 = tpu.matmul %4, %6, %cst {dimension_numbers = #tpu.dot_dimension_numbers<[1], [0], [0], [1], [0, 0, 1, 1], [], []>} : vector<64x8xbf16>, vector<8x128xbf16>, vector<64x128xf32> -> vector<64x128xf32>
    %c0_6 = arith.constant 0 : index
    %c0_7 = arith.constant 0 : index
    %8 = vector.load %arg4[%c0_6, %c0_7] : memref<64x1xf32, #tpu.memory_space<vmem>>, vector<64x1xf32>
    %9 = vector.broadcast %8 : vector<64x1xf32> to vector<64x128xf32>
    %10 = arith.addf %7, %9 : vector<64x128xf32>
    %11 = arith.truncf %10 : vector<64x128xf32> to vector<64x128xbf16>
    %c0_8 = arith.constant 0 : index
    %c0_9 = arith.constant 0 : index
    %c0_10 = arith.constant 0 : index
    %12 = vector.load %arg5[%c0_8, %c0_9, %c0_10] : memref<1x64x128xbf16, #tpu.memory_space<vmem>>, vector<1x64x128xbf16>
    %13 = vector.shape_cast %12 : vector<1x64x128xbf16> to vector<64x128xbf16>
    %14 = vector.shape_cast %11 : vector<64x128xbf16> to vector<1x64x128xbf16>
    tpu.vector_store %arg5[%c0_8, %c0_9, %c0_10], %14 {strides = array<i32>} : memref<1x64x128xbf16, #tpu.memory_space<vmem>>, vector<1x64x128xbf16>,
    %c128_i32 = arith.constant 128 : i32
    %15 = arith.muli %arg1, %c128_i32 : i32
    %16 = tpu.iota {dimensions = array<i32: 1>} : vector<1x128xi32>
    %17 = vector.broadcast %15 : i32 to vector<1x128xi32>
    %18 = arith.addi %17, %16 : vector<1x128xi32>
    %c2_i32 = arith.constant 2 : i32
    %19 = vector.broadcast %c2_i32 : i32 to vector<1x128xi32>
    %20 = arith.cmpi slt, %18, %19 : vector<1x128xi32>
    %21 = arith.extui %20 : vector<1x128xi1> to vector<1x128xi32>
    %22 = arith.sitofp %21 : vector<1x128xi32> to vector<1x128xf32>
    %23 = vector.broadcast %22 : vector<1x128xf32> to vector<64x128xf32>
    %24 = arith.mulf %10, %23 : vector<64x128xf32>
    %c0_11 = arith.constant 0 : index
    %c0_12 = arith.constant 0 : index
    %c0_13 = arith.constant 0 : index
    %25 = vector.load %arg6[%c0_11, %c0_12, %c0_13] : memref<1x64x1xf32, #tpu.memory_space<vmem>>, vector<1x64x1xf32>
    %26 = vector.shape_cast %25 : vector<1x64x1xf32> to vector<64x1xf32>
    %cst_14 = arith.constant dense<0.000000e+00> : vector<64xf32>
    %27 = vector.multi_reduction <add>, %24, %cst_14 [1] : vector<64x128xf32> to vector<64xf32>
    %28 = vector.shape_cast %27 : vector<64xf32> to vector<64x1xf32>
    %29 = arith.addf %26, %28 : vector<64x1xf32>
    %c0_15 = arith.constant 0 : index
    %c0_16 = arith.constant 0 : index
    %c0_17 = arith.constant 0 : index
    %30 = vector.load %arg6[%c0_15, %c0_16, %c0_17] : memref<1x64x1xf32, #tpu.memory_space<vmem>>, vector<1x64x1xf32>
    %31 = vector.shape_cast %30 : vector<1x64x1xf32> to vector<64x1xf32>
    %32 = vector.shape_cast %29 : vector<64x1xf32> to vector<1x64x1xf32>
    tpu.vector_store %arg6[%c0_15, %c0_16, %c0_17], %32 {strides = array<i32>} : memref<1x64x1xf32, #tpu.memory_space<vmem>>, vector<1x64x1xf32>,
    %c0_18 = arith.constant 0 : index
    %c0_19 = arith.constant 0 : index
    %c0_20 = arith.constant 0 : index
    %33 = vector.load %arg7[%c0_18, %c0_19, %c0_20] : memref<1x64x1xf32, #tpu.memory_space<vmem>>, vector<1x64x1xf32>
    %34 = vector.shape_cast %33 : vector<1x64x1xf32> to vector<64x1xf32>
    %35 = arith.mulf %24, %10 : vector<64x128xf32>
    %cst_21 = arith.constant dense<0.000000e+00> : vector<64xf32>
    %36 = vector.multi_reduction <add>, %35, %cst_21 [1] : vector<64x128xf32> to vector<64xf32>
    %37 = vector.shape_cast %36 : vector<64xf32> to vector<64x1xf32>
    %38 = arith.addf %34, %37 : vector<64x1xf32>
    %c0_22 = arith.constant 0 : index
    %c0_23 = arith.constant 0 : index
    %c0_24 = arith.constant 0 : index
    %39 = vector.load %arg7[%c0_22, %c0_23, %c0_24] : memref<1x64x1xf32, #tpu.memory_space<vmem>>, vector<1x64x1xf32>
    %40 = vector.shape_cast %39 : vector<1x64x1xf32> to vector<64x1xf32>
    %41 = vector.shape_cast %38 : vector<64x1xf32> to vector<1x64x1xf32>
    tpu.vector_store %arg7[%c0_22, %c0_23, %c0_24], %41 {strides = array<i32>} : memref<1x64x1xf32, #tpu.memory_space<vmem>>, vector<1x64x1xf32>,
    return
  }
  func.func @transform_0(%arg0: i32, %arg1: i32) -> (i32, i32, i32) {
    %c0_i32 = arith.constant 0 : i32
    %c0_i32_0 = arith.constant 0 : i32
    %c0_i32_1 = arith.constant 0 : i32
    return %c0_i32, %c0_i32_0, %arg1 : i32, i32, i32
  }
  func.func @transform_1(%arg0: i32, %arg1: i32) -> (i32, i32, i32) {
    %c0_i32 = arith.constant 0 : i32
    %c0_i32_0 = arith.constant 0 : i32
    %c0_i32_1 = arith.constant 0 : i32
    return %arg0, %c0_i32, %c0_i32_0 : i32, i32, i32
  }
  func.func @transform_2(%arg0: i32, %arg1: i32) -> (i32, i32) {
    %c0_i32 = arith.constant 0 : i32
    %c0_i32_0 = arith.constant 0 : i32
    %c0_i32_1 = arith.constant 0 : i32
    return %c0_i32, %c0_i32_0 : i32, i32
  }
  func.func @transform_3(%arg0: i32, %arg1: i32) -> (i32, i32, i32) {
    %c0_i32 = arith.constant 0 : i32
    %c0_i32_0 = arith.constant 0 : i32
    return %arg0, %c0_i32, %arg1 : i32, i32, i32
  }
  func.func @transform_4(%arg0: i32, %arg1: i32) -> (i32, i32, i32) {
    %c0_i32 = arith.constant 0 : i32
    %c0_i32_0 = arith.constant 0 : i32
    %c0_i32_1 = arith.constant 0 : i32
    return %arg0, %c0_i32, %c0_i32_0 : i32, i32, i32
  }
  func.func @transform_5(%arg0: i32, %arg1: i32) -> (i32, i32, i32) {
    %c0_i32 = arith.constant 0 : i32
    %c0_i32_0 = arith.constant 0 : i32
    %c0_i32_1 = arith.constant 0 : i32
    return %arg0, %c0_i32, %c0_i32_0 : i32, i32, i32
  }
}

module attributes {stable_mosaic.version = 11 : i64} {
  func.func @_bn_relu_kernel(%arg0: i32, %arg1: i32, %arg2: memref<1x64x128xbf16, #tpu.memory_space<vmem>>, %arg3: memref<64x1xf32, #tpu.memory_space<vmem>>, %arg4: memref<64x1xf32, #tpu.memory_space<vmem>>, %arg5: memref<1x64x128xbf16, #tpu.memory_space<vmem>>) attributes {dimension_semantics = [#tpu.dimension_semantics<parallel>, #tpu.dimension_semantics<parallel>], iteration_bounds = array<i64: 16, 1>, scalar_prefetch = 0 : i64, scratch_operands = 0 : i64, tpu.core_type = #tpu.core_type<tc>, window_params = [{transform_indices = @transform_0, window_bounds = array<i64: 1, 64, 128>}, {pipeline_mode = #tpu.pipeline_mode<synchronous>, transform_indices = @transform_1, window_bounds = array<i64: 64, 1>}, {pipeline_mode = #tpu.pipeline_mode<synchronous>, transform_indices = @transform_2, window_bounds = array<i64: 64, 1>}, {transform_indices = @transform_3, window_bounds = array<i64: 1, 64, 128>}]} {
    %c0 = arith.constant 0 : index
    %c0_0 = arith.constant 0 : index
    %c0_1 = arith.constant 0 : index
    %0 = vector.load %arg2[%c0, %c0_0, %c0_1] : memref<1x64x128xbf16, #tpu.memory_space<vmem>>, vector<1x64x128xbf16>
    %1 = vector.shape_cast %0 : vector<1x64x128xbf16> to vector<64x128xbf16>
    %2 = arith.extf %1 : vector<64x128xbf16> to vector<64x128xf32>
    %c0_2 = arith.constant 0 : index
    %c0_3 = arith.constant 0 : index
    %3 = vector.load %arg3[%c0_2, %c0_3] : memref<64x1xf32, #tpu.memory_space<vmem>>, vector<64x1xf32>
    %4 = vector.broadcast %3 : vector<64x1xf32> to vector<64x128xf32>
    %5 = arith.mulf %2, %4 : vector<64x128xf32>
    %c0_4 = arith.constant 0 : index
    %c0_5 = arith.constant 0 : index
    %6 = vector.load %arg4[%c0_4, %c0_5] : memref<64x1xf32, #tpu.memory_space<vmem>>, vector<64x1xf32>
    %7 = vector.broadcast %6 : vector<64x1xf32> to vector<64x128xf32>
    %8 = arith.addf %5, %7 : vector<64x128xf32>
    %cst = arith.constant 0.000000e+00 : f32
    %9 = vector.broadcast %cst : f32 to vector<64x128xf32>
    %10 = arith.maximumf %8, %9 : vector<64x128xf32>
    %11 = arith.truncf %10 : vector<64x128xf32> to vector<64x128xbf16>
    %c0_6 = arith.constant 0 : index
    %c0_7 = arith.constant 0 : index
    %c0_8 = arith.constant 0 : index
    %12 = vector.load %arg5[%c0_6, %c0_7, %c0_8] : memref<1x64x128xbf16, #tpu.memory_space<vmem>>, vector<1x64x128xbf16>
    %13 = vector.shape_cast %12 : vector<1x64x128xbf16> to vector<64x128xbf16>
    %14 = vector.shape_cast %11 : vector<64x128xbf16> to vector<1x64x128xbf16>
    tpu.vector_store %arg5[%c0_6, %c0_7, %c0_8], %14 {strides = array<i32>} : memref<1x64x128xbf16, #tpu.memory_space<vmem>>, vector<1x64x128xbf16>,
    return
  }
  func.func @transform_0(%arg0: i32, %arg1: i32) -> (i32, i32, i32) {
    %c0_i32 = arith.constant 0 : i32
    %c0_i32_0 = arith.constant 0 : i32
    return %arg0, %c0_i32, %arg1 : i32, i32, i32
  }
  func.func @transform_1(%arg0: i32, %arg1: i32) -> (i32, i32) {
    %c0_i32 = arith.constant 0 : i32
    %c0_i32_0 = arith.constant 0 : i32
    %c0_i32_1 = arith.constant 0 : i32
    return %c0_i32, %c0_i32_0 : i32, i32
  }
  func.func @transform_2(%arg0: i32, %arg1: i32) -> (i32, i32) {
    %c0_i32 = arith.constant 0 : i32
    %c0_i32_0 = arith.constant 0 : i32
    %c0_i32_1 = arith.constant 0 : i32
    return %c0_i32, %c0_i32_0 : i32, i32
  }
  func.func @transform_3(%arg0: i32, %arg1: i32) -> (i32, i32, i32) {
    %c0_i32 = arith.constant 0 : i32
    %c0_i32_0 = arith.constant 0 : i32
    return %arg0, %c0_i32, %arg1 : i32, i32, i32
  }
}

module attributes {stable_mosaic.version = 11 : i64} {
  func.func @_gemm_bias_stats_kernel(%arg0: i32, %arg1: i32, %arg2: memref<1x256x128xbf16, #tpu.memory_space<vmem>>, %arg3: memref<1x32x256xbf16, #tpu.memory_space<vmem>>, %arg4: memref<32x1xf32, #tpu.memory_space<vmem>>, %arg5: memref<1x32x128xbf16, #tpu.memory_space<vmem>>, %arg6: memref<1x32x1xf32, #tpu.memory_space<vmem>>, %arg7: memref<1x32x1xf32, #tpu.memory_space<vmem>>) attributes {dimension_semantics = [#tpu.dimension_semantics<parallel>, #tpu.dimension_semantics<arbitrary>], iteration_bounds = array<i64: 4, 1>, scalar_prefetch = 0 : i64, scratch_operands = 0 : i64, tpu.core_type = #tpu.core_type<tc>, window_params = [{transform_indices = @transform_0, window_bounds = array<i64: 1, 256, 128>}, {transform_indices = @transform_1, window_bounds = array<i64: 1, 32, 256>}, {pipeline_mode = #tpu.pipeline_mode<synchronous>, transform_indices = @transform_2, window_bounds = array<i64: 32, 1>}, {transform_indices = @transform_3, window_bounds = array<i64: 1, 32, 128>}, {transform_indices = @transform_4, window_bounds = array<i64: 1, 32, 1>}, {transform_indices = @transform_5, window_bounds = array<i64: 1, 32, 1>}]} {
    %c0_i32 = arith.constant 0 : i32
    %0 = arith.cmpi eq, %arg1, %c0_i32 : i32
    %1 = arith.extui %0 : i1 to i32
    %c0_i32_0 = arith.constant 0 : i32
    %2 = arith.cmpi ne, %1, %c0_i32_0 : i32
    scf.if %2 {
      %cst_25 = arith.constant 0.000000e+00 : f32
      %42 = vector.broadcast %cst_25 : f32 to vector<1x32x1xf32>
      %c0_26 = arith.constant 0 : index
      %c0_27 = arith.constant 0 : index
      %c0_28 = arith.constant 0 : index
      %43 = vector.load %arg6[%c0_26, %c0_27, %c0_28] : memref<1x32x1xf32, #tpu.memory_space<vmem>>, vector<1x32x1xf32>
      tpu.vector_store %arg6[%c0_26, %c0_27, %c0_28], %42 {strides = array<i32>} : memref<1x32x1xf32, #tpu.memory_space<vmem>>, vector<1x32x1xf32>,
      %cst_29 = arith.constant 0.000000e+00 : f32
      %44 = vector.broadcast %cst_29 : f32 to vector<1x32x1xf32>
      %c0_30 = arith.constant 0 : index
      %c0_31 = arith.constant 0 : index
      %c0_32 = arith.constant 0 : index
      %45 = vector.load %arg7[%c0_30, %c0_31, %c0_32] : memref<1x32x1xf32, #tpu.memory_space<vmem>>, vector<1x32x1xf32>
      tpu.vector_store %arg7[%c0_30, %c0_31, %c0_32], %44 {strides = array<i32>} : memref<1x32x1xf32, #tpu.memory_space<vmem>>, vector<1x32x1xf32>,
    } else {
    }
    %c0 = arith.constant 0 : index
    %c0_1 = arith.constant 0 : index
    %c0_2 = arith.constant 0 : index
    %3 = vector.load %arg3[%c0, %c0_1, %c0_2] : memref<1x32x256xbf16, #tpu.memory_space<vmem>>, vector<1x32x256xbf16>
    %4 = vector.shape_cast %3 : vector<1x32x256xbf16> to vector<32x256xbf16>
    %c0_3 = arith.constant 0 : index
    %c0_4 = arith.constant 0 : index
    %c0_5 = arith.constant 0 : index
    %5 = vector.load %arg2[%c0_3, %c0_4, %c0_5] : memref<1x256x128xbf16, #tpu.memory_space<vmem>>, vector<1x256x128xbf16>
    %6 = vector.shape_cast %5 : vector<1x256x128xbf16> to vector<256x128xbf16>
    %cst = arith.constant dense<0.000000e+00> : vector<32x128xf32>
    %7 = tpu.matmul %4, %6, %cst {dimension_numbers = #tpu.dot_dimension_numbers<[1], [0], [0], [1], [0, 0, 1, 1], [], []>} : vector<32x256xbf16>, vector<256x128xbf16>, vector<32x128xf32> -> vector<32x128xf32>
    %c0_6 = arith.constant 0 : index
    %c0_7 = arith.constant 0 : index
    %8 = vector.load %arg4[%c0_6, %c0_7] : memref<32x1xf32, #tpu.memory_space<vmem>>, vector<32x1xf32>
    %9 = vector.broadcast %8 : vector<32x1xf32> to vector<32x128xf32>
    %10 = arith.addf %7, %9 : vector<32x128xf32>
    %11 = arith.truncf %10 : vector<32x128xf32> to vector<32x128xbf16>
    %c0_8 = arith.constant 0 : index
    %c0_9 = arith.constant 0 : index
    %c0_10 = arith.constant 0 : index
    %12 = vector.load %arg5[%c0_8, %c0_9, %c0_10] : memref<1x32x128xbf16, #tpu.memory_space<vmem>>, vector<1x32x128xbf16>
    %13 = vector.shape_cast %12 : vector<1x32x128xbf16> to vector<32x128xbf16>
    %14 = vector.shape_cast %11 : vector<32x128xbf16> to vector<1x32x128xbf16>
    tpu.vector_store %arg5[%c0_8, %c0_9, %c0_10], %14 {strides = array<i32>} : memref<1x32x128xbf16, #tpu.memory_space<vmem>>, vector<1x32x128xbf16>,
    %c128_i32 = arith.constant 128 : i32
    %15 = arith.muli %arg1, %c128_i32 : i32
    %16 = tpu.iota {dimensions = array<i32: 1>} : vector<1x128xi32>
    %17 = vector.broadcast %15 : i32 to vector<1x128xi32>
    %18 = arith.addi %17, %16 : vector<1x128xi32>
    %c32_i32 = arith.constant 32 : i32
    %19 = vector.broadcast %c32_i32 : i32 to vector<1x128xi32>
    %20 = arith.cmpi slt, %18, %19 : vector<1x128xi32>
    %21 = arith.extui %20 : vector<1x128xi1> to vector<1x128xi32>
    %22 = arith.sitofp %21 : vector<1x128xi32> to vector<1x128xf32>
    %23 = vector.broadcast %22 : vector<1x128xf32> to vector<32x128xf32>
    %24 = arith.mulf %10, %23 : vector<32x128xf32>
    %c0_11 = arith.constant 0 : index
    %c0_12 = arith.constant 0 : index
    %c0_13 = arith.constant 0 : index
    %25 = vector.load %arg6[%c0_11, %c0_12, %c0_13] : memref<1x32x1xf32, #tpu.memory_space<vmem>>, vector<1x32x1xf32>
    %26 = vector.shape_cast %25 : vector<1x32x1xf32> to vector<32x1xf32>
    %cst_14 = arith.constant dense<0.000000e+00> : vector<32xf32>
    %27 = vector.multi_reduction <add>, %24, %cst_14 [1] : vector<32x128xf32> to vector<32xf32>
    %28 = vector.shape_cast %27 : vector<32xf32> to vector<32x1xf32>
    %29 = arith.addf %26, %28 : vector<32x1xf32>
    %c0_15 = arith.constant 0 : index
    %c0_16 = arith.constant 0 : index
    %c0_17 = arith.constant 0 : index
    %30 = vector.load %arg6[%c0_15, %c0_16, %c0_17] : memref<1x32x1xf32, #tpu.memory_space<vmem>>, vector<1x32x1xf32>
    %31 = vector.shape_cast %30 : vector<1x32x1xf32> to vector<32x1xf32>
    %32 = vector.shape_cast %29 : vector<32x1xf32> to vector<1x32x1xf32>
    tpu.vector_store %arg6[%c0_15, %c0_16, %c0_17], %32 {strides = array<i32>} : memref<1x32x1xf32, #tpu.memory_space<vmem>>, vector<1x32x1xf32>,
    %c0_18 = arith.constant 0 : index
    %c0_19 = arith.constant 0 : index
    %c0_20 = arith.constant 0 : index
    %33 = vector.load %arg7[%c0_18, %c0_19, %c0_20] : memref<1x32x1xf32, #tpu.memory_space<vmem>>, vector<1x32x1xf32>
    %34 = vector.shape_cast %33 : vector<1x32x1xf32> to vector<32x1xf32>
    %35 = arith.mulf %24, %10 : vector<32x128xf32>
    %cst_21 = arith.constant dense<0.000000e+00> : vector<32xf32>
    %36 = vector.multi_reduction <add>, %35, %cst_21 [1] : vector<32x128xf32> to vector<32xf32>
    %37 = vector.shape_cast %36 : vector<32xf32> to vector<32x1xf32>
    %38 = arith.addf %34, %37 : vector<32x1xf32>
    %c0_22 = arith.constant 0 : index
    %c0_23 = arith.constant 0 : index
    %c0_24 = arith.constant 0 : index
    %39 = vector.load %arg7[%c0_22, %c0_23, %c0_24] : memref<1x32x1xf32, #tpu.memory_space<vmem>>, vector<1x32x1xf32>
    %40 = vector.shape_cast %39 : vector<1x32x1xf32> to vector<32x1xf32>
    %41 = vector.shape_cast %38 : vector<32x1xf32> to vector<1x32x1xf32>
    tpu.vector_store %arg7[%c0_22, %c0_23, %c0_24], %41 {strides = array<i32>} : memref<1x32x1xf32, #tpu.memory_space<vmem>>, vector<1x32x1xf32>,
    return
  }
  func.func @transform_0(%arg0: i32, %arg1: i32) -> (i32, i32, i32) {
    %c0_i32 = arith.constant 0 : i32
    %c0_i32_0 = arith.constant 0 : i32
    return %arg0, %c0_i32, %arg1 : i32, i32, i32
  }
  func.func @transform_1(%arg0: i32, %arg1: i32) -> (i32, i32, i32) {
    %c0_i32 = arith.constant 0 : i32
    %c0_i32_0 = arith.constant 0 : i32
    %c0_i32_1 = arith.constant 0 : i32
    return %arg0, %c0_i32, %c0_i32_0 : i32, i32, i32
  }
  func.func @transform_2(%arg0: i32, %arg1: i32) -> (i32, i32) {
    %c0_i32 = arith.constant 0 : i32
    %c0_i32_0 = arith.constant 0 : i32
    %c0_i32_1 = arith.constant 0 : i32
    return %c0_i32, %c0_i32_0 : i32, i32
  }
  func.func @transform_3(%arg0: i32, %arg1: i32) -> (i32, i32, i32) {
    %c0_i32 = arith.constant 0 : i32
    %c0_i32_0 = arith.constant 0 : i32
    return %arg0, %c0_i32, %arg1 : i32, i32, i32
  }
  func.func @transform_4(%arg0: i32, %arg1: i32) -> (i32, i32, i32) {
    %c0_i32 = arith.constant 0 : i32
    %c0_i32_0 = arith.constant 0 : i32
    %c0_i32_1 = arith.constant 0 : i32
    return %arg0, %c0_i32, %c0_i32_0 : i32, i32, i32
  }
  func.func @transform_5(%arg0: i32, %arg1: i32) -> (i32, i32, i32) {
    %c0_i32 = arith.constant 0 : i32
    %c0_i32_0 = arith.constant 0 : i32
    %c0_i32_1 = arith.constant 0 : i32
    return %arg0, %c0_i32, %c0_i32_0 : i32, i32, i32
  }
}

module attributes {stable_mosaic.version = 11 : i64} {
  func.func @_bn_relu_kernel(%arg0: i32, %arg1: i32, %arg2: memref<1x32x128xbf16, #tpu.memory_space<vmem>>, %arg3: memref<32x1xf32, #tpu.memory_space<vmem>>, %arg4: memref<32x1xf32, #tpu.memory_space<vmem>>, %arg5: memref<1x32x128xbf16, #tpu.memory_space<vmem>>) attributes {dimension_semantics = [#tpu.dimension_semantics<parallel>, #tpu.dimension_semantics<parallel>], iteration_bounds = array<i64: 4, 1>, scalar_prefetch = 0 : i64, scratch_operands = 0 : i64, tpu.core_type = #tpu.core_type<tc>, window_params = [{transform_indices = @transform_0, window_bounds = array<i64: 1, 32, 128>}, {pipeline_mode = #tpu.pipeline_mode<synchronous>, transform_indices = @transform_1, window_bounds = array<i64: 32, 1>}, {pipeline_mode = #tpu.pipeline_mode<synchronous>, transform_indices = @transform_2, window_bounds = array<i64: 32, 1>}, {transform_indices = @transform_3, window_bounds = array<i64: 1, 32, 128>}]} {
    %c0 = arith.constant 0 : index
    %c0_0 = arith.constant 0 : index
    %c0_1 = arith.constant 0 : index
    %0 = vector.load %arg2[%c0, %c0_0, %c0_1] : memref<1x32x128xbf16, #tpu.memory_space<vmem>>, vector<1x32x128xbf16>
    %1 = vector.shape_cast %0 : vector<1x32x128xbf16> to vector<32x128xbf16>
    %2 = arith.extf %1 : vector<32x128xbf16> to vector<32x128xf32>
    %c0_2 = arith.constant 0 : index
    %c0_3 = arith.constant 0 : index
    %3 = vector.load %arg3[%c0_2, %c0_3] : memref<32x1xf32, #tpu.memory_space<vmem>>, vector<32x1xf32>
    %4 = vector.broadcast %3 : vector<32x1xf32> to vector<32x128xf32>
    %5 = arith.mulf %2, %4 : vector<32x128xf32>
    %c0_4 = arith.constant 0 : index
    %c0_5 = arith.constant 0 : index
    %6 = vector.load %arg4[%c0_4, %c0_5] : memref<32x1xf32, #tpu.memory_space<vmem>>, vector<32x1xf32>
    %7 = vector.broadcast %6 : vector<32x1xf32> to vector<32x128xf32>
    %8 = arith.addf %5, %7 : vector<32x128xf32>
    %cst = arith.constant 0.000000e+00 : f32
    %9 = vector.broadcast %cst : f32 to vector<32x128xf32>
    %10 = arith.maximumf %8, %9 : vector<32x128xf32>
    %11 = arith.truncf %10 : vector<32x128xf32> to vector<32x128xbf16>
    %c0_6 = arith.constant 0 : index
    %c0_7 = arith.constant 0 : index
    %c0_8 = arith.constant 0 : index
    %12 = vector.load %arg5[%c0_6, %c0_7, %c0_8] : memref<1x32x128xbf16, #tpu.memory_space<vmem>>, vector<1x32x128xbf16>
    %13 = vector.shape_cast %12 : vector<1x32x128xbf16> to vector<32x128xbf16>
    %14 = vector.shape_cast %11 : vector<32x128xbf16> to vector<1x32x128xbf16>
    tpu.vector_store %arg5[%c0_6, %c0_7, %c0_8], %14 {strides = array<i32>} : memref<1x32x128xbf16, #tpu.memory_space<vmem>>, vector<1x32x128xbf16>,
    return
  }
  func.func @transform_0(%arg0: i32, %arg1: i32) -> (i32, i32, i32) {
    %c0_i32 = arith.constant 0 : i32
    %c0_i32_0 = arith.constant 0 : i32
    return %arg0, %c0_i32, %arg1 : i32, i32, i32
  }
  func.func @transform_1(%arg0: i32, %arg1: i32) -> (i32, i32) {
    %c0_i32 = arith.constant 0 : i32
    %c0_i32_0 = arith.constant 0 : i32
    %c0_i32_1 = arith.constant 0 : i32
    return %c0_i32, %c0_i32_0 : i32, i32
  }
  func.func @transform_2(%arg0: i32, %arg1: i32) -> (i32, i32) {
    %c0_i32 = arith.constant 0 : i32
    %c0_i32_0 = arith.constant 0 : i32
    %c0_i32_1 = arith.constant 0 : i32
    return %c0_i32, %c0_i32_0 : i32, i32
  }
  func.func @transform_3(%arg0: i32, %arg1: i32) -> (i32, i32, i32) {
    %c0_i32 = arith.constant 0 : i32
    %c0_i32_0 = arith.constant 0 : i32
    return %arg0, %c0_i32, %arg1 : i32, i32, i32
  }
}

module attributes {stable_mosaic.version = 11 : i64} {
  func.func @_gemm_bias_stats_kernel(%arg0: i32, %arg1: i32, %arg2: memref<1x128x128xbf16, #tpu.memory_space<vmem>>, %arg3: memref<1x16x128xbf16, #tpu.memory_space<vmem>>, %arg4: memref<16x1xf32, #tpu.memory_space<vmem>>, %arg5: memref<1x16x128xbf16, #tpu.memory_space<vmem>>, %arg6: memref<1x16x1xf32, #tpu.memory_space<vmem>>, %arg7: memref<1x16x1xf32, #tpu.memory_space<vmem>>) attributes {dimension_semantics = [#tpu.dimension_semantics<parallel>, #tpu.dimension_semantics<arbitrary>], iteration_bounds = array<i64: 4, 1>, scalar_prefetch = 0 : i64, scratch_operands = 0 : i64, tpu.core_type = #tpu.core_type<tc>, window_params = [{transform_indices = @transform_0, window_bounds = array<i64: 1, 128, 128>}, {transform_indices = @transform_1, window_bounds = array<i64: 1, 16, 128>}, {pipeline_mode = #tpu.pipeline_mode<synchronous>, transform_indices = @transform_2, window_bounds = array<i64: 16, 1>}, {transform_indices = @transform_3, window_bounds = array<i64: 1, 16, 128>}, {transform_indices = @transform_4, window_bounds = array<i64: 1, 16, 1>}, {transform_indices = @transform_5, window_bounds = array<i64: 1, 16, 1>}]} {
    %c0_i32 = arith.constant 0 : i32
    %0 = arith.cmpi eq, %arg1, %c0_i32 : i32
    %1 = arith.extui %0 : i1 to i32
    %c0_i32_0 = arith.constant 0 : i32
    %2 = arith.cmpi ne, %1, %c0_i32_0 : i32
    scf.if %2 {
      %cst_26 = arith.constant 0.000000e+00 : f32
      %42 = vector.broadcast %cst_26 : f32 to vector<1x16x1xf32>
      %c0_27 = arith.constant 0 : index
      %c0_28 = arith.constant 0 : index
      %c0_29 = arith.constant 0 : index
      %43 = vector.load %arg6[%c0_27, %c0_28, %c0_29] : memref<1x16x1xf32, #tpu.memory_space<vmem>>, vector<1x16x1xf32>
      tpu.vector_store %arg6[%c0_27, %c0_28, %c0_29], %42 {strides = array<i32>} : memref<1x16x1xf32, #tpu.memory_space<vmem>>, vector<1x16x1xf32>,
      %cst_30 = arith.constant 0.000000e+00 : f32
      %44 = vector.broadcast %cst_30 : f32 to vector<1x16x1xf32>
      %c0_31 = arith.constant 0 : index
      %c0_32 = arith.constant 0 : index
      %c0_33 = arith.constant 0 : index
      %45 = vector.load %arg7[%c0_31, %c0_32, %c0_33] : memref<1x16x1xf32, #tpu.memory_space<vmem>>, vector<1x16x1xf32>
      tpu.vector_store %arg7[%c0_31, %c0_32, %c0_33], %44 {strides = array<i32>} : memref<1x16x1xf32, #tpu.memory_space<vmem>>, vector<1x16x1xf32>,
    } else {
    }
    %c0 = arith.constant 0 : index
    %c0_1 = arith.constant 0 : index
    %c0_2 = arith.constant 0 : index
    %3 = vector.load %arg3[%c0, %c0_1, %c0_2] : memref<1x16x128xbf16, #tpu.memory_space<vmem>>, vector<1x16x128xbf16>
    %4 = vector.shape_cast %3 : vector<1x16x128xbf16> to vector<16x128xbf16>
    %c0_3 = arith.constant 0 : index
    %c0_4 = arith.constant 0 : index
    %c0_5 = arith.constant 0 : index
    %5 = vector.load %arg2[%c0_3, %c0_4, %c0_5] : memref<1x128x128xbf16, #tpu.memory_space<vmem>>, vector<1x128x128xbf16>
    %6 = vector.shape_cast %5 : vector<1x128x128xbf16> to vector<128x128xbf16>
    %cst = arith.constant dense<0.000000e+00> : vector<16x128xf32>
    %7 = tpu.matmul %4, %6, %cst {dimension_numbers = #tpu.dot_dimension_numbers<[1], [0], [0], [1], [0, 0, 1, 1], [], []>} : vector<16x128xbf16>, vector<128x128xbf16>, vector<16x128xf32> -> vector<16x128xf32>
    %c0_6 = arith.constant 0 : index
    %c0_7 = arith.constant 0 : index
    %8 = vector.load %arg4[%c0_6, %c0_7] : memref<16x1xf32, #tpu.memory_space<vmem>>, vector<16x1xf32>
    %9 = vector.broadcast %8 : vector<16x1xf32> to vector<16x128xf32>
    %10 = arith.addf %7, %9 : vector<16x128xf32>
    %11 = arith.truncf %10 : vector<16x128xf32> to vector<16x128xbf16>
    %c0_8 = arith.constant 0 : index
    %c0_9 = arith.constant 0 : index
    %c0_10 = arith.constant 0 : index
    %12 = vector.load %arg5[%c0_8, %c0_9, %c0_10] : memref<1x16x128xbf16, #tpu.memory_space<vmem>>, vector<1x16x128xbf16>
    %13 = vector.shape_cast %12 : vector<1x16x128xbf16> to vector<16x128xbf16>
    %14 = vector.shape_cast %11 : vector<16x128xbf16> to vector<1x16x128xbf16>
    tpu.vector_store %arg5[%c0_8, %c0_9, %c0_10], %14 {strides = array<i32>} : memref<1x16x128xbf16, #tpu.memory_space<vmem>>, vector<1x16x128xbf16>,
    %c128_i32 = arith.constant 128 : i32
    %15 = arith.muli %arg1, %c128_i32 : i32
    %16 = tpu.iota {dimensions = array<i32: 1>} : vector<1x128xi32>
    %17 = vector.broadcast %15 : i32 to vector<1x128xi32>
    %18 = arith.addi %17, %16 : vector<1x128xi32>
    %c128_i32_11 = arith.constant 128 : i32
    %19 = vector.broadcast %c128_i32_11 : i32 to vector<1x128xi32>
    %20 = arith.cmpi slt, %18, %19 : vector<1x128xi32>
    %21 = arith.extui %20 : vector<1x128xi1> to vector<1x128xi32>
    %22 = arith.sitofp %21 : vector<1x128xi32> to vector<1x128xf32>
    %23 = vector.broadcast %22 : vector<1x128xf32> to vector<16x128xf32>
    %24 = arith.mulf %10, %23 : vector<16x128xf32>
    %c0_12 = arith.constant 0 : index
    %c0_13 = arith.constant 0 : index
    %c0_14 = arith.constant 0 : index
    %25 = vector.load %arg6[%c0_12, %c0_13, %c0_14] : memref<1x16x1xf32, #tpu.memory_space<vmem>>, vector<1x16x1xf32>
    %26 = vector.shape_cast %25 : vector<1x16x1xf32> to vector<16x1xf32>
    %cst_15 = arith.constant dense<0.000000e+00> : vector<16xf32>
    %27 = vector.multi_reduction <add>, %24, %cst_15 [1] : vector<16x128xf32> to vector<16xf32>
    %28 = vector.shape_cast %27 : vector<16xf32> to vector<16x1xf32>
    %29 = arith.addf %26, %28 : vector<16x1xf32>
    %c0_16 = arith.constant 0 : index
    %c0_17 = arith.constant 0 : index
    %c0_18 = arith.constant 0 : index
    %30 = vector.load %arg6[%c0_16, %c0_17, %c0_18] : memref<1x16x1xf32, #tpu.memory_space<vmem>>, vector<1x16x1xf32>
    %31 = vector.shape_cast %30 : vector<1x16x1xf32> to vector<16x1xf32>
    %32 = vector.shape_cast %29 : vector<16x1xf32> to vector<1x16x1xf32>
    tpu.vector_store %arg6[%c0_16, %c0_17, %c0_18], %32 {strides = array<i32>} : memref<1x16x1xf32, #tpu.memory_space<vmem>>, vector<1x16x1xf32>,
    %c0_19 = arith.constant 0 : index
    %c0_20 = arith.constant 0 : index
    %c0_21 = arith.constant 0 : index
    %33 = vector.load %arg7[%c0_19, %c0_20, %c0_21] : memref<1x16x1xf32, #tpu.memory_space<vmem>>, vector<1x16x1xf32>
    %34 = vector.shape_cast %33 : vector<1x16x1xf32> to vector<16x1xf32>
    %35 = arith.mulf %24, %10 : vector<16x128xf32>
    %cst_22 = arith.constant dense<0.000000e+00> : vector<16xf32>
    %36 = vector.multi_reduction <add>, %35, %cst_22 [1] : vector<16x128xf32> to vector<16xf32>
    %37 = vector.shape_cast %36 : vector<16xf32> to vector<16x1xf32>
    %38 = arith.addf %34, %37 : vector<16x1xf32>
    %c0_23 = arith.constant 0 : index
    %c0_24 = arith.constant 0 : index
    %c0_25 = arith.constant 0 : index
    %39 = vector.load %arg7[%c0_23, %c0_24, %c0_25] : memref<1x16x1xf32, #tpu.memory_space<vmem>>, vector<1x16x1xf32>
    %40 = vector.shape_cast %39 : vector<1x16x1xf32> to vector<16x1xf32>
    %41 = vector.shape_cast %38 : vector<16x1xf32> to vector<1x16x1xf32>
    tpu.vector_store %arg7[%c0_23, %c0_24, %c0_25], %41 {strides = array<i32>} : memref<1x16x1xf32, #tpu.memory_space<vmem>>, vector<1x16x1xf32>,
    return
  }
  func.func @transform_0(%arg0: i32, %arg1: i32) -> (i32, i32, i32) {
    %c0_i32 = arith.constant 0 : i32
    %c0_i32_0 = arith.constant 0 : i32
    return %arg0, %c0_i32, %arg1 : i32, i32, i32
  }
  func.func @transform_1(%arg0: i32, %arg1: i32) -> (i32, i32, i32) {
    %c0_i32 = arith.constant 0 : i32
    %c0_i32_0 = arith.constant 0 : i32
    %c0_i32_1 = arith.constant 0 : i32
    return %arg0, %c0_i32, %c0_i32_0 : i32, i32, i32
  }
  func.func @transform_2(%arg0: i32, %arg1: i32) -> (i32, i32) {
    %c0_i32 = arith.constant 0 : i32
    %c0_i32_0 = arith.constant 0 : i32
    %c0_i32_1 = arith.constant 0 : i32
    return %c0_i32, %c0_i32_0 : i32, i32
  }
  func.func @transform_3(%arg0: i32, %arg1: i32) -> (i32, i32, i32) {
    %c0_i32 = arith.constant 0 : i32
    %c0_i32_0 = arith.constant 0 : i32
    return %arg0, %c0_i32, %arg1 : i32, i32, i32
  }
  func.func @transform_4(%arg0: i32, %arg1: i32) -> (i32, i32, i32) {
    %c0_i32 = arith.constant 0 : i32
    %c0_i32_0 = arith.constant 0 : i32
    %c0_i32_1 = arith.constant 0 : i32
    return %arg0, %c0_i32, %c0_i32_0 : i32, i32, i32
  }
  func.func @transform_5(%arg0: i32, %arg1: i32) -> (i32, i32, i32) {
    %c0_i32 = arith.constant 0 : i32
    %c0_i32_0 = arith.constant 0 : i32
    %c0_i32_1 = arith.constant 0 : i32
    return %arg0, %c0_i32, %c0_i32_0 : i32, i32, i32
  }
}

module attributes {stable_mosaic.version = 11 : i64} {
  func.func @_bn_relu_kernel(%arg0: i32, %arg1: i32, %arg2: memref<1x16x128xbf16, #tpu.memory_space<vmem>>, %arg3: memref<16x1xf32, #tpu.memory_space<vmem>>, %arg4: memref<16x1xf32, #tpu.memory_space<vmem>>, %arg5: memref<1x16x128xbf16, #tpu.memory_space<vmem>>) attributes {dimension_semantics = [#tpu.dimension_semantics<parallel>, #tpu.dimension_semantics<parallel>], iteration_bounds = array<i64: 4, 1>, scalar_prefetch = 0 : i64, scratch_operands = 0 : i64, tpu.core_type = #tpu.core_type<tc>, window_params = [{transform_indices = @transform_0, window_bounds = array<i64: 1, 16, 128>}, {pipeline_mode = #tpu.pipeline_mode<synchronous>, transform_indices = @transform_1, window_bounds = array<i64: 16, 1>}, {pipeline_mode = #tpu.pipeline_mode<synchronous>, transform_indices = @transform_2, window_bounds = array<i64: 16, 1>}, {transform_indices = @transform_3, window_bounds = array<i64: 1, 16, 128>}]} {
    %c0 = arith.constant 0 : index
    %c0_0 = arith.constant 0 : index
    %c0_1 = arith.constant 0 : index
    %0 = vector.load %arg2[%c0, %c0_0, %c0_1] : memref<1x16x128xbf16, #tpu.memory_space<vmem>>, vector<1x16x128xbf16>
    %1 = vector.shape_cast %0 : vector<1x16x128xbf16> to vector<16x128xbf16>
    %2 = arith.extf %1 : vector<16x128xbf16> to vector<16x128xf32>
    %c0_2 = arith.constant 0 : index
    %c0_3 = arith.constant 0 : index
    %3 = vector.load %arg3[%c0_2, %c0_3] : memref<16x1xf32, #tpu.memory_space<vmem>>, vector<16x1xf32>
    %4 = vector.broadcast %3 : vector<16x1xf32> to vector<16x128xf32>
    %5 = arith.mulf %2, %4 : vector<16x128xf32>
    %c0_4 = arith.constant 0 : index
    %c0_5 = arith.constant 0 : index
    %6 = vector.load %arg4[%c0_4, %c0_5] : memref<16x1xf32, #tpu.memory_space<vmem>>, vector<16x1xf32>
    %7 = vector.broadcast %6 : vector<16x1xf32> to vector<16x128xf32>
    %8 = arith.addf %5, %7 : vector<16x128xf32>
    %cst = arith.constant 0.000000e+00 : f32
    %9 = vector.broadcast %cst : f32 to vector<16x128xf32>
    %10 = arith.maximumf %8, %9 : vector<16x128xf32>
    %11 = arith.truncf %10 : vector<16x128xf32> to vector<16x128xbf16>
    %c0_6 = arith.constant 0 : index
    %c0_7 = arith.constant 0 : index
    %c0_8 = arith.constant 0 : index
    %12 = vector.load %arg5[%c0_6, %c0_7, %c0_8] : memref<1x16x128xbf16, #tpu.memory_space<vmem>>, vector<1x16x128xbf16>
    %13 = vector.shape_cast %12 : vector<1x16x128xbf16> to vector<16x128xbf16>
    %14 = vector.shape_cast %11 : vector<16x128xbf16> to vector<1x16x128xbf16>
    tpu.vector_store %arg5[%c0_6, %c0_7, %c0_8], %14 {strides = array<i32>} : memref<1x16x128xbf16, #tpu.memory_space<vmem>>, vector<1x16x128xbf16>,
    return
  }
  func.func @transform_0(%arg0: i32, %arg1: i32) -> (i32, i32, i32) {
    %c0_i32 = arith.constant 0 : i32
    %c0_i32_0 = arith.constant 0 : i32
    return %arg0, %c0_i32, %arg1 : i32, i32, i32
  }
  func.func @transform_1(%arg0: i32, %arg1: i32) -> (i32, i32) {
    %c0_i32 = arith.constant 0 : i32
    %c0_i32_0 = arith.constant 0 : i32
    %c0_i32_1 = arith.constant 0 : i32
    return %c0_i32, %c0_i32_0 : i32, i32
  }
  func.func @transform_2(%arg0: i32, %arg1: i32) -> (i32, i32) {
    %c0_i32 = arith.constant 0 : i32
    %c0_i32_0 = arith.constant 0 : i32
    %c0_i32_1 = arith.constant 0 : i32
    return %c0_i32, %c0_i32_0 : i32, i32
  }
  func.func @transform_3(%arg0: i32, %arg1: i32) -> (i32, i32, i32) {
    %c0_i32 = arith.constant 0 : i32
    %c0_i32_0 = arith.constant 0 : i32
    return %arg0, %c0_i32, %arg1 : i32, i32, i32
  }
}

module attributes {stable_mosaic.version = 11 : i64} {
  func.func @_gemm_bias_stats_kernel(%arg0: i32, %arg1: i32, %arg2: memref<1x64x512xbf16, #tpu.memory_space<vmem>>, %arg3: memref<1x8x64xbf16, #tpu.memory_space<vmem>>, %arg4: memref<8x1xf32, #tpu.memory_space<vmem>>, %arg5: memref<1x8x512xbf16, #tpu.memory_space<vmem>>, %arg6: memref<1x8x1xf32, #tpu.memory_space<vmem>>, %arg7: memref<1x8x1xf32, #tpu.memory_space<vmem>>) attributes {dimension_semantics = [#tpu.dimension_semantics<parallel>, #tpu.dimension_semantics<arbitrary>], iteration_bounds = array<i64: 4, 1>, scalar_prefetch = 0 : i64, scratch_operands = 0 : i64, tpu.core_type = #tpu.core_type<tc>, window_params = [{transform_indices = @transform_0, window_bounds = array<i64: 1, 64, 512>}, {transform_indices = @transform_1, window_bounds = array<i64: 1, 8, 64>}, {pipeline_mode = #tpu.pipeline_mode<synchronous>, transform_indices = @transform_2, window_bounds = array<i64: 8, 1>}, {transform_indices = @transform_3, window_bounds = array<i64: 1, 8, 512>}, {transform_indices = @transform_4, window_bounds = array<i64: 1, 8, 1>}, {transform_indices = @transform_5, window_bounds = array<i64: 1, 8, 1>}]} {
    %c0_i32 = arith.constant 0 : i32
    %0 = arith.cmpi eq, %arg1, %c0_i32 : i32
    %1 = arith.extui %0 : i1 to i32
    %c0_i32_0 = arith.constant 0 : i32
    %2 = arith.cmpi ne, %1, %c0_i32_0 : i32
    scf.if %2 {
      %cst_26 = arith.constant 0.000000e+00 : f32
      %42 = vector.broadcast %cst_26 : f32 to vector<1x8x1xf32>
      %c0_27 = arith.constant 0 : index
      %c0_28 = arith.constant 0 : index
      %c0_29 = arith.constant 0 : index
      %43 = vector.load %arg6[%c0_27, %c0_28, %c0_29] : memref<1x8x1xf32, #tpu.memory_space<vmem>>, vector<1x8x1xf32>
      tpu.vector_store %arg6[%c0_27, %c0_28, %c0_29], %42 {strides = array<i32>} : memref<1x8x1xf32, #tpu.memory_space<vmem>>, vector<1x8x1xf32>,
      %cst_30 = arith.constant 0.000000e+00 : f32
      %44 = vector.broadcast %cst_30 : f32 to vector<1x8x1xf32>
      %c0_31 = arith.constant 0 : index
      %c0_32 = arith.constant 0 : index
      %c0_33 = arith.constant 0 : index
      %45 = vector.load %arg7[%c0_31, %c0_32, %c0_33] : memref<1x8x1xf32, #tpu.memory_space<vmem>>, vector<1x8x1xf32>
      tpu.vector_store %arg7[%c0_31, %c0_32, %c0_33], %44 {strides = array<i32>} : memref<1x8x1xf32, #tpu.memory_space<vmem>>, vector<1x8x1xf32>,
    } else {
    }
    %c0 = arith.constant 0 : index
    %c0_1 = arith.constant 0 : index
    %c0_2 = arith.constant 0 : index
    %3 = vector.load %arg3[%c0, %c0_1, %c0_2] : memref<1x8x64xbf16, #tpu.memory_space<vmem>>, vector<1x8x64xbf16>
    %4 = vector.shape_cast %3 : vector<1x8x64xbf16> to vector<8x64xbf16>
    %c0_3 = arith.constant 0 : index
    %c0_4 = arith.constant 0 : index
    %c0_5 = arith.constant 0 : index
    %5 = vector.load %arg2[%c0_3, %c0_4, %c0_5] : memref<1x64x512xbf16, #tpu.memory_space<vmem>>, vector<1x64x512xbf16>
    %6 = vector.shape_cast %5 : vector<1x64x512xbf16> to vector<64x512xbf16>
    %cst = arith.constant dense<0.000000e+00> : vector<8x512xf32>
    %7 = tpu.matmul %4, %6, %cst {dimension_numbers = #tpu.dot_dimension_numbers<[1], [0], [0], [1], [0, 0, 1, 1], [], []>} : vector<8x64xbf16>, vector<64x512xbf16>, vector<8x512xf32> -> vector<8x512xf32>
    %c0_6 = arith.constant 0 : index
    %c0_7 = arith.constant 0 : index
    %8 = vector.load %arg4[%c0_6, %c0_7] : memref<8x1xf32, #tpu.memory_space<vmem>>, vector<8x1xf32>
    %9 = vector.broadcast %8 : vector<8x1xf32> to vector<8x512xf32>
    %10 = arith.addf %7, %9 : vector<8x512xf32>
    %11 = arith.truncf %10 : vector<8x512xf32> to vector<8x512xbf16>
    %c0_8 = arith.constant 0 : index
    %c0_9 = arith.constant 0 : index
    %c0_10 = arith.constant 0 : index
    %12 = vector.load %arg5[%c0_8, %c0_9, %c0_10] : memref<1x8x512xbf16, #tpu.memory_space<vmem>>, vector<1x8x512xbf16>
    %13 = vector.shape_cast %12 : vector<1x8x512xbf16> to vector<8x512xbf16>
    %14 = vector.shape_cast %11 : vector<8x512xbf16> to vector<1x8x512xbf16>
    tpu.vector_store %arg5[%c0_8, %c0_9, %c0_10], %14 {strides = array<i32>} : memref<1x8x512xbf16, #tpu.memory_space<vmem>>, vector<1x8x512xbf16>,
    %c512_i32 = arith.constant 512 : i32
    %15 = arith.muli %arg1, %c512_i32 : i32
    %16 = tpu.iota {dimensions = array<i32: 1>} : vector<1x512xi32>
    %17 = vector.broadcast %15 : i32 to vector<1x512xi32>
    %18 = arith.addi %17, %16 : vector<1x512xi32>
    %c512_i32_11 = arith.constant 512 : i32
    %19 = vector.broadcast %c512_i32_11 : i32 to vector<1x512xi32>
    %20 = arith.cmpi slt, %18, %19 : vector<1x512xi32>
    %21 = arith.extui %20 : vector<1x512xi1> to vector<1x512xi32>
    %22 = arith.sitofp %21 : vector<1x512xi32> to vector<1x512xf32>
    %23 = vector.broadcast %22 : vector<1x512xf32> to vector<8x512xf32>
    %24 = arith.mulf %10, %23 : vector<8x512xf32>
    %c0_12 = arith.constant 0 : index
    %c0_13 = arith.constant 0 : index
    %c0_14 = arith.constant 0 : index
    %25 = vector.load %arg6[%c0_12, %c0_13, %c0_14] : memref<1x8x1xf32, #tpu.memory_space<vmem>>, vector<1x8x1xf32>
    %26 = vector.shape_cast %25 : vector<1x8x1xf32> to vector<8x1xf32>
    %cst_15 = arith.constant dense<0.000000e+00> : vector<8xf32>
    %27 = vector.multi_reduction <add>, %24, %cst_15 [1] : vector<8x512xf32> to vector<8xf32>
    %28 = vector.shape_cast %27 : vector<8xf32> to vector<8x1xf32>
    %29 = arith.addf %26, %28 : vector<8x1xf32>
    %c0_16 = arith.constant 0 : index
    %c0_17 = arith.constant 0 : index
    %c0_18 = arith.constant 0 : index
    %30 = vector.load %arg6[%c0_16, %c0_17, %c0_18] : memref<1x8x1xf32, #tpu.memory_space<vmem>>, vector<1x8x1xf32>
    %31 = vector.shape_cast %30 : vector<1x8x1xf32> to vector<8x1xf32>
    %32 = vector.shape_cast %29 : vector<8x1xf32> to vector<1x8x1xf32>
    tpu.vector_store %arg6[%c0_16, %c0_17, %c0_18], %32 {strides = array<i32>} : memref<1x8x1xf32, #tpu.memory_space<vmem>>, vector<1x8x1xf32>,
    %c0_19 = arith.constant 0 : index
    %c0_20 = arith.constant 0 : index
    %c0_21 = arith.constant 0 : index
    %33 = vector.load %arg7[%c0_19, %c0_20, %c0_21] : memref<1x8x1xf32, #tpu.memory_space<vmem>>, vector<1x8x1xf32>
    %34 = vector.shape_cast %33 : vector<1x8x1xf32> to vector<8x1xf32>
    %35 = arith.mulf %24, %10 : vector<8x512xf32>
    %cst_22 = arith.constant dense<0.000000e+00> : vector<8xf32>
    %36 = vector.multi_reduction <add>, %35, %cst_22 [1] : vector<8x512xf32> to vector<8xf32>
    %37 = vector.shape_cast %36 : vector<8xf32> to vector<8x1xf32>
    %38 = arith.addf %34, %37 : vector<8x1xf32>
    %c0_23 = arith.constant 0 : index
    %c0_24 = arith.constant 0 : index
    %c0_25 = arith.constant 0 : index
    %39 = vector.load %arg7[%c0_23, %c0_24, %c0_25] : memref<1x8x1xf32, #tpu.memory_space<vmem>>, vector<1x8x1xf32>
    %40 = vector.shape_cast %39 : vector<1x8x1xf32> to vector<8x1xf32>
    %41 = vector.shape_cast %38 : vector<8x1xf32> to vector<1x8x1xf32>
    tpu.vector_store %arg7[%c0_23, %c0_24, %c0_25], %41 {strides = array<i32>} : memref<1x8x1xf32, #tpu.memory_space<vmem>>, vector<1x8x1xf32>,
    return
  }
  func.func @transform_0(%arg0: i32, %arg1: i32) -> (i32, i32, i32) {
    %c0_i32 = arith.constant 0 : i32
    %c0_i32_0 = arith.constant 0 : i32
    return %arg0, %c0_i32, %arg1 : i32, i32, i32
  }
  func.func @transform_1(%arg0: i32, %arg1: i32) -> (i32, i32, i32) {
    %c0_i32 = arith.constant 0 : i32
    %c0_i32_0 = arith.constant 0 : i32
    %c0_i32_1 = arith.constant 0 : i32
    return %arg0, %c0_i32, %c0_i32_0 : i32, i32, i32
  }
  func.func @transform_2(%arg0: i32, %arg1: i32) -> (i32, i32) {
    %c0_i32 = arith.constant 0 : i32
    %c0_i32_0 = arith.constant 0 : i32
    %c0_i32_1 = arith.constant 0 : i32
    return %c0_i32, %c0_i32_0 : i32, i32
  }
  func.func @transform_3(%arg0: i32, %arg1: i32) -> (i32, i32, i32) {
    %c0_i32 = arith.constant 0 : i32
    %c0_i32_0 = arith.constant 0 : i32
    return %arg0, %c0_i32, %arg1 : i32, i32, i32
  }
  func.func @transform_4(%arg0: i32, %arg1: i32) -> (i32, i32, i32) {
    %c0_i32 = arith.constant 0 : i32
    %c0_i32_0 = arith.constant 0 : i32
    %c0_i32_1 = arith.constant 0 : i32
    return %arg0, %c0_i32, %c0_i32_0 : i32, i32, i32
  }
  func.func @transform_5(%arg0: i32, %arg1: i32) -> (i32, i32, i32) {
    %c0_i32 = arith.constant 0 : i32
    %c0_i32_0 = arith.constant 0 : i32
    %c0_i32_1 = arith.constant 0 : i32
    return %arg0, %c0_i32, %c0_i32_0 : i32, i32, i32
  }
}

module attributes {stable_mosaic.version = 11 : i64} {
  func.func @_bn_relu_kernel(%arg0: i32, %arg1: i32, %arg2: memref<1x8x512xbf16, #tpu.memory_space<vmem>>, %arg3: memref<8x1xf32, #tpu.memory_space<vmem>>, %arg4: memref<8x1xf32, #tpu.memory_space<vmem>>, %arg5: memref<1x8x512xbf16, #tpu.memory_space<vmem>>) attributes {dimension_semantics = [#tpu.dimension_semantics<parallel>, #tpu.dimension_semantics<parallel>], iteration_bounds = array<i64: 4, 1>, scalar_prefetch = 0 : i64, scratch_operands = 0 : i64, tpu.core_type = #tpu.core_type<tc>, window_params = [{transform_indices = @transform_0, window_bounds = array<i64: 1, 8, 512>}, {pipeline_mode = #tpu.pipeline_mode<synchronous>, transform_indices = @transform_1, window_bounds = array<i64: 8, 1>}, {pipeline_mode = #tpu.pipeline_mode<synchronous>, transform_indices = @transform_2, window_bounds = array<i64: 8, 1>}, {transform_indices = @transform_3, window_bounds = array<i64: 1, 8, 512>}]} {
    %c0 = arith.constant 0 : index
    %c0_0 = arith.constant 0 : index
    %c0_1 = arith.constant 0 : index
    %0 = vector.load %arg2[%c0, %c0_0, %c0_1] : memref<1x8x512xbf16, #tpu.memory_space<vmem>>, vector<1x8x512xbf16>
    %1 = vector.shape_cast %0 : vector<1x8x512xbf16> to vector<8x512xbf16>
    %2 = arith.extf %1 : vector<8x512xbf16> to vector<8x512xf32>
    %c0_2 = arith.constant 0 : index
    %c0_3 = arith.constant 0 : index
    %3 = vector.load %arg3[%c0_2, %c0_3] : memref<8x1xf32, #tpu.memory_space<vmem>>, vector<8x1xf32>
    %4 = vector.broadcast %3 : vector<8x1xf32> to vector<8x512xf32>
    %5 = arith.mulf %2, %4 : vector<8x512xf32>
    %c0_4 = arith.constant 0 : index
    %c0_5 = arith.constant 0 : index
    %6 = vector.load %arg4[%c0_4, %c0_5] : memref<8x1xf32, #tpu.memory_space<vmem>>, vector<8x1xf32>
    %7 = vector.broadcast %6 : vector<8x1xf32> to vector<8x512xf32>
    %8 = arith.addf %5, %7 : vector<8x512xf32>
    %cst = arith.constant 0.000000e+00 : f32
    %9 = vector.broadcast %cst : f32 to vector<8x512xf32>
    %10 = arith.maximumf %8, %9 : vector<8x512xf32>
    %11 = arith.truncf %10 : vector<8x512xf32> to vector<8x512xbf16>
    %c0_6 = arith.constant 0 : index
    %c0_7 = arith.constant 0 : index
    %c0_8 = arith.constant 0 : index
    %12 = vector.load %arg5[%c0_6, %c0_7, %c0_8] : memref<1x8x512xbf16, #tpu.memory_space<vmem>>, vector<1x8x512xbf16>
    %13 = vector.shape_cast %12 : vector<1x8x512xbf16> to vector<8x512xbf16>
    %14 = vector.shape_cast %11 : vector<8x512xbf16> to vector<1x8x512xbf16>
    tpu.vector_store %arg5[%c0_6, %c0_7, %c0_8], %14 {strides = array<i32>} : memref<1x8x512xbf16, #tpu.memory_space<vmem>>, vector<1x8x512xbf16>,
    return
  }
  func.func @transform_0(%arg0: i32, %arg1: i32) -> (i32, i32, i32) {
    %c0_i32 = arith.constant 0 : i32
    %c0_i32_0 = arith.constant 0 : i32
    return %arg0, %c0_i32, %arg1 : i32, i32, i32
  }
  func.func @transform_1(%arg0: i32, %arg1: i32) -> (i32, i32) {
    %c0_i32 = arith.constant 0 : i32
    %c0_i32_0 = arith.constant 0 : i32
    %c0_i32_1 = arith.constant 0 : i32
    return %c0_i32, %c0_i32_0 : i32, i32
  }
  func.func @transform_2(%arg0: i32, %arg1: i32) -> (i32, i32) {
    %c0_i32 = arith.constant 0 : i32
    %c0_i32_0 = arith.constant 0 : i32
    %c0_i32_1 = arith.constant 0 : i32
    return %c0_i32, %c0_i32_0 : i32, i32
  }
  func.func @transform_3(%arg0: i32, %arg1: i32) -> (i32, i32, i32) {
    %c0_i32 = arith.constant 0 : i32
    %c0_i32_0 = arith.constant 0 : i32
    return %arg0, %c0_i32, %arg1 : i32, i32, i32
  }
}

module attributes {stable_mosaic.version = 11 : i64} {
  func.func @_gemm_bias_tanh_kernel(%arg0: i32, %arg1: memref<72x2048xbf16, #tpu.memory_space<vmem>>, %arg2: memref<8x72xbf16, #tpu.memory_space<vmem>>, %arg3: memref<8x1xf32, #tpu.memory_space<vmem>>, %arg4: memref<8x2048xf32, #tpu.memory_space<vmem>>) attributes {dimension_semantics = [#tpu.dimension_semantics<parallel>], iteration_bounds = array<i64: 1>, scalar_prefetch = 0 : i64, scratch_operands = 0 : i64, tpu.core_type = #tpu.core_type<tc>, window_params = [{transform_indices = @transform_0, window_bounds = array<i64: 72, 2048>}, {pipeline_mode = #tpu.pipeline_mode<synchronous>, transform_indices = @transform_1, window_bounds = array<i64: 8, 72>}, {pipeline_mode = #tpu.pipeline_mode<synchronous>, transform_indices = @transform_2, window_bounds = array<i64: 8, 1>}, {transform_indices = @transform_3, window_bounds = array<i64: 8, 2048>}]} {
    %c0 = arith.constant 0 : index
    %c0_0 = arith.constant 0 : index
    %0 = vector.load %arg2[%c0, %c0_0] : memref<8x72xbf16, #tpu.memory_space<vmem>>, vector<8x72xbf16>
    %c0_1 = arith.constant 0 : index
    %c0_2 = arith.constant 0 : index
    %1 = vector.load %arg1[%c0_1, %c0_2] : memref<72x2048xbf16, #tpu.memory_space<vmem>>, vector<72x2048xbf16>
    %cst = arith.constant dense<0.000000e+00> : vector<8x2048xf32>
    %2 = tpu.matmul %0, %1, %cst {dimension_numbers = #tpu.dot_dimension_numbers<[1], [0], [0], [1], [0, 0, 1, 1], [], []>} : vector<8x72xbf16>, vector<72x2048xbf16>, vector<8x2048xf32> -> vector<8x2048xf32>
    %c0_3 = arith.constant 0 : index
    %c0_4 = arith.constant 0 : index
    %3 = vector.load %arg3[%c0_3, %c0_4] : memref<8x1xf32, #tpu.memory_space<vmem>>, vector<8x1xf32>
    %4 = vector.broadcast %3 : vector<8x1xf32> to vector<8x2048xf32>
    %5 = arith.addf %2, %4 : vector<8x2048xf32>
    %6 = math.tanh %5 : vector<8x2048xf32>
    %c0_5 = arith.constant 0 : index
    %c0_6 = arith.constant 0 : index
    %7 = vector.load %arg4[%c0_5, %c0_6] : memref<8x2048xf32, #tpu.memory_space<vmem>>, vector<8x2048xf32>
    tpu.vector_store %arg4[%c0_5, %c0_6], %6 {strides = array<i32>} : memref<8x2048xf32, #tpu.memory_space<vmem>>, vector<8x2048xf32>,
    return
  }
  func.func @transform_0(%arg0: i32) -> (i32, i32) {
    %c0_i32 = arith.constant 0 : i32
    %c0_i32_0 = arith.constant 0 : i32
    return %c0_i32, %arg0 : i32, i32
  }
  func.func @transform_1(%arg0: i32) -> (i32, i32) {
    %c0_i32 = arith.constant 0 : i32
    %c0_i32_0 = arith.constant 0 : i32
    %c0_i32_1 = arith.constant 0 : i32
    return %c0_i32, %c0_i32_0 : i32, i32
  }
  func.func @transform_2(%arg0: i32) -> (i32, i32) {
    %c0_i32 = arith.constant 0 : i32
    %c0_i32_0 = arith.constant 0 : i32
    %c0_i32_1 = arith.constant 0 : i32
    return %c0_i32, %c0_i32_0 : i32, i32
  }
  func.func @transform_3(%arg0: i32) -> (i32, i32) {
    %c0_i32 = arith.constant 0 : i32
    %c0_i32_0 = arith.constant 0 : i32
    return %c0_i32, %arg0 : i32, i32
  }
}

</mosaic_0001>

<llo_original>
// kernel: generator_forward.10
$region0: #{generator_forward.10}
  #allocation0 [shape = 'u32[]', space=smem, size = 0x4, offset = 0x4, fixed_abs, tag = 'smem constant byte address 0x4 - core index']
  #allocation1 [shape = 'u32[144,128]{1,0:T(1,128)}', space=vmem, size = 0x12000, scoped, tag = 'internal scratch']
  %s0 = inlined_call_operand.vmem [shape: bf16[16,64,128], index: 0, kind: input, shape index: {}]
  %s1 = inlined_call_operand.vmem [shape: f32[64,1], index: 1, kind: input, shape index: {}]
  %s2 = inlined_call_operand.vmem [shape: f32[64,1], index: 2, kind: input, shape index: {}]
  %s3 = inlined_call_operand.vmem [shape: bf16[16,64,128], index: 3, kind: output, shape index: {}]
  %s4 = sld [smem:[#allocation0]]
  $region45: #{generator_forward.10} parent=0
    _
  %s6 = ssub.s32 1, %s4
  %s7 = scalar_select 0, %s6, %s4
  loop: start=0, step=1, limit=18
  $region2: #{generator_forward.10} parent=0 // loop_pre_header
    _
  $region3: #{generator_forward.10} parent=0 // loop_header
    %s9 = sphi 0, %s13
    %p10 = scmp.ge.s32.totalorder %s9, 18
    %s16 = sphi 0, %s28
    %s17 = sphi 0, %s24
    %s18 = sphi 0, %s16
    %s19 = sphi 0, %s17
    %s20 = sphi 0, %s18
    %s21 = sphi 0, %s19
    %s33 = sphi 0, %s35
    %s36 = sphi 0, %s33
    %s37 = sphi 0, %s36
    %s53 = sphi 0, %s37
    %s57 = sphi 0, %s57
    %s59 = sphi 0, %s57
    %s60 = sphi 0, %s59
    %s74 = sphi 0, %s60
    %s78 = sphi 0, %s78
    %s80 = sphi 0, %s78
    %s81 = sphi 0, %s80
    %s95 = sphi 0, %s81
    %s103 = sphi 0, %s105
    %s106 = sphi 0, %s103
    %s107 = sphi 0, %s106
    %s123 = sphi 0, %s107
  $region4: #{generator_forward.10} parent=0 // loop_header_branch
    %12 = sbr.rel (%p10) target = $region8
  $region5: #{generator_forward.10} parent=0 // loop_body
    %s14 = ssub.s32 %s9, 1
    %s15 = ssub.s32 %s9, 2
    %s22 = sadd.s32 1, %s17
    %p23 = scmp.ge.s32.totalorder %s22, 1
    %s24 = scalar_select %p23, 0, %s22
    %s25 = sadd.s32 1, %s16
    %s26 = scalar_select %p23, %s25, %s16
    %p27 = scmp.ge.s32.totalorder %s26, 16
    %s28 = scalar_select %p27, 0, %s26
    %s29 = ssub.s32 %s16, %s28
    %s30 = ssub.s32 %s17, %s24
    %s31 = sor.u32 %s29, %s30
    %p32 = scmp.eq.s32.totalorder %s31, 0
    %s34 = sadd.s32 %s33, 1
    %s35 = scalar_select %p32, %s33, %s34
    %p38 = pneg %p32
    %p39 = scmp.eq.s32.totalorder %s9, 15
    %p40 = por %p38, %p39
    %p41 = scmp.ne.s32.totalorder %s33, %s36
    %p42 = scmp.eq.s32.totalorder %s9, 0
    %p43 = por %p41, %p42
    %p44 = scmp.ne.s32.totalorder %s33, %s36
    %p45 = scmp.eq.s32.totalorder %s14, 15
    %p46 = por %p44, %p45
    %p47 = scmp.ne.s32.totalorder %s36, %s37
    %p48 = scmp.eq.s32.totalorder %s14, 0
    %p49 = por %p47, %p48
    %p50 = scmp.ne.s32.totalorder %s36, %s37
    %p51 = scmp.eq.s32.totalorder %s15, 15
    %p52 = por %p50, %p51
    %p54 = scmp.ne.s32.totalorder %s37, %s53
    %p55 = scmp.eq.s32.totalorder %s15, 0
    %p56 = por %p54, %p55
    %s58 = sadd.s32 %s57, 1
    %p61 = scmp.eq.s32.totalorder %s9, 15
    %p62 = scmp.ne.s32.totalorder %s57, %s59
    %p63 = scmp.eq.s32.totalorder %s9, 0
    %p64 = por %p62, %p63
    %p65 = scmp.ne.s32.totalorder %s57, %s59
    %p66 = scmp.eq.s32.totalorder %s14, 15
    %p67 = por %p65, %p66
    %p68 = scmp.ne.s32.totalorder %s59, %s60
    %p69 = scmp.eq.s32.totalorder %s14, 0
    %p70 = por %p68, %p69
    %p71 = scmp.ne.s32.totalorder %s59, %s60
    %p72 = scmp.eq.s32.totalorder %s15, 15
    %p73 = por %p71, %p72
    %p75 = scmp.ne.s32.totalorder %s60, %s74
    %p76 = scmp.eq.s32.totalorder %s15, 0
    %p77 = por %p75, %p76
    %s79 = sadd.s32 %s78, 1
    %p82 = scmp.eq.s32.totalorder %s9, 15
    %p83 = scmp.ne.s32.totalorder %s78, %s80
    %p84 = scmp.eq.s32.totalorder %s9, 0
    %p85 = por %p83, %p84
    %p86 = scmp.ne.s32.totalorder %s78, %s80
    %p87 = scmp.eq.s32.totalorder %s14, 15
    %p88 = por %p86, %p87
    %p89 = scmp.ne.s32.totalorder %s80, %s81
    %p90 = scmp.eq.s32.totalorder %s14, 0
    %p91 = por %p89, %p90
    %p92 = scmp.ne.s32.totalorder %s80, %s81
    %p93 = scmp.eq.s32.totalorder %s15, 15
    %p94 = por %p92, %p93
    %p96 = scmp.ne.s32.totalorder %s81, %s95
    %p97 = scmp.eq.s32.totalorder %s15, 0
    %p98 = por %p96, %p97
    %s99 = ssub.s32 %s16, %s28
    %s100 = ssub.s32 %s17, %s24
    %s101 = sor.u32 %s99, %s100
    %p102 = scmp.eq.s32.totalorder %s101, 0
    %s104 = sadd.s32 %s103, 1
    %s105 = scalar_select %p102, %s103, %s104
    %p108 = pneg %p102
    %p109 = scmp.eq.s32.totalorder %s9, 15
    %p110 = por %p108, %p109
    %p111 = scmp.ne.s32.totalorder %s103, %s106
    %p112 = scmp.eq.s32.totalorder %s9, 0
    %p113 = por %p111, %p112
    %p114 = scmp.ne.s32.totalorder %s103, %s106
    %p115 = scmp.eq.s32.totalorder %s14, 15
    %p116 = por %p114, %p115
    %p117 = scmp.ne.s32.totalorder %s106, %s107
    %p118 = scmp.eq.s32.totalorder %s14, 0
    %p119 = por %p117, %p118
    %p120 = scmp.ne.s32.totalorder %s106, %s107
    %p121 = scmp.eq.s32.totalorder %s15, 15
    %p122 = por %p120, %p121
    %p124 = scmp.ne.s32.totalorder %s107, %s123
    %p125 = scmp.eq.s32.totalorder %s15, 0
    %p126 = por %p124, %p125
    %p127 = scmp.le.s32.totalorder 1, %s9
    %p128 = scmp.lt.s32.totalorder %s9, 17
    %p129 = pnand %p127, %p128
    %p130 = pneg %p129
    // Predicated region
    $region9: #{generator_forward.10} parent=5 // pred_check
      _
    $region10: #{generator_forward.10} parent=5 // pred_check_branch
      %132 = sbr.rel (%p129) target = $region12
    $region11: #{generator_forward.10} parent=5 // pred_region
      %s133 = ssub.s32 %s9, 1
      // Predicated region
      $region13: #{generator_forward.10} parent=11 // pred_check
        %p134 = pneg %p70
      $region14: #{generator_forward.10} parent=11 // pred_check_branch
        %136 = sbr.rel (%p134) target = $region16
      $region15: #{generator_forward.10} parent=11 // pred_region
        _
      $region16: #{generator_forward.10} parent=11 // pred_fallthru
        _
      // Predicated region
      $region17: #{generator_forward.10} parent=11 // pred_check
        %p137 = pneg %p91
      $region18: #{generator_forward.10} parent=11 // pred_check_branch
        %139 = sbr.rel (%p137) target = $region20
      $region19: #{generator_forward.10} parent=11 // pred_region
        _
      $region20: #{generator_forward.10} parent=11 // pred_fallthru
        _
    $region12: #{generator_forward.10} parent=5 // pred_fallthru
      _
    %p140 = scmp.lt.s32.totalorder %s9, 16
    // Predicated region
    $region21: #{generator_forward.10} parent=5 // pred_check
      %p141 = pneg %p140
    $region22: #{generator_forward.10} parent=5 // pred_check_branch
      %143 = sbr.rel (%p141) target = $region24
    $region23: #{generator_forward.10} parent=5 // pred_region
      // Predicated region
      $region25: #{generator_forward.10} parent=23 // pred_check
        %p144 = pneg %p43
      $region26: #{generator_forward.10} parent=23 // pred_check_branch
        %146 = sbr.rel (%p144) target = $region28
      $region27: #{generator_forward.10} parent=23 // pred_region
        %p147 = scmp.lt.s32.totalorder %s16, 15
        %s148 = scalar_select %p147, %s16, 15
        %p149 = scmp.lt.s32.totalorder %s17, 0
        %s150 = scalar_select %p149, %s17, 0
        %s151 = smul.addr %s148, 8
        %s152 = sadd.s32 %s150, %s151
        %s153 = smul.addr %s152, 4
        %s154 = scalar_lea.vmem %s0, %s153
      $region28: #{generator_forward.10} parent=23 // pred_fallthru
        _
    $region24: #{generator_forward.10} parent=5 // pred_fallthru
      _
    %p155 = scmp.le.s32.totalorder 1, %s9
    %p156 = scmp.lt.s32.totalorder %s9, 17
    %p157 = pnand %p155, %p156
    %p158 = pneg %p157
    // Predicated region
    $region29: #{generator_forward.10} parent=5 // pred_check
      _
    $region30: #{generator_forward.10} parent=5 // pred_check_branch
      %160 = sbr.rel (%p157) target = $region32
    $region31: #{generator_forward.10} parent=5 // pred_region
      %s161 = ssub.s32 %s9, 1
      %p162 = scmp.lt.s32.totalorder %s18, 15
      %s163 = scalar_select %p162, %s18, 15
      %p164 = scmp.lt.s32.totalorder %s19, 0
      %s165 = scalar_select %p164, %s19, 0
      %s166 = smul.addr %s163, 8
      %s167 = sadd.s32 %s165, %s166
      %s168 = smul.addr %s167, 4
      %s169 = scalar_lea.vmem %s0, %s168
      %p170 = pneg %p49
      %p171 = pneg %p46
      %p172 = pneg %p70
      %p173 = pneg %p67
      %p174 = pneg %p91
      %p175 = pneg %p88
      %p176 = pneg %p119
      %p177 = pneg %p116
      %p178 = scmp.lt.s32.totalorder %s18, 15
      %s179 = scalar_select %p178, %s18, 15
      %p180 = scmp.lt.s32.totalorder %s19, 0
      %s181 = scalar_select %p180, %s19, 0
      %s182 = smul.addr %s179, 8
      %s183 = sadd.s32 %s181, %s182
      %s184 = smul.addr %s183, 4
      %s185 = scalar_lea.vmem %s3, %s184
      %p186 = scmp.lt.s32.totalorder %s18, 15
      %s187 = scalar_select %p186, %s18, 15
      %p188 = scmp.lt.s32.totalorder %s19, 0
      %s189 = scalar_select %p188, %s19, 0
      %s190 = smul.addr %s187, 8
      %s191 = sadd.s32 %s189, %s190
      %s192 = smul.addr %s191, 4
      %s193 = scalar_lea.vmem %s0, %s192
      %p194 = scmp.lt.s32.totalorder %s18, 15
      %s195 = scalar_select %p194, %s18, 15
      %p196 = scmp.lt.s32.totalorder %s19, 0
      %s197 = scalar_select %p196, %s19, 0
      %s198 = smul.addr %s195, 8
      %s199 = sadd.s32 %s197, %s198
      %s200 = smul.addr %s199, 4
      %s201 = scalar_lea.vmem %s3, %s200
      %v202 = vld [vmem:[%s193] sm:$0xf]
      %v203 = vld [vmem:[%s193 + $0x4] sm:$0xf]
      %v204 = vld [vmem:[%s193 + $0x8] sm:$0xf]
      %v205 = vld [vmem:[%s193 + $0xc] sm:$0xf]
      %v206 = vld [vmem:[%s193 + $0x10] sm:$0xf]
      %v207 = vld [vmem:[%s193 + $0x14] sm:$0xf]
      %v208 = vld [vmem:[%s193 + $0x18] sm:$0xf]
      %v209 = vld [vmem:[%s193 + $0x1c] sm:$0xf]
      %v210 = vunpack.c.l.bf16 %v202
      %v211 = vunpack.c.l.bf16 %v203
      %v212 = vunpack.c.l.bf16 %v204
      %v213 = vunpack.c.l.bf16 %v205
      %v214 = vunpack.c.l.bf16 %v206
      %v215 = vunpack.c.l.bf16 %v207
      %v216 = vunpack.c.l.bf16 %v208
      %v217 = vunpack.c.l.bf16 %v209
      %v218 = vld [vmem:[%s1] sm:$0xff]
      %v219 = vld [vmem:[%s1 + $0x8] sm:$0xff]
      %v220 = vld [vmem:[%s1 + $0x10] sm:$0xff]
      %v221 = vld [vmem:[%s1 + $0x18] sm:$0xff]
      %v222 = vld [vmem:[%s1 + $0x20] sm:$0xff]
      %v223 = vld [vmem:[%s1 + $0x28] sm:$0xff]
      %v224 = vld [vmem:[%s1 + $0x30] sm:$0xff]
      %v225 = vld [vmem:[%s1 + $0x38] sm:$0xff]
      %227 = vset.pattern.permute.xlu0 0
      %228 = vperm.xlu0 %227, %v218
      %v229 = vpop.permute.xlu0 %228
      %232 = vset.pattern.permute.xlu0 0
      %233 = vperm.xlu0 %232, %v219
      %v234 = vpop.permute.xlu0 %233
      %237 = vset.pattern.permute.xlu0 0
      %238 = vperm.xlu0 %237, %v220
      %v239 = vpop.permute.xlu0 %238
      %242 = vset.pattern.permute.xlu0 0
      %243 = vperm.xlu0 %242, %v221
      %v244 = vpop.permute.xlu0 %243
      %247 = vset.pattern.permute.xlu0 0
      %248 = vperm.xlu0 %247, %v222
      %v249 = vpop.permute.xlu0 %248
      %252 = vset.pattern.permute.xlu0 0
      %253 = vperm.xlu0 %252, %v223
      %v254 = vpop.permute.xlu0 %253
      %257 = vset.pattern.permute.xlu0 0
      %258 = vperm.xlu0 %257, %v224
      %v259 = vpop.permute.xlu0 %258
      %262 = vset.pattern.permute.xlu0 0
      %263 = vperm.xlu0 %262, %v225
      %v264 = vpop.permute.xlu0 %263
      %v266 = vmul.f32 %v210, %v229
      %v267 = vmul.f32 %v211, %v234
      %v268 = vmul.f32 %v212, %v239
      %v269 = vmul.f32 %v213, %v244
      %v270 = vmul.f32 %v214, %v249
      %v271 = vmul.f32 %v215, %v254
      %v272 = vmul.f32 %v216, %v259
      %v273 = vmul.f32 %v217, %v264
      %v274 = vld [vmem:[%s2] sm:$0xff]
      %v275 = vld [vmem:[%s2 + $0x8] sm:$0xff]
      %v276 = vld [vmem:[%s2 + $0x10] sm:$0xff]
      %v277 = vld [vmem:[%s2 + $0x18] sm:$0xff]
      %v278 = vld [vmem:[%s2 + $0x20] sm:$0xff]
      %v279 = vld [vmem:[%s2 + $0x28] sm:$0xff]
      %v280 = vld [vmem:[%s2 + $0x30] sm:$0xff]
      %v281 = vld [vmem:[%s2 + $0x38] sm:$0xff]
      %283 = vset.pattern.permute.xlu0 0
      %284 = vperm.xlu0 %283, %v274
      %v285 = vpop.permute.xlu0 %284
      %288 = vset.pattern.permute.xlu0 0
      %289 = vperm.xlu0 %288, %v275
      %v290 = vpop.permute.xlu0 %289
      %293 = vset.pattern.permute.xlu0 0
      %294 = vperm.xlu0 %293, %v276
      %v295 = vpop.permute.xlu0 %294
      %298 = vset.pattern.permute.xlu0 0
      %299 = vperm.xlu0 %298, %v277
      %v300 = vpop.permute.xlu0 %299
      %303 = vset.pattern.permute.xlu0 0
      %304 = vperm.xlu0 %303, %v278
      %v305 = vpop.permute.xlu0 %304
      %308 = vset.pattern.permute.xlu0 0
      %309 = vperm.xlu0 %308, %v279
      %v310 = vpop.permute.xlu0 %309
      %313 = vset.pattern.permute.xlu0 0
      %314 = vperm.xlu0 %313, %v280
      %v315 = vpop.permute.xlu0 %314
      %318 = vset.pattern.permute.xlu0 0
      %319 = vperm.xlu0 %318, %v281
      %v320 = vpop.permute.xlu0 %319
      %v322 = vadd.f32 %v266, %v285
      %v323 = vadd.f32 %v267, %v290
      %v324 = vadd.f32 %v268, %v295
      %v325 = vadd.f32 %v269, %v300
      %v326 = vadd.f32 %v270, %v305
      %v327 = vadd.f32 %v271, %v310
      %v328 = vadd.f32 %v272, %v315
      %v329 = vadd.f32 %v273, %v320
      %v330 = vmax.f32 %v322, 0.0
      %v331 = vmax.f32 %v323, 0.0
      %v332 = vmax.f32 %v324, 0.0
      %v333 = vmax.f32 %v325, 0.0
      %v334 = vmax.f32 %v326, 0.0
      %v335 = vmax.f32 %v327, 0.0
      %v336 = vmax.f32 %v328, 0.0
      %v337 = vmax.f32 %v329, 0.0
      %v338 = vpack.c.bf16 %v331, %v330
      %v339 = vpack.c.bf16 %v333, %v332
      %v340 = vpack.c.bf16 %v335, %v334
      %v341 = vpack.c.bf16 %v337, %v336
      %v346 = vunpack.c.l.b16 %v338
      %v347 = vunpack.c.h.b16 %v338
      %v348 = vunpack.c.l.b16 %v339
      %v349 = vunpack.c.h.b16 %v339
      %v350 = vunpack.c.l.b16 %v340
      %v351 = vunpack.c.h.b16 %v340
      %v352 = vunpack.c.l.b16 %v341
      %v353 = vunpack.c.h.b16 %v341
      %v354 = vpack.c.b16 %v346, %v346
      %v355 = vpack.c.b16 %v347, %v347
      %v356 = vpack.c.b16 %v348, %v348
      %v357 = vpack.c.b16 %v349, %v349
      %v358 = vpack.c.b16 %v350, %v350
      %v359 = vpack.c.b16 %v351, %v351
      %v360 = vpack.c.b16 %v352, %v352
      %v361 = vpack.c.b16 %v353, %v353
      %370 = vst [vmem:[%s201] sm:$0xf] %v354
      %371 = vst [vmem:[%s201 + $0x4] sm:$0xf] %v355
      %372 = vst [vmem:[%s201 + $0x8] sm:$0xf] %v356
      %373 = vst [vmem:[%s201 + $0xc] sm:$0xf] %v357
      %374 = vst [vmem:[%s201 + $0x10] sm:$0xf] %v358
      %375 = vst [vmem:[%s201 + $0x14] sm:$0xf] %v359
      %376 = vst [vmem:[%s201 + $0x18] sm:$0xf] %v360
      %377 = vst [vmem:[%s201 + $0x1c] sm:$0xf] %v361
      %p378 = scmp.lt.s32.totalorder %s18, 15
      %s379 = scalar_select %p378, %s18, 15
      %p380 = scmp.lt.s32.totalorder %s19, 0
      %s381 = scalar_select %p380, %s19, 0
      %s382 = smul.addr %s379, 8
      %s383 = sadd.s32 %s381, %s382
      %s384 = smul.addr %s383, 4
      %s385 = scalar_lea.vmem %s3, %s384
      // Predicated region
      $region33: #{generator_forward.10} parent=31 // pred_check
        %p386 = pneg %p116
      $region34: #{generator_forward.10} parent=31 // pred_check_branch
        %388 = sbr.rel (%p386) target = $region36
      $region35: #{generator_forward.10} parent=31 // pred_region
        _
      $region36: #{generator_forward.10} parent=31 // pred_fallthru
        _
    $region32: #{generator_forward.10} parent=5 // pred_fallthru
      _
    %p389 = scmp.le.s32.totalorder 2, %s9
    // Predicated region
    $region37: #{generator_forward.10} parent=5 // pred_check
      %p390 = pneg %p389
    $region38: #{generator_forward.10} parent=5 // pred_check_branch
      %392 = sbr.rel (%p390) target = $region40
    $region39: #{generator_forward.10} parent=5 // pred_region
      %s393 = ssub.s32 %s9, 2
      // Predicated region
      $region41: #{generator_forward.10} parent=39 // pred_check
        %p394 = pneg %p122
      $region42: #{generator_forward.10} parent=39 // pred_check_branch
        %396 = sbr.rel (%p394) target = $region44
      $region43: #{generator_forward.10} parent=39 // pred_region
        %p397 = scmp.lt.s32.totalorder %s20, 15
        %s398 = scalar_select %p397, %s20, 15
        %p399 = scmp.lt.s32.totalorder %s21, 0
        %s400 = scalar_select %p399, %s21, 0
        %s401 = smul.addr %s398, 8
        %s402 = sadd.s32 %s400, %s401
        %s403 = smul.addr %s402, 4
        %s404 = scalar_lea.vmem %s3, %s403
      $region44: #{generator_forward.10} parent=39 // pred_fallthru
        _
    $region40: #{generator_forward.10} parent=5 // pred_fallthru
      _
  $region6: #{generator_forward.10} parent=0 // loop_footer
    %s13 = sadd.s32 1, %s9
  $region7: #{generator_forward.10} parent=0 // loop_footer_branch
    %8 = sbr.rel target = $region3
  $region8: #{generator_forward.10} parent=0 // loop_exit
    _

// kernel: generator_forward.9
$region0: #{generator_forward.9}
  #allocation0 [shape = 'u32[]', space=smem, size = 0x4, offset = 0x4, fixed_abs, tag = 'smem constant byte address 0x4 - core index']
  #allocation1 [shape = 'u32[144,128]{1,0:T(1,128)}', space=vmem, size = 0x12000, scoped, tag = 'internal scratch']
  %s0 = inlined_call_operand.vmem [shape: bf16[1,8,128], index: 0, kind: input, shape index: {}]
  %s1 = inlined_call_operand.vmem [shape: bf16[16,64,8], index: 1, kind: input, shape index: {}]
  %s2 = inlined_call_operand.vmem [shape: f32[64,1], index: 2, kind: input, shape index: {}]
  %s3 = inlined_call_operand.vmem [shape: bf16[16,64,128], index: 3, kind: output, shape index: {0}]
  %s4 = inlined_call_operand.vmem [shape: f32[16,64,1], index: 4, kind: output, shape index: {1}]
  %s5 = inlined_call_operand.vmem [shape: f32[16,64,1], index: 5, kind: output, shape index: {2}]
  %6 = xla_tuple %s3, %s4, %s5
  %s7 = sld [smem:[#allocation0]]
  $region65: #{generator_forward.9} parent=0
    _
  %s9 = ssub.s32 1, %s7
  %s10 = scalar_select 0, %s9, %s7
  loop: start=0, step=1, limit=18
  $region2: #{generator_forward.9} parent=0 // loop_pre_header
    _
  $region3: #{generator_forward.9} parent=0 // loop_header
    %s12 = sphi 0, %s16
    %p13 = scmp.ge.s32.totalorder %s12, 18
    %s19 = sphi 0, %s31
    %s20 = sphi 0, %s27
    %s21 = sphi 0, %s19
    %s22 = sphi 0, %s20
    %s23 = sphi 0, %s21
    %s24 = sphi 0, %s22
    %s34 = sphi 0, %s36
    %s37 = sphi 0, %s34
    %s38 = sphi 0, %s37
    %s54 = sphi 0, %s38
    %s60 = sphi 0, %s62
    %s63 = sphi 0, %s60
    %s64 = sphi 0, %s63
    %s80 = sphi 0, %s64
    %s84 = sphi 0, %s84
    %s86 = sphi 0, %s84
    %s87 = sphi 0, %s86
    %s101 = sphi 0, %s87
    %s109 = sphi 0, %s111
    %s112 = sphi 0, %s109
    %s113 = sphi 0, %s112
    %s129 = sphi 0, %s113
    %s135 = sphi 0, %s137
    %s138 = sphi 0, %s135
    %s139 = sphi 0, %s138
    %s155 = sphi 0, %s139
    %s161 = sphi 0, %s163
    %s164 = sphi 0, %s161
    %s165 = sphi 0, %s164
    %s181 = sphi 0, %s165
  $region4: #{generator_forward.9} parent=0 // loop_header_branch
    %15 = sbr.rel (%p13) target = $region8
  $region5: #{generator_forward.9} parent=0 // loop_body
    %s17 = ssub.s32 %s12, 1
    %s18 = ssub.s32 %s12, 2
    %s25 = sadd.s32 1, %s20
    %p26 = scmp.ge.s32.totalorder %s25, 1
    %s27 = scalar_select %p26, 0, %s25
    %s28 = sadd.s32 1, %s19
    %s29 = scalar_select %p26, %s28, %s19
    %p30 = scmp.ge.s32.totalorder %s29, 16
    %s31 = scalar_select %p30, 0, %s29
    %s32 = ssub.s32 %s20, %s27
    %p33 = scmp.eq.s32.totalorder %s32, 0
    %s35 = sadd.s32 %s34, 1
    %s36 = scalar_select %p33, %s34, %s35
    %p39 = pneg %p33
    %p40 = scmp.eq.s32.totalorder %s12, 15
    %p41 = por %p39, %p40
    %p42 = scmp.ne.s32.totalorder %s34, %s37
    %p43 = scmp.eq.s32.totalorder %s12, 0
    %p44 = por %p42, %p43
    %p45 = scmp.ne.s32.totalorder %s34, %s37
    %p46 = scmp.eq.s32.totalorder %s17, 15
    %p47 = por %p45, %p46
    %p48 = scmp.ne.s32.totalorder %s37, %s38
    %p49 = scmp.eq.s32.totalorder %s17, 0
    %p50 = por %p48, %p49
    %p51 = scmp.ne.s32.totalorder %s37, %s38
    %p52 = scmp.eq.s32.totalorder %s18, 15
    %p53 = por %p51, %p52
    %p55 = scmp.ne.s32.totalorder %s38, %s54
    %p56 = scmp.eq.s32.totalorder %s18, 0
    %p57 = por %p55, %p56
    %s58 = ssub.s32 %s19, %s31
    %p59 = scmp.eq.s32.totalorder %s58, 0
    %s61 = sadd.s32 %s60, 1
    %s62 = scalar_select %p59, %s60, %s61
    %p65 = pneg %p59
    %p66 = scmp.eq.s32.totalorder %s12, 15
    %p67 = por %p65, %p66
    %p68 = scmp.ne.s32.totalorder %s60, %s63
    %p69 = scmp.eq.s32.totalorder %s12, 0
    %p70 = por %p68, %p69
    %p71 = scmp.ne.s32.totalorder %s60, %s63
    %p72 = scmp.eq.s32.totalorder %s17, 15
    %p73 = por %p71, %p72
    %p74 = scmp.ne.s32.totalorder %s63, %s64
    %p75 = scmp.eq.s32.totalorder %s17, 0
    %p76 = por %p74, %p75
    %p77 = scmp.ne.s32.totalorder %s63, %s64
    %p78 = scmp.eq.s32.totalorder %s18, 15
    %p79 = por %p77, %p78
    %p81 = scmp.ne.s32.totalorder %s64, %s80
    %p82 = scmp.eq.s32.totalorder %s18, 0
    %p83 = por %p81, %p82
    %s85 = sadd.s32 %s84, 1
    %p88 = scmp.eq.s32.totalorder %s12, 15
    %p89 = scmp.ne.s32.totalorder %s84, %s86
    %p90 = scmp.eq.s32.totalorder %s12, 0
    %p91 = por %p89, %p90
    %p92 = scmp.ne.s32.totalorder %s84, %s86
    %p93 = scmp.eq.s32.totalorder %s17, 15
    %p94 = por %p92, %p93
    %p95 = scmp.ne.s32.totalorder %s86, %s87
    %p96 = scmp.eq.s32.totalorder %s17, 0
    %p97 = por %p95, %p96
    %p98 = scmp.ne.s32.totalorder %s86, %s87
    %p99 = scmp.eq.s32.totalorder %s18, 15
    %p100 = por %p98, %p99
    %p102 = scmp.ne.s32.totalorder %s87, %s101
    %p103 = scmp.eq.s32.totalorder %s18, 0
    %p104 = por %p102, %p103
    %s105 = ssub.s32 %s19, %s31
    %s106 = ssub.s32 %s20, %s27
    %s107 = sor.u32 %s105, %s106
    %p108 = scmp.eq.s32.totalorder %s107, 0
    %s110 = sadd.s32 %s109, 1
    %s111 = scalar_select %p108, %s109, %s110
    %p114 = pneg %p108
    %p115 = scmp.eq.s32.totalorder %s12, 15
    %p116 = por %p114, %p115
    %p117 = scmp.ne.s32.totalorder %s109, %s112
    %p118 = scmp.eq.s32.totalorder %s12, 0
    %p119 = por %p117, %p118
    %p120 = scmp.ne.s32.totalorder %s109, %s112
    %p121 = scmp.eq.s32.totalorder %s17, 15
    %p122 = por %p120, %p121
    %p123 = scmp.ne.s32.totalorder %s112, %s113
    %p124 = scmp.eq.s32.totalorder %s17, 0
    %p125 = por %p123, %p124
    %p126 = scmp.ne.s32.totalorder %s112, %s113
    %p127 = scmp.eq.s32.totalorder %s18, 15
    %p128 = por %p126, %p127
    %p130 = scmp.ne.s32.totalorder %s113, %s129
    %p131 = scmp.eq.s32.totalorder %s18, 0
    %p132 = por %p130, %p131
    %s133 = ssub.s32 %s19, %s31
    %p134 = scmp.eq.s32.totalorder %s133, 0
    %s136 = sadd.s32 %s135, 1
    %s137 = scalar_select %p134, %s135, %s136
    %p140 = pneg %p134
    %p141 = scmp.eq.s32.totalorder %s12, 15
    %p142 = por %p140, %p141
    %p143 = scmp.ne.s32.totalorder %s135, %s138
    %p144 = scmp.eq.s32.totalorder %s12, 0
    %p145 = por %p143, %p144
    %p146 = scmp.ne.s32.totalorder %s135, %s138
    %p147 = scmp.eq.s32.totalorder %s17, 15
    %p148 = por %p146, %p147
    %p149 = scmp.ne.s32.totalorder %s138, %s139
    %p150 = scmp.eq.s32.totalorder %s17, 0
    %p151 = por %p149, %p150
    %p152 = scmp.ne.s32.totalorder %s138, %s139
    %p153 = scmp.eq.s32.totalorder %s18, 15
    %p154 = por %p152, %p153
    %p156 = scmp.ne.s32.totalorder %s139, %s155
    %p157 = scmp.eq.s32.totalorder %s18, 0
    %p158 = por %p156, %p157
    %s159 = ssub.s32 %s19, %s31
    %p160 = scmp.eq.s32.totalorder %s159, 0
    %s162 = sadd.s32 %s161, 1
    %s163 = scalar_select %p160, %s161, %s162
    %p166 = pneg %p160
    %p167 = scmp.eq.s32.totalorder %s12, 15
    %p168 = por %p166, %p167
    %p169 = scmp.ne.s32.totalorder %s161, %s164
    %p170 = scmp.eq.s32.totalorder %s12, 0
    %p171 = por %p169, %p170
    %p172 = scmp.ne.s32.totalorder %s161, %s164
    %p173 = scmp.eq.s32.totalorder %s17, 15
    %p174 = por %p172, %p173
    %p175 = scmp.ne.s32.totalorder %s164, %s165
    %p176 = scmp.eq.s32.totalorder %s17, 0
    %p177 = por %p175, %p176
    %p178 = scmp.ne.s32.totalorder %s164, %s165
    %p179 = scmp.eq.s32.totalorder %s18, 15
    %p180 = por %p178, %p179
    %p182 = scmp.ne.s32.totalorder %s165, %s181
    %p183 = scmp.eq.s32.totalorder %s18, 0
    %p184 = por %p182, %p183
    %p185 = scmp.le.s32.totalorder 1, %s12
    %p186 = scmp.lt.s32.totalorder %s12, 17
    %p187 = pnand %p185, %p186
    %p188 = pneg %p187
    // Predicated region
    $region9: #{generator_forward.9} parent=5 // pred_check
      _
    $region10: #{generator_forward.9} parent=5 // pred_check_branch
      %190 = sbr.rel (%p187) target = $region12
    $region11: #{generator_forward.9} parent=5 // pred_region
      %s191 = ssub.s32 %s12, 1
      // Predicated region
      $region13: #{generator_forward.9} parent=11 // pred_check
        %p192 = pneg %p50
      $region14: #{generator_forward.9} parent=11 // pred_check_branch
        %194 = sbr.rel (%p192) target = $region16
      $region15: #{generator_forward.9} parent=11 // pred_region
        %p195 = scmp.lt.s32.totalorder %s22, 0
        %s196 = scalar_select %p195, %s22, 0
        %s197 = smul.addr %s196, 4
        %s198 = scalar_lea.vmem %s0, %s197
      $region16: #{generator_forward.9} parent=11 // pred_fallthru
        _
      // Predicated region
      $region17: #{generator_forward.9} parent=11 // pred_check
        %p199 = pneg %p97
      $region18: #{generator_forward.9} parent=11 // pred_check_branch
        %201 = sbr.rel (%p199) target = $region20
      $region19: #{generator_forward.9} parent=11 // pred_region
        _
      $region20: #{generator_forward.9} parent=11 // pred_fallthru
        _
    $region12: #{generator_forward.9} parent=5 // pred_fallthru
      _
    %p202 = scmp.lt.s32.totalorder %s12, 16
    // Predicated region
    $region21: #{generator_forward.9} parent=5 // pred_check
      %p203 = pneg %p202
    $region22: #{generator_forward.9} parent=5 // pred_check_branch
      %205 = sbr.rel (%p203) target = $region24
    $region23: #{generator_forward.9} parent=5 // pred_region
      // Predicated region
      $region25: #{generator_forward.9} parent=23 // pred_check
        %p206 = pneg %p70
      $region26: #{generator_forward.9} parent=23 // pred_check_branch
        %208 = sbr.rel (%p206) target = $region28
      $region27: #{generator_forward.9} parent=23 // pred_region
        %p209 = scmp.lt.s32.totalorder %s19, 15
        %s210 = scalar_select %p209, %s19, 15
        %s211 = smul.addr %s210, 8
        %s212 = smul.addr %s211, 4
        %s213 = scalar_lea.vmem %s1, %s212
      $region28: #{generator_forward.9} parent=23 // pred_fallthru
        _
    $region24: #{generator_forward.9} parent=5 // pred_fallthru
      _
    %p214 = scmp.le.s32.totalorder 1, %s12
    %p215 = scmp.lt.s32.totalorder %s12, 17
    %p216 = pnand %p214, %p215
    %p217 = pneg %p216
    // Predicated region
    $region29: #{generator_forward.9} parent=5 // pred_check
      _
    $region30: #{generator_forward.9} parent=5 // pred_check_branch
      %219 = sbr.rel (%p216) target = $region32
    $region31: #{generator_forward.9} parent=5 // pred_region
      %s220 = ssub.s32 %s12, 1
      %p221 = scmp.lt.s32.totalorder %s22, 0
      %s222 = scalar_select %p221, %s22, 0
      %s223 = smul.addr %s222, 4
      %s224 = scalar_lea.vmem %s0, %s223
      %p225 = pneg %p50
      %p226 = pneg %p47
      %p227 = scmp.lt.s32.totalorder %s21, 15
      %s228 = scalar_select %p227, %s21, 15
      %s229 = smul.addr %s228, 8
      %s230 = smul.addr %s229, 4
      %s231 = scalar_lea.vmem %s1, %s230
      %p232 = pneg %p76
      %p233 = pneg %p73
      %p234 = pneg %p97
      %p235 = pneg %p94
      %p236 = pneg %p125
      %p237 = pneg %p122
      %p238 = scmp.lt.s32.totalorder %s21, 15
      %s239 = scalar_select %p238, %s21, 15
      %p240 = scmp.lt.s32.totalorder %s22, 0
      %s241 = scalar_select %p240, %s22, 0
      %s242 = smul.addr %s239, 8
      %s243 = sadd.s32 %s241, %s242
      %s244 = smul.addr %s243, 4
      %s245 = scalar_lea.vmem %s3, %s244
      %p246 = pneg %p151
      %p247 = pneg %p148
      %p248 = scmp.lt.s32.totalorder %s21, 15
      %s249 = scalar_select %p248, %s21, 15
      %s250 = smul.addr %s249, 8
      %s251 = smul.addr %s250, 8
      %s252 = scalar_lea.vmem %s4, %s251
      %p253 = pneg %p177
      %p254 = pneg %p174
      %p255 = scmp.lt.s32.totalorder %s21, 15
      %s256 = scalar_select %p255, %s21, 15
      %s257 = smul.addr %s256, 8
      %s258 = smul.addr %s257, 8
      %s259 = scalar_lea.vmem %s5, %s258
      %p260 = scmp.lt.s32.totalorder %s22, 0
      %s261 = scalar_select %p260, %s22, 0
      %s262 = smul.addr %s261, 4
      %s263 = scalar_lea.vmem %s0, %s262
      %p264 = scmp.lt.s32.totalorder %s21, 15
      %s265 = scalar_select %p264, %s21, 15
      %s266 = smul.addr %s265, 8
      %s267 = smul.addr %s266, 4
      %s268 = scalar_lea.vmem %s1, %s267
      %p269 = scmp.lt.s32.totalorder %s21, 15
      %s270 = scalar_select %p269, %s21, 15
      %p271 = scmp.lt.s32.totalorder %s22, 0
      %s272 = scalar_select %p271, %s22, 0
      %s273 = smul.addr %s270, 8
      %s274 = sadd.s32 %s272, %s273
      %s275 = smul.addr %s274, 4
      %s276 = scalar_lea.vmem %s3, %s275
      %p277 = scmp.lt.s32.totalorder %s21, 15
      %s278 = scalar_select %p277, %s21, 15
      %s279 = smul.addr %s278, 8
      %s280 = smul.addr %s279, 8
      %s281 = scalar_lea.vmem %s4, %s280
      %p282 = scmp.lt.s32.totalorder %s21, 15
      %s283 = scalar_select %p282, %s21, 15
      %s284 = smul.addr %s283, 8
      %s285 = smul.addr %s284, 8
      %s286 = scalar_lea.vmem %s5, %s285
      %p288 = scmp.eq.s32.totalorder %s22, 0
      // Predicated region
      $region33: #{generator_forward.9} parent=31 // pred_check
        %p289 = pneg %p288
      $region34: #{generator_forward.9} parent=31 // pred_check_branch
        %291 = sbr.rel (%p289) target = $region36
      $region35: #{generator_forward.9} parent=31 // pred_region
        %vm292 = vcmask 7168
        %293 = vst.msk [vmem:[%s281] sm:$0xff] %vm292, 0.0
        %294 = vst.msk [vmem:[%s281 + $0x8] sm:$0xff] %vm292, 0.0
        %295 = vst.msk [vmem:[%s281 + $0x10] sm:$0xff] %vm292, 0.0
        %296 = vst.msk [vmem:[%s281 + $0x18] sm:$0xff] %vm292, 0.0
        %297 = vst.msk [vmem:[%s281 + $0x20] sm:$0xff] %vm292, 0.0
        %298 = vst.msk [vmem:[%s281 + $0x28] sm:$0xff] %vm292, 0.0
        %299 = vst.msk [vmem:[%s281 + $0x30] sm:$0xff] %vm292, 0.0
        %300 = vst.msk [vmem:[%s281 + $0x38] sm:$0xff] %vm292, 0.0
        %301 = vst.msk [vmem:[%s286] sm:$0xff] %vm292, 0.0
        %302 = vst.msk [vmem:[%s286 + $0x8] sm:$0xff] %vm292, 0.0
        %303 = vst.msk [vmem:[%s286 + $0x10] sm:$0xff] %vm292, 0.0
        %304 = vst.msk [vmem:[%s286 + $0x18] sm:$0xff] %vm292, 0.0
        %305 = vst.msk [vmem:[%s286 + $0x20] sm:$0xff] %vm292, 0.0
        %306 = vst.msk [vmem:[%s286 + $0x28] sm:$0xff] %vm292, 0.0
        %307 = vst.msk [vmem:[%s286 + $0x30] sm:$0xff] %vm292, 0.0
        %308 = vst.msk [vmem:[%s286 + $0x38] sm:$0xff] %vm292, 0.0
      $region36: #{generator_forward.9} parent=31 // pred_fallthru
        _
      %v309 = vld [vmem:[%s268] sm:$0xf]
      %v310 = vld [vmem:[%s268 + $0x4] sm:$0xf]
      %v311 = vld [vmem:[%s268 + $0x8] sm:$0xf]
      %v312 = vld [vmem:[%s268 + $0xc] sm:$0xf]
      %v313 = vld [vmem:[%s268 + $0x10] sm:$0xf]
      %v314 = vld [vmem:[%s268 + $0x14] sm:$0xf]
      %v315 = vld [vmem:[%s268 + $0x18] sm:$0xf]
      %v316 = vld [vmem:[%s268 + $0x1c] sm:$0xf]
      %v317 = vld [vmem:[%s263] sm:$0xf]
      %v318 = vld [vmem:[%s2] sm:$0xff]
      %v319 = vld [vmem:[%s2 + $0x8] sm:$0xff]
      %v320 = vld [vmem:[%s2 + $0x10] sm:$0xff]
      %v321 = vld [vmem:[%s2 + $0x18] sm:$0xff]
      %v322 = vld [vmem:[%s2 + $0x20] sm:$0xff]
      %v323 = vld [vmem:[%s2 + $0x28] sm:$0xff]
      %v324 = vld [vmem:[%s2 + $0x30] sm:$0xff]
      %v325 = vld [vmem:[%s2 + $0x38] sm:$0xff]
      %327 = vset.pattern.permute.xlu0 0
      %328 = vperm.xlu0 %327, %v318
      %v329 = vpop.permute.xlu0 %328
      %332 = vset.pattern.permute.xlu0 0
      %333 = vperm.xlu0 %332, %v319
      %v334 = vpop.permute.xlu0 %333
      %337 = vset.pattern.permute.xlu0 0
      %338 = vperm.xlu0 %337, %v320
      %v339 = vpop.permute.xlu0 %338
      %342 = vset.pattern.permute.xlu0 0
      %343 = vperm.xlu0 %342, %v321
      %v344 = vpop.permute.xlu0 %343
      %347 = vset.pattern.permute.xlu0 0
      %348 = vperm.xlu0 %347, %v322
      %v349 = vpop.permute.xlu0 %348
      %352 = vset.pattern.permute.xlu0 0
      %353 = vperm.xlu0 %352, %v323
      %v354 = vpop.permute.xlu0 %353
      %357 = vset.pattern.permute.xlu0 0
      %358 = vperm.xlu0 %357, %v324
      %v359 = vpop.permute.xlu0 %358
      %362 = vset.pattern.permute.xlu0 0
      %363 = vperm.xlu0 %362, %v325
      %v364 = vpop.permute.xlu0 %363
      %v374 = vunpack.c.l.b16 %v309
      %v375 = vunpack.c.l.b16 %v310
      %v376 = vunpack.c.l.b16 %v311
      %v377 = vunpack.c.l.b16 %v312
      %v378 = vunpack.c.l.b16 %v313
      %v379 = vunpack.c.l.b16 %v314
      %v380 = vunpack.c.l.b16 %v315
      %v381 = vunpack.c.l.b16 %v316
      %v382 = vpack.c.b16 %v375, %v374
      %v383 = vpack.c.b16 %v377, %v376
      %v384 = vpack.c.b16 %v379, %v378
      %v385 = vpack.c.b16 %v381, %v380
      %vm386 = vcmask 64512
      %v388 = vsel %vm386, %v382, 0
      %v391 = vsel %vm386, %v383, 0
      %v394 = vsel %vm386, %v384, 0
      %v397 = vsel %vm386, %v385, 0
      %vm399 = vcmask 1043456
      %v401 = vsel %vm399, %v317, 0
      %403 = vmatprep.subr.bf16.mxu0 0
      %404 = vmatpush1.bf16.msra.mxu0 %v401
      %405 = vmatprep.subr.bf16.mxu0 0
      %406 = vmatpush1.bf16.msra.mxu0 0
      %407 = vmatprep.subr.bf16.mxu0 0
      %408 = vmatpush1.bf16.msra.mxu0 0
      %409 = vmatprep.subr.bf16.mxu0 0
      %410 = vmatpush1.bf16.msra.mxu0 0
      %411 = vmatprep.subr.bf16.mxu0 0
      %412 = vmatpush1.bf16.msra.mxu0 0
      %413 = vmatprep.subr.bf16.mxu0 0
      %414 = vmatpush1.bf16.msra.mxu0 0
      %415 = vmatprep.subr.bf16.mxu0 0
      %416 = vmatpush1.bf16.msra.mxu0 0
      %417 = vmatprep.subr.bf16.mxu0 0
      %418 = vmatpush1.bf16.msra.mxu0 0
      %419 = vmatprep.subr.bf16.mxu0 0
      %420 = vmatpush1.bf16.msra.mxu0 0
      %421 = vmatprep.subr.bf16.mxu0 0
      %422 = vmatpush1.bf16.msra.mxu0 0
      %423 = vmatprep.subr.bf16.mxu0 0
      %424 = vmatpush1.bf16.msra.mxu0 0
      %425 = vmatprep.subr.bf16.mxu0 0
      %426 = vmatpush1.bf16.msra.mxu0 0
      %427 = vmatprep.subr.bf16.mxu0 0
      %428 = vmatpush1.bf16.msra.mxu0 0
      %429 = vmatprep.subr.bf16.mxu0 0
      %430 = vmatpush1.bf16.msra.mxu0 0
      %431 = vmatprep.subr.bf16.mxu0 0
      %432 = vmatpush1.bf16.msra.mxu0 0
      %433 = vmatprep.subr.bf16.mxu0 0
      %434 = vmatpush1.bf16.msra.mxu0 0
      %435 = vmatprep.mubr.bf16.mxu0 0
      %436 = vmatmul.mubr.bf16.gmra.mrb[0].mxu0 %v388
      %v437 = vpop.f32.mrb[0].mxu0
      %v438 = vadd.f32 %v329, %v437
      %v439 = vpop.f32.mrb[0].mxu0
      %v440 = vpop.f32.mrb[0].mxu0
      %v441 = vadd.f32 %v334, %v440
      %v442 = vpop.f32.mrb[0].mxu0
      %443 = vmatprep.mubr.bf16.mxu0 0
      %444 = vmatmul.mubr.bf16.gmra.mrb[0].mxu0 %v391
      %v445 = vpop.f32.mrb[0].mxu0
      %v446 = vadd.f32 %v339, %v445
      %v447 = vpop.f32.mrb[0].mxu0
      %v448 = vpop.f32.mrb[0].mxu0
      %v449 = vadd.f32 %v344, %v448
      %v450 = vpop.f32.mrb[0].mxu0
      %451 = vmatprep.mubr.bf16.mxu0 0
      %452 = vmatmul.mubr.bf16.gmra.mrb[0].mxu0 %v394
      %v453 = vpop.f32.mrb[0].mxu0
      %v454 = vadd.f32 %v349, %v453
      %v455 = vpop.f32.mrb[0].mxu0
      %v456 = vpop.f32.mrb[0].mxu0
      %v457 = vadd.f32 %v354, %v456
      %v458 = vpop.f32.mrb[0].mxu0
      %459 = vmatprep.mubr.bf16.mxu0 0
      %460 = vmatmul.mubr.bf16.gmra.mrb[0].mxu0 %v397
      %v461 = vpop.f32.mrb[0].mxu0
      %v462 = vadd.f32 %v359, %v461
      %v463 = vpop.f32.mrb[0].mxu0
      %v464 = vpop.f32.mrb[0].mxu0
      %v465 = vadd.f32 %v364, %v464
      %v466 = vpop.f32.mrb[0].mxu0
      %467 = vdwg.mxu0
      %v468 = vpack.c.bf16 %v441, %v438
      %v469 = vpack.c.bf16 %v449, %v446
      %v470 = vpack.c.bf16 %v457, %v454
      %v471 = vpack.c.bf16 %v465, %v462
      %v476 = vunpack.c.l.b16 %v468
      %v477 = vunpack.c.h.b16 %v468
      %v478 = vunpack.c.l.b16 %v469
      %v479 = vunpack.c.h.b16 %v469
      %v480 = vunpack.c.l.b16 %v470
      %v481 = vunpack.c.h.b16 %v470
      %v482 = vunpack.c.l.b16 %v471
      %v483 = vunpack.c.h.b16 %v471
      %v484 = vpack.c.b16 %v476, %v476
      %v485 = vpack.c.b16 %v477, %v477
      %v486 = vpack.c.b16 %v478, %v478
      %v487 = vpack.c.b16 %v479, %v479
      %v488 = vpack.c.b16 %v480, %v480
      %v489 = vpack.c.b16 %v481, %v481
      %v490 = vpack.c.b16 %v482, %v482
      %v491 = vpack.c.b16 %v483, %v483
      %500 = vst [vmem:[%s276] sm:$0xf] %v484
      %501 = vst [vmem:[%s276 + $0x4] sm:$0xf] %v485
      %502 = vst [vmem:[%s276 + $0x8] sm:$0xf] %v486
      %503 = vst [vmem:[%s276 + $0xc] sm:$0xf] %v487
      %504 = vst [vmem:[%s276 + $0x10] sm:$0xf] %v488
      %505 = vst [vmem:[%s276 + $0x14] sm:$0xf] %v489
      %506 = vst [vmem:[%s276 + $0x18] sm:$0xf] %v490
      %507 = vst [vmem:[%s276 + $0x1c] sm:$0xf] %v491
      %s508 = smul.u32 %s22, 128
      %v509 = vlaneseq
      %v510 = vand.u32 %v509, 127
      %v511 = vstv %s508
      %v512 = vadd.s32 %v511, %v510
      %vm513 = vcmp.lt.s32.totalorder %v512, 2
      %v514 = vsel %vm513, 1, 0
      %v515 = vcvt.s32.f32 %v514
      %v516 = vmul.f32 %v438, %v515
      %v517 = vmul.f32 %v441, %v515
      %v518 = vmul.f32 %v446, %v515
      %v519 = vmul.f32 %v449, %v515
      %v520 = vmul.f32 %v454, %v515
      %v521 = vmul.f32 %v457, %v515
      %v522 = vmul.f32 %v462, %v515
      %v523 = vmul.f32 %v465, %v515
      %v524 = vld [vmem:[%s281] sm:$0xff]
      %v525 = vld [vmem:[%s281 + $0x8] sm:$0xff]
      %v526 = vld [vmem:[%s281 + $0x10] sm:$0xff]
      %v527 = vld [vmem:[%s281 + $0x18] sm:$0xff]
      %v528 = vld [vmem:[%s281 + $0x20] sm:$0xff]
      %v529 = vld [vmem:[%s281 + $0x28] sm:$0xff]
      %v530 = vld [vmem:[%s281 + $0x30] sm:$0xff]
      %v531 = vld [vmem:[%s281 + $0x38] sm:$0xff]
      %532 = vadd.xlane.f32.xlu0 %v516
      %v533 = vpop.xlane.xlu0 %532
      %534 = vadd.xlane.f32.xlu0 %v517
      %v535 = vpop.xlane.xlu0 %534
      %536 = vadd.xlane.f32.xlu0 %v518
      %v537 = vpop.xlane.xlu0 %536
      %538 = vadd.xlane.f32.xlu0 %v519
      %v539 = vpop.xlane.xlu0 %538
      %540 = vadd.xlane.f32.xlu0 %v520
      %v541 = vpop.xlane.xlu0 %540
      %542 = vadd.xlane.f32.xlu0 %v521
      %v543 = vpop.xlane.xlu0 %542
      %544 = vadd.xlane.f32.xlu0 %v522
      %v545 = vpop.xlane.xlu0 %544
      %546 = vadd.xlane.f32.xlu0 %v523
      %v547 = vpop.xlane.xlu0 %546
      %v548 = vadd.f32 %v524, %v533
      %v549 = vadd.f32 %v525, %v535
      %v550 = vadd.f32 %v526, %v537
      %v551 = vadd.f32 %v527, %v539
      %v552 = vadd.f32 %v528, %v541
      %v553 = vadd.f32 %v529, %v543
      %v554 = vadd.f32 %v530, %v545
      %v555 = vadd.f32 %v531, %v547
      %vm556 = vcmask 7168
      %557 = vst.msk [vmem:[%s281] sm:$0xff] %vm556, %v548
      %558 = vst.msk [vmem:[%s281 + $0x8] sm:$0xff] %vm556, %v549
      %559 = vst.msk [vmem:[%s281 + $0x10] sm:$0xff] %vm556, %v550
      %560 = vst.msk [vmem:[%s281 + $0x18] sm:$0xff] %vm556, %v551
      %561 = vst.msk [vmem:[%s281 + $0x20] sm:$0xff] %vm556, %v552
      %562 = vst.msk [vmem:[%s281 + $0x28] sm:$0xff] %vm556, %v553
      %563 = vst.msk [vmem:[%s281 + $0x30] sm:$0xff] %vm556, %v554
      %564 = vst.msk [vmem:[%s281 + $0x38] sm:$0xff] %vm556, %v555
      %v565 = vld [vmem:[%s286] sm:$0xff]
      %v566 = vld [vmem:[%s286 + $0x8] sm:$0xff]
      %v567 = vld [vmem:[%s286 + $0x10] sm:$0xff]
      %v568 = vld [vmem:[%s286 + $0x18] sm:$0xff]
      %v569 = vld [vmem:[%s286 + $0x20] sm:$0xff]
      %v570 = vld [vmem:[%s286 + $0x28] sm:$0xff]
      %v571 = vld [vmem:[%s286 + $0x30] sm:$0xff]
      %v572 = vld [vmem:[%s286 + $0x38] sm:$0xff]
      %v573 = vmul.f32 %v516, %v438
      %v574 = vmul.f32 %v517, %v441
      %v575 = vmul.f32 %v518, %v446
      %v576 = vmul.f32 %v519, %v449
      %v577 = vmul.f32 %v520, %v454
      %v578 = vmul.f32 %v521, %v457
      %v579 = vmul.f32 %v522, %v462
      %v580 = vmul.f32 %v523, %v465
      %581 = vadd.xlane.f32.xlu0 %v573
      %v582 = vpop.xlane.xlu0 %581
      %583 = vadd.xlane.f32.xlu0 %v574
      %v584 = vpop.xlane.xlu0 %583
      %585 = vadd.xlane.f32.xlu0 %v575
      %v586 = vpop.xlane.xlu0 %585
      %587 = vadd.xlane.f32.xlu0 %v576
      %v588 = vpop.xlane.xlu0 %587
      %589 = vadd.xlane.f32.xlu0 %v577
      %v590 = vpop.xlane.xlu0 %589
      %591 = vadd.xlane.f32.xlu0 %v578
      %v592 = vpop.xlane.xlu0 %591
      %593 = vadd.xlane.f32.xlu0 %v579
      %v594 = vpop.xlane.xlu0 %593
      %595 = vadd.xlane.f32.xlu0 %v580
      %v596 = vpop.xlane.xlu0 %595
      %v597 = vadd.f32 %v565, %v582
      %v598 = vadd.f32 %v566, %v584
      %v599 = vadd.f32 %v567, %v586
      %v600 = vadd.f32 %v568, %v588
      %v601 = vadd.f32 %v569, %v590
      %v602 = vadd.f32 %v570, %v592
      %v603 = vadd.f32 %v571, %v594
      %v604 = vadd.f32 %v572, %v596
      %605 = vst.msk [vmem:[%s286] sm:$0xff] %vm556, %v597
      %606 = vst.msk [vmem:[%s286 + $0x8] sm:$0xff] %vm556, %v598
      %607 = vst.msk [vmem:[%s286 + $0x10] sm:$0xff] %vm556, %v599
      %608 = vst.msk [vmem:[%s286 + $0x18] sm:$0xff] %vm556, %v600
      %609 = vst.msk [vmem:[%s286 + $0x20] sm:$0xff] %vm556, %v601
      %610 = vst.msk [vmem:[%s286 + $0x28] sm:$0xff] %vm556, %v602
      %611 = vst.msk [vmem:[%s286 + $0x30] sm:$0xff] %vm556, %v603
      %612 = vst.msk [vmem:[%s286 + $0x38] sm:$0xff] %vm556, %v604
      %p613 = scmp.lt.s32.totalorder %s21, 15
      %s614 = scalar_select %p613, %s21, 15
      %p615 = scmp.lt.s32.totalorder %s22, 0
      %s616 = scalar_select %p615, %s22, 0
      %s617 = smul.addr %s614, 8
      %s618 = sadd.s32 %s616, %s617
      %s619 = smul.addr %s618, 4
      %s620 = scalar_lea.vmem %s3, %s619
      %p621 = scmp.lt.s32.totalorder %s21, 15
      %s622 = scalar_select %p621, %s21, 15
      %s623 = smul.addr %s622, 8
      %s624 = smul.addr %s623, 8
      %s625 = scalar_lea.vmem %s4, %s624
      %p626 = scmp.lt.s32.totalorder %s21, 15
      %s627 = scalar_select %p626, %s21, 15
      %s628 = smul.addr %s627, 8
      %s629 = smul.addr %s628, 8
      %s630 = scalar_lea.vmem %s5, %s629
      // Predicated region
      $region37: #{generator_forward.9} parent=31 // pred_check
        %p631 = pneg %p122
      $region38: #{generator_forward.9} parent=31 // pred_check_branch
        %633 = sbr.rel (%p631) target = $region40
      $region39: #{generator_forward.9} parent=31 // pred_region
        _
      $region40: #{generator_forward.9} parent=31 // pred_fallthru
        _
      // Predicated region
      $region41: #{generator_forward.9} parent=31 // pred_check
        %p634 = pneg %p148
      $region42: #{generator_forward.9} parent=31 // pred_check_branch
        %636 = sbr.rel (%p634) target = $region44
      $region43: #{generator_forward.9} parent=31 // pred_region
        _
      $region44: #{generator_forward.9} parent=31 // pred_fallthru
        _
      // Predicated region
      $region45: #{generator_forward.9} parent=31 // pred_check
        %p637 = pneg %p174
      $region46: #{generator_forward.9} parent=31 // pred_check_branch
        %639 = sbr.rel (%p637) target = $region48
      $region47: #{generator_forward.9} parent=31 // pred_region
        _
      $region48: #{generator_forward.9} parent=31 // pred_fallthru
        _
    $region32: #{generator_forward.9} parent=5 // pred_fallthru
      _
    %p640 = scmp.le.s32.totalorder 2, %s12
    // Predicated region
    $region49: #{generator_forward.9} parent=5 // pred_check
      %p641 = pneg %p640
    $region50: #{generator_forward.9} parent=5 // pred_check_branch
      %643 = sbr.rel (%p641) target = $region52
    $region51: #{generator_forward.9} parent=5 // pred_region
      %s644 = ssub.s32 %s12, 2
      // Predicated region
      $region53: #{generator_forward.9} parent=51 // pred_check
        %p645 = pneg %p128
      $region54: #{generator_forward.9} parent=51 // pred_check_branch
        %647 = sbr.rel (%p645) target = $region56
      $region55: #{generator_forward.9} parent=51 // pred_region
        %p648 = scmp.lt.s32.totalorder %s23, 15
        %s649 = scalar_select %p648, %s23, 15
        %p650 = scmp.lt.s32.totalorder %s24, 0
        %s651 = scalar_select %p650, %s24, 0
        %s652 = smul.addr %s649, 8
        %s653 = sadd.s32 %s651, %s652
        %s654 = smul.addr %s653, 4
        %s655 = scalar_lea.vmem %s3, %s654
      $region56: #{generator_forward.9} parent=51 // pred_fallthru
        _
      // Predicated region
      $region57: #{generator_forward.9} parent=51 // pred_check
        %p656 = pneg %p154
      $region58: #{generator_forward.9} parent=51 // pred_check_branch
        %658 = sbr.rel (%p656) target = $region60
      $region59: #{generator_forward.9} parent=51 // pred_region
        %p659 = scmp.lt.s32.totalorder %s23, 15
        %s660 = scalar_select %p659, %s23, 15
        %s661 = smul.addr %s660, 8
        %s662 = smul.addr %s661, 8
        %s663 = scalar_lea.vmem %s4, %s662
      $region60: #{generator_forward.9} parent=51 // pred_fallthru
        _
      // Predicated region
      $region61: #{generator_forward.9} parent=51 // pred_check
        %p664 = pneg %p180
      $region62: #{generator_forward.9} parent=51 // pred_check_branch
        %666 = sbr.rel (%p664) target = $region64
      $region63: #{generator_forward.9} parent=51 // pred_region
        %p667 = scmp.lt.s32.totalorder %s23, 15
        %s668 = scalar_select %p667, %s23, 15
        %s669 = smul.addr %s668, 8
        %s670 = smul.addr %s669, 8
        %s671 = scalar_lea.vmem %s5, %s670
      $region64: #{generator_forward.9} parent=51 // pred_fallthru
        _
    $region52: #{generator_forward.9} parent=5 // pred_fallthru
      _
  $region6: #{generator_forward.9} parent=0 // loop_footer
    %s16 = sadd.s32 1, %s12
  $region7: #{generator_forward.9} parent=0 // loop_footer_branch
    %11 = sbr.rel target = $region3
  $region8: #{generator_forward.9} parent=0 // loop_exit
    _

// kernel: generator_forward.12
$region0: #{generator_forward.12}
  #allocation0 [shape = 'u32[]', space=smem, size = 0x4, offset = 0x4, fixed_abs, tag = 'smem constant byte address 0x4 - core index']
  #allocation1 [shape = 'u32[144,128]{1,0:T(1,128)}', space=vmem, size = 0x12000, scoped, tag = 'internal scratch']
  %s0 = inlined_call_operand.vmem [shape: bf16[4,32,128], index: 0, kind: input, shape index: {}]
  %s1 = inlined_call_operand.vmem [shape: f32[32,1], index: 1, kind: input, shape index: {}]
  %s2 = inlined_call_operand.vmem [shape: f32[32,1], index: 2, kind: input, shape index: {}]
  %s3 = inlined_call_operand.vmem [shape: bf16[4,32,128], index: 3, kind: output, shape index: {}]
  %s4 = sld [smem:[#allocation0]]
  $region45: #{generator_forward.12} parent=0
    _
  %s6 = ssub.s32 1, %s4
  %s7 = scalar_select 0, %s6, %s4
  loop: start=0, step=1, limit=6
  $region2: #{generator_forward.12} parent=0 // loop_pre_header
    _
  $region3: #{generator_forward.12} parent=0 // loop_header
    %s9 = sphi 0, %s13
    %p10 = scmp.ge.s32.totalorder %s9, 6
    %s16 = sphi 0, %s28
    %s17 = sphi 0, %s24
    %s18 = sphi 0, %s16
    %s19 = sphi 0, %s17
    %s20 = sphi 0, %s18
    %s21 = sphi 0, %s19
    %s33 = sphi 0, %s35
    %s36 = sphi 0, %s33
    %s37 = sphi 0, %s36
    %s53 = sphi 0, %s37
    %s57 = sphi 0, %s57
    %s59 = sphi 0, %s57
    %s60 = sphi 0, %s59
    %s74 = sphi 0, %s60
    %s78 = sphi 0, %s78
    %s80 = sphi 0, %s78
    %s81 = sphi 0, %s80
    %s95 = sphi 0, %s81
    %s103 = sphi 0, %s105
    %s106 = sphi 0, %s103
    %s107 = sphi 0, %s106
    %s123 = sphi 0, %s107
  $region4: #{generator_forward.12} parent=0 // loop_header_branch
    %12 = sbr.rel (%p10) target = $region8
  $region5: #{generator_forward.12} parent=0 // loop_body
    %s14 = ssub.s32 %s9, 1
    %s15 = ssub.s32 %s9, 2
    %s22 = sadd.s32 1, %s17
    %p23 = scmp.ge.s32.totalorder %s22, 1
    %s24 = scalar_select %p23, 0, %s22
    %s25 = sadd.s32 1, %s16
    %s26 = scalar_select %p23, %s25, %s16
    %p27 = scmp.ge.s32.totalorder %s26, 4
    %s28 = scalar_select %p27, 0, %s26
    %s29 = ssub.s32 %s16, %s28
    %s30 = ssub.s32 %s17, %s24
    %s31 = sor.u32 %s29, %s30
    %p32 = scmp.eq.s32.totalorder %s31, 0
    %s34 = sadd.s32 %s33, 1
    %s35 = scalar_select %p32, %s33, %s34
    %p38 = pneg %p32
    %p39 = scmp.eq.s32.totalorder %s9, 3
    %p40 = por %p38, %p39
    %p41 = scmp.ne.s32.totalorder %s33, %s36
    %p42 = scmp.eq.s32.totalorder %s9, 0
    %p43 = por %p41, %p42
    %p44 = scmp.ne.s32.totalorder %s33, %s36
    %p45 = scmp.eq.s32.totalorder %s14, 3
    %p46 = por %p44, %p45
    %p47 = scmp.ne.s32.totalorder %s36, %s37
    %p48 = scmp.eq.s32.totalorder %s14, 0
    %p49 = por %p47, %p48
    %p50 = scmp.ne.s32.totalorder %s36, %s37
    %p51 = scmp.eq.s32.totalorder %s15, 3
    %p52 = por %p50, %p51
    %p54 = scmp.ne.s32.totalorder %s37, %s53
    %p55 = scmp.eq.s32.totalorder %s15, 0
    %p56 = por %p54, %p55
    %s58 = sadd.s32 %s57, 1
    %p61 = scmp.eq.s32.totalorder %s9, 3
    %p62 = scmp.ne.s32.totalorder %s57, %s59
    %p63 = scmp.eq.s32.totalorder %s9, 0
    %p64 = por %p62, %p63
    %p65 = scmp.ne.s32.totalorder %s57, %s59
    %p66 = scmp.eq.s32.totalorder %s14, 3
    %p67 = por %p65, %p66
    %p68 = scmp.ne.s32.totalorder %s59, %s60
    %p69 = scmp.eq.s32.totalorder %s14, 0
    %p70 = por %p68, %p69
    %p71 = scmp.ne.s32.totalorder %s59, %s60
    %p72 = scmp.eq.s32.totalorder %s15, 3
    %p73 = por %p71, %p72
    %p75 = scmp.ne.s32.totalorder %s60, %s74
    %p76 = scmp.eq.s32.totalorder %s15, 0
    %p77 = por %p75, %p76
    %s79 = sadd.s32 %s78, 1
    %p82 = scmp.eq.s32.totalorder %s9, 3
    %p83 = scmp.ne.s32.totalorder %s78, %s80
    %p84 = scmp.eq.s32.totalorder %s9, 0
    %p85 = por %p83, %p84
    %p86 = scmp.ne.s32.totalorder %s78, %s80
    %p87 = scmp.eq.s32.totalorder %s14, 3
    %p88 = por %p86, %p87
    %p89 = scmp.ne.s32.totalorder %s80, %s81
    %p90 = scmp.eq.s32.totalorder %s14, 0
    %p91 = por %p89, %p90
    %p92 = scmp.ne.s32.totalorder %s80, %s81
    %p93 = scmp.eq.s32.totalorder %s15, 3
    %p94 = por %p92, %p93
    %p96 = scmp.ne.s32.totalorder %s81, %s95
    %p97 = scmp.eq.s32.totalorder %s15, 0
    %p98 = por %p96, %p97
    %s99 = ssub.s32 %s16, %s28
    %s100 = ssub.s32 %s17, %s24
    %s101 = sor.u32 %s99, %s100
    %p102 = scmp.eq.s32.totalorder %s101, 0
    %s104 = sadd.s32 %s103, 1
    %s105 = scalar_select %p102, %s103, %s104
    %p108 = pneg %p102
    %p109 = scmp.eq.s32.totalorder %s9, 3
    %p110 = por %p108, %p109
    %p111 = scmp.ne.s32.totalorder %s103, %s106
    %p112 = scmp.eq.s32.totalorder %s9, 0
    %p113 = por %p111, %p112
    %p114 = scmp.ne.s32.totalorder %s103, %s106
    %p115 = scmp.eq.s32.totalorder %s14, 3
    %p116 = por %p114, %p115
    %p117 = scmp.ne.s32.totalorder %s106, %s107
    %p118 = scmp.eq.s32.totalorder %s14, 0
    %p119 = por %p117, %p118
    %p120 = scmp.ne.s32.totalorder %s106, %s107
    %p121 = scmp.eq.s32.totalorder %s15, 3
    %p122 = por %p120, %p121
    %p124 = scmp.ne.s32.totalorder %s107, %s123
    %p125 = scmp.eq.s32.totalorder %s15, 0
    %p126 = por %p124, %p125
    %p127 = scmp.le.s32.totalorder 1, %s9
    %p128 = scmp.lt.s32.totalorder %s9, 5
    %p129 = pnand %p127, %p128
    %p130 = pneg %p129
    // Predicated region
    $region9: #{generator_forward.12} parent=5 // pred_check
      _
    $region10: #{generator_forward.12} parent=5 // pred_check_branch
      %132 = sbr.rel (%p129) target = $region12
    $region11: #{generator_forward.12} parent=5 // pred_region
      %s133 = ssub.s32 %s9, 1
      // Predicated region
      $region13: #{generator_forward.12} parent=11 // pred_check
        %p134 = pneg %p70
      $region14: #{generator_forward.12} parent=11 // pred_check_branch
        %136 = sbr.rel (%p134) target = $region16
      $region15: #{generator_forward.12} parent=11 // pred_region
        _
      $region16: #{generator_forward.12} parent=11 // pred_fallthru
        _
      // Predicated region
      $region17: #{generator_forward.12} parent=11 // pred_check
        %p137 = pneg %p91
      $region18: #{generator_forward.12} parent=11 // pred_check_branch
        %139 = sbr.rel (%p137) target = $region20
      $region19: #{generator_forward.12} parent=11 // pred_region
        _
      $region20: #{generator_forward.12} parent=11 // pred_fallthru
        _
    $region12: #{generator_forward.12} parent=5 // pred_fallthru
      _
    %p140 = scmp.lt.s32.totalorder %s9, 4
    // Predicated region
    $region21: #{generator_forward.12} parent=5 // pred_check
      %p141 = pneg %p140
    $region22: #{generator_forward.12} parent=5 // pred_check_branch
      %143 = sbr.rel (%p141) target = $region24
    $region23: #{generator_forward.12} parent=5 // pred_region
      // Predicated region
      $region25: #{generator_forward.12} parent=23 // pred_check
        %p144 = pneg %p43
      $region26: #{generator_forward.12} parent=23 // pred_check_branch
        %146 = sbr.rel (%p144) target = $region28
      $region27: #{generator_forward.12} parent=23 // pred_region
        %p147 = scmp.lt.s32.totalorder %s16, 3
        %s148 = scalar_select %p147, %s16, 3
        %p149 = scmp.lt.s32.totalorder %s17, 0
        %s150 = scalar_select %p149, %s17, 0
        %s151 = smul.addr %s148, 4
        %s152 = sadd.s32 %s150, %s151
        %s153 = smul.addr %s152, 4
        %s154 = scalar_lea.vmem %s0, %s153
      $region28: #{generator_forward.12} parent=23 // pred_fallthru
        _
    $region24: #{generator_forward.12} parent=5 // pred_fallthru
      _
    %p155 = scmp.le.s32.totalorder 1, %s9
    %p156 = scmp.lt.s32.totalorder %s9, 5
    %p157 = pnand %p155, %p156
    %p158 = pneg %p157
    // Predicated region
    $region29: #{generator_forward.12} parent=5 // pred_check
      _
    $region30: #{generator_forward.12} parent=5 // pred_check_branch
      %160 = sbr.rel (%p157) target = $region32
    $region31: #{generator_forward.12} parent=5 // pred_region
      %s161 = ssub.s32 %s9, 1
      %p162 = scmp.lt.s32.totalorder %s18, 3
      %s163 = scalar_select %p162, %s18, 3
      %p164 = scmp.lt.s32.totalorder %s19, 0
      %s165 = scalar_select %p164, %s19, 0
      %s166 = smul.addr %s163, 4
      %s167 = sadd.s32 %s165, %s166
      %s168 = smul.addr %s167, 4
      %s169 = scalar_lea.vmem %s0, %s168
      %p170 = pneg %p49
      %p171 = pneg %p46
      %p172 = pneg %p70
      %p173 = pneg %p67
      %p174 = pneg %p91
      %p175 = pneg %p88
      %p176 = pneg %p119
      %p177 = pneg %p116
      %p178 = scmp.lt.s32.totalorder %s18, 3
      %s179 = scalar_select %p178, %s18, 3
      %p180 = scmp.lt.s32.totalorder %s19, 0
      %s181 = scalar_select %p180, %s19, 0
      %s182 = smul.addr %s179, 4
      %s183 = sadd.s32 %s181, %s182
      %s184 = smul.addr %s183, 4
      %s185 = scalar_lea.vmem %s3, %s184
      %p186 = scmp.lt.s32.totalorder %s18, 3
      %s187 = scalar_select %p186, %s18, 3
      %p188 = scmp.lt.s32.totalorder %s19, 0
      %s189 = scalar_select %p188, %s19, 0
      %s190 = smul.addr %s187, 4
      %s191 = sadd.s32 %s189, %s190
      %s192 = smul.addr %s191, 4
      %s193 = scalar_lea.vmem %s0, %s192
      %p194 = scmp.lt.s32.totalorder %s18, 3
      %s195 = scalar_select %p194, %s18, 3
      %p196 = scmp.lt.s32.totalorder %s19, 0
      %s197 = scalar_select %p196, %s19, 0
      %s198 = smul.addr %s195, 4
      %s199 = sadd.s32 %s197, %s198
      %s200 = smul.addr %s199, 4
      %s201 = scalar_lea.vmem %s3, %s200
      %v202 = vld [vmem:[%s193] sm:$0xf]
      %v203 = vld [vmem:[%s193 + $0x4] sm:$0xf]
      %v204 = vld [vmem:[%s193 + $0x8] sm:$0xf]
      %v205 = vld [vmem:[%s193 + $0xc] sm:$0xf]
      %v206 = vunpack.c.l.bf16 %v202
      %v207 = vunpack.c.l.bf16 %v203
      %v208 = vunpack.c.l.bf16 %v204
      %v209 = vunpack.c.l.bf16 %v205
      %v210 = vld [vmem:[%s1] sm:$0xff]
      %v211 = vld [vmem:[%s1 + $0x8] sm:$0xff]
      %v212 = vld [vmem:[%s1 + $0x10] sm:$0xff]
      %v213 = vld [vmem:[%s1 + $0x18] sm:$0xff]
      %215 = vset.pattern.permute.xlu0 0
      %216 = vperm.xlu0 %215, %v210
      %v217 = vpop.permute.xlu0 %216
      %220 = vset.pattern.permute.xlu0 0
      %221 = vperm.xlu0 %220, %v211
      %v222 = vpop.permute.xlu0 %221
      %225 = vset.pattern.permute.xlu0 0
      %226 = vperm.xlu0 %225, %v212
      %v227 = vpop.permute.xlu0 %226
      %230 = vset.pattern.permute.xlu0 0
      %231 = vperm.xlu0 %230, %v213
      %v232 = vpop.permute.xlu0 %231
      %v234 = vmul.f32 %v206, %v217
      %v235 = vmul.f32 %v207, %v222
      %v236 = vmul.f32 %v208, %v227
      %v237 = vmul.f32 %v209, %v232
      %v238 = vld [vmem:[%s2] sm:$0xff]
      %v239 = vld [vmem:[%s2 + $0x8] sm:$0xff]
      %v240 = vld [vmem:[%s2 + $0x10] sm:$0xff]
      %v241 = vld [vmem:[%s2 + $0x18] sm:$0xff]
      %243 = vset.pattern.permute.xlu0 0
      %244 = vperm.xlu0 %243, %v238
      %v245 = vpop.permute.xlu0 %244
      %248 = vset.pattern.permute.xlu0 0
      %249 = vperm.xlu0 %248, %v239
      %v250 = vpop.permute.xlu0 %249
      %253 = vset.pattern.permute.xlu0 0
      %254 = vperm.xlu0 %253, %v240
      %v255 = vpop.permute.xlu0 %254
      %258 = vset.pattern.permute.xlu0 0
      %259 = vperm.xlu0 %258, %v241
      %v260 = vpop.permute.xlu0 %259
      %v262 = vadd.f32 %v234, %v245
      %v263 = vadd.f32 %v235, %v250
      %v264 = vadd.f32 %v236, %v255
      %v265 = vadd.f32 %v237, %v260
      %v266 = vmax.f32 %v262, 0.0
      %v267 = vmax.f32 %v263, 0.0
      %v268 = vmax.f32 %v264, 0.0
      %v269 = vmax.f32 %v265, 0.0
      %v270 = vpack.c.bf16 %v267, %v266
      %v271 = vpack.c.bf16 %v269, %v268
      %v274 = vunpack.c.l.b16 %v270
      %v275 = vunpack.c.h.b16 %v270
      %v276 = vunpack.c.l.b16 %v271
      %v277 = vunpack.c.h.b16 %v271
      %v278 = vpack.c.b16 %v274, %v274
      %v279 = vpack.c.b16 %v275, %v275
      %v280 = vpack.c.b16 %v276, %v276
      %v281 = vpack.c.b16 %v277, %v277
      %286 = vst [vmem:[%s201] sm:$0xf] %v278
      %287 = vst [vmem:[%s201 + $0x4] sm:$0xf] %v279
      %288 = vst [vmem:[%s201 + $0x8] sm:$0xf] %v280
      %289 = vst [vmem:[%s201 + $0xc] sm:$0xf] %v281
      %p290 = scmp.lt.s32.totalorder %s18, 3
      %s291 = scalar_select %p290, %s18, 3
      %p292 = scmp.lt.s32.totalorder %s19, 0
      %s293 = scalar_select %p292, %s19, 0
      %s294 = smul.addr %s291, 4
      %s295 = sadd.s32 %s293, %s294
      %s296 = smul.addr %s295, 4
      %s297 = scalar_lea.vmem %s3, %s296
      // Predicated region
      $region33: #{generator_forward.12} parent=31 // pred_check
        %p298 = pneg %p116
      $region34: #{generator_forward.12} parent=31 // pred_check_branch
        %300 = sbr.rel (%p298) target = $region36
      $region35: #{generator_forward.12} parent=31 // pred_region
        _
      $region36: #{generator_forward.12} parent=31 // pred_fallthru
        _
    $region32: #{generator_forward.12} parent=5 // pred_fallthru
      _
    %p301 = scmp.le.s32.totalorder 2, %s9
    // Predicated region
    $region37: #{generator_forward.12} parent=5 // pred_check
      %p302 = pneg %p301
    $region38: #{generator_forward.12} parent=5 // pred_check_branch
      %304 = sbr.rel (%p302) target = $region40
    $region39: #{generator_forward.12} parent=5 // pred_region
      %s305 = ssub.s32 %s9, 2
      // Predicated region
      $region41: #{generator_forward.12} parent=39 // pred_check
        %p306 = pneg %p122
      $region42: #{generator_forward.12} parent=39 // pred_check_branch
        %308 = sbr.rel (%p306) target = $region44
      $region43: #{generator_forward.12} parent=39 // pred_region
        %p309 = scmp.lt.s32.totalorder %s20, 3
        %s310 = scalar_select %p309, %s20, 3
        %p311 = scmp.lt.s32.totalorder %s21, 0
        %s312 = scalar_select %p311, %s21, 0
        %s313 = smul.addr %s310, 4
        %s314 = sadd.s32 %s312, %s313
        %s315 = smul.addr %s314, 4
        %s316 = scalar_lea.vmem %s3, %s315
      $region44: #{generator_forward.12} parent=39 // pred_fallthru
        _
    $region40: #{generator_forward.12} parent=5 // pred_fallthru
      _
  $region6: #{generator_forward.12} parent=0 // loop_footer
    %s13 = sadd.s32 1, %s9
  $region7: #{generator_forward.12} parent=0 // loop_footer_branch
    %8 = sbr.rel target = $region3
  $region8: #{generator_forward.12} parent=0 // loop_exit
    _

// kernel: generator_forward.11
$region0: #{generator_forward.11}
  #allocation0 [shape = 'u32[]', space=smem, size = 0x4, offset = 0x4, fixed_abs, tag = 'smem constant byte address 0x4 - core index']
  #allocation1 [shape = 'u32[144,128]{1,0:T(1,128)}', space=vmem, size = 0x12000, scoped, tag = 'internal scratch']
  %s0 = inlined_call_operand.vmem [shape: bf16[4,256,128], index: 0, kind: input, shape index: {}]
  %s1 = inlined_call_operand.vmem [shape: bf16[4,32,256], index: 1, kind: input, shape index: {}]
  %s2 = inlined_call_operand.vmem [shape: f32[32,1], index: 2, kind: input, shape index: {}]
  %s3 = inlined_call_operand.vmem [shape: bf16[4,32,128], index: 3, kind: output, shape index: {0}]
  %s4 = inlined_call_operand.vmem [shape: f32[4,32,1], index: 4, kind: output, shape index: {1}]
  %s5 = inlined_call_operand.vmem [shape: f32[4,32,1], index: 5, kind: output, shape index: {2}]
  %6 = xla_tuple %s3, %s4, %s5
  %s7 = sld [smem:[#allocation0]]
  $region65: #{generator_forward.11} parent=0
    _
  %s9 = ssub.s32 1, %s7
  %s10 = scalar_select 0, %s9, %s7
  loop: start=0, step=1, limit=6
  $region2: #{generator_forward.11} parent=0 // loop_pre_header
    _
  $region3: #{generator_forward.11} parent=0 // loop_header
    %s12 = sphi 0, %s16
    %p13 = scmp.ge.s32.totalorder %s12, 6
    %s19 = sphi 0, %s31
    %s20 = sphi 0, %s27
    %s21 = sphi 0, %s19
    %s22 = sphi 0, %s20
    %s23 = sphi 0, %s21
    %s24 = sphi 0, %s22
    %s36 = sphi 0, %s38
    %s39 = sphi 0, %s36
    %s40 = sphi 0, %s39
    %s56 = sphi 0, %s40
    %s62 = sphi 0, %s64
    %s65 = sphi 0, %s62
    %s66 = sphi 0, %s65
    %s82 = sphi 0, %s66
    %s86 = sphi 0, %s86
    %s88 = sphi 0, %s86
    %s89 = sphi 0, %s88
    %s103 = sphi 0, %s89
    %s111 = sphi 0, %s113
    %s114 = sphi 0, %s111
    %s115 = sphi 0, %s114
    %s131 = sphi 0, %s115
    %s137 = sphi 0, %s139
    %s140 = sphi 0, %s137
    %s141 = sphi 0, %s140
    %s157 = sphi 0, %s141
    %s163 = sphi 0, %s165
    %s166 = sphi 0, %s163
    %s167 = sphi 0, %s166
    %s183 = sphi 0, %s167
  $region4: #{generator_forward.11} parent=0 // loop_header_branch
    %15 = sbr.rel (%p13) target = $region8
  $region5: #{generator_forward.11} parent=0 // loop_body
    %s17 = ssub.s32 %s12, 1
    %s18 = ssub.s32 %s12, 2
    %s25 = sadd.s32 1, %s20
    %p26 = scmp.ge.s32.totalorder %s25, 1
    %s27 = scalar_select %p26, 0, %s25
    %s28 = sadd.s32 1, %s19
    %s29 = scalar_select %p26, %s28, %s19
    %p30 = scmp.ge.s32.totalorder %s29, 4
    %s31 = scalar_select %p30, 0, %s29
    %s32 = ssub.s32 %s19, %s31
    %s33 = ssub.s32 %s20, %s27
    %s34 = sor.u32 %s32, %s33
    %p35 = scmp.eq.s32.totalorder %s34, 0
    %s37 = sadd.s32 %s36, 1
    %s38 = scalar_select %p35, %s36, %s37
    %p41 = pneg %p35
    %p42 = scmp.eq.s32.totalorder %s12, 3
    %p43 = por %p41, %p42
    %p44 = scmp.ne.s32.totalorder %s36, %s39
    %p45 = scmp.eq.s32.totalorder %s12, 0
    %p46 = por %p44, %p45
    %p47 = scmp.ne.s32.totalorder %s36, %s39
    %p48 = scmp.eq.s32.totalorder %s17, 3
    %p49 = por %p47, %p48
    %p50 = scmp.ne.s32.totalorder %s39, %s40
    %p51 = scmp.eq.s32.totalorder %s17, 0
    %p52 = por %p50, %p51
    %p53 = scmp.ne.s32.totalorder %s39, %s40
    %p54 = scmp.eq.s32.totalorder %s18, 3
    %p55 = por %p53, %p54
    %p57 = scmp.ne.s32.totalorder %s40, %s56
    %p58 = scmp.eq.s32.totalorder %s18, 0
    %p59 = por %p57, %p58
    %s60 = ssub.s32 %s19, %s31
    %p61 = scmp.eq.s32.totalorder %s60, 0
    %s63 = sadd.s32 %s62, 1
    %s64 = scalar_select %p61, %s62, %s63
    %p67 = pneg %p61
    %p68 = scmp.eq.s32.totalorder %s12, 3
    %p69 = por %p67, %p68
    %p70 = scmp.ne.s32.totalorder %s62, %s65
    %p71 = scmp.eq.s32.totalorder %s12, 0
    %p72 = por %p70, %p71
    %p73 = scmp.ne.s32.totalorder %s62, %s65
    %p74 = scmp.eq.s32.totalorder %s17, 3
    %p75 = por %p73, %p74
    %p76 = scmp.ne.s32.totalorder %s65, %s66
    %p77 = scmp.eq.s32.totalorder %s17, 0
    %p78 = por %p76, %p77
    %p79 = scmp.ne.s32.totalorder %s65, %s66
    %p80 = scmp.eq.s32.totalorder %s18, 3
    %p81 = por %p79, %p80
    %p83 = scmp.ne.s32.totalorder %s66, %s82
    %p84 = scmp.eq.s32.totalorder %s18, 0
    %p85 = por %p83, %p84
    %s87 = sadd.s32 %s86, 1
    %p90 = scmp.eq.s32.totalorder %s12, 3
    %p91 = scmp.ne.s32.totalorder %s86, %s88
    %p92 = scmp.eq.s32.totalorder %s12, 0
    %p93 = por %p91, %p92
    %p94 = scmp.ne.s32.totalorder %s86, %s88
    %p95 = scmp.eq.s32.totalorder %s17, 3
    %p96 = por %p94, %p95
    %p97 = scmp.ne.s32.totalorder %s88, %s89
    %p98 = scmp.eq.s32.totalorder %s17, 0
    %p99 = por %p97, %p98
    %p100 = scmp.ne.s32.totalorder %s88, %s89
    %p101 = scmp.eq.s32.totalorder %s18, 3
    %p102 = por %p100, %p101
    %p104 = scmp.ne.s32.totalorder %s89, %s103
    %p105 = scmp.eq.s32.totalorder %s18, 0
    %p106 = por %p104, %p105
    %s107 = ssub.s32 %s19, %s31
    %s108 = ssub.s32 %s20, %s27
    %s109 = sor.u32 %s107, %s108
    %p110 = scmp.eq.s32.totalorder %s109, 0
    %s112 = sadd.s32 %s111, 1
    %s113 = scalar_select %p110, %s111, %s112
    %p116 = pneg %p110
    %p117 = scmp.eq.s32.totalorder %s12, 3
    %p118 = por %p116, %p117
    %p119 = scmp.ne.s32.totalorder %s111, %s114
    %p120 = scmp.eq.s32.totalorder %s12, 0
    %p121 = por %p119, %p120
    %p122 = scmp.ne.s32.totalorder %s111, %s114
    %p123 = scmp.eq.s32.totalorder %s17, 3
    %p124 = por %p122, %p123
    %p125 = scmp.ne.s32.totalorder %s114, %s115
    %p126 = scmp.eq.s32.totalorder %s17, 0
    %p127 = por %p125, %p126
    %p128 = scmp.ne.s32.totalorder %s114, %s115
    %p129 = scmp.eq.s32.totalorder %s18, 3
    %p130 = por %p128, %p129
    %p132 = scmp.ne.s32.totalorder %s115, %s131
    %p133 = scmp.eq.s32.totalorder %s18, 0
    %p134 = por %p132, %p133
    %s135 = ssub.s32 %s19, %s31
    %p136 = scmp.eq.s32.totalorder %s135, 0
    %s138 = sadd.s32 %s137, 1
    %s139 = scalar_select %p136, %s137, %s138
    %p142 = pneg %p136
    %p143 = scmp.eq.s32.totalorder %s12, 3
    %p144 = por %p142, %p143
    %p145 = scmp.ne.s32.totalorder %s137, %s140
    %p146 = scmp.eq.s32.totalorder %s12, 0
    %p147 = por %p145, %p146
    %p148 = scmp.ne.s32.totalorder %s137, %s140
    %p149 = scmp.eq.s32.totalorder %s17, 3
    %p150 = por %p148, %p149
    %p151 = scmp.ne.s32.totalorder %s140, %s141
    %p152 = scmp.eq.s32.totalorder %s17, 0
    %p153 = por %p151, %p152
    %p154 = scmp.ne.s32.totalorder %s140, %s141
    %p155 = scmp.eq.s32.totalorder %s18, 3
    %p156 = por %p154, %p155
    %p158 = scmp.ne.s32.totalorder %s141, %s157
    %p159 = scmp.eq.s32.totalorder %s18, 0
    %p160 = por %p158, %p159
    %s161 = ssub.s32 %s19, %s31
    %p162 = scmp.eq.s32.totalorder %s161, 0
    %s164 = sadd.s32 %s163, 1
    %s165 = scalar_select %p162, %s163, %s164
    %p168 = pneg %p162
    %p169 = scmp.eq.s32.totalorder %s12, 3
    %p170 = por %p168, %p169
    %p171 = scmp.ne.s32.totalorder %s163, %s166
    %p172 = scmp.eq.s32.totalorder %s12, 0
    %p173 = por %p171, %p172
    %p174 = scmp.ne.s32.totalorder %s163, %s166
    %p175 = scmp.eq.s32.totalorder %s17, 3
    %p176 = por %p174, %p175
    %p177 = scmp.ne.s32.totalorder %s166, %s167
    %p178 = scmp.eq.s32.totalorder %s17, 0
    %p179 = por %p177, %p178
    %p180 = scmp.ne.s32.totalorder %s166, %s167
    %p181 = scmp.eq.s32.totalorder %s18, 3
    %p182 = por %p180, %p181
    %p184 = scmp.ne.s32.totalorder %s167, %s183
    %p185 = scmp.eq.s32.totalorder %s18, 0
    %p186 = por %p184, %p185
    %p187 = scmp.le.s32.totalorder 1, %s12
    %p188 = scmp.lt.s32.totalorder %s12, 5
    %p189 = pnand %p187, %p188
    %p190 = pneg %p189
    // Predicated region
    $region9: #{generator_forward.11} parent=5 // pred_check
      _
    $region10: #{generator_forward.11} parent=5 // pred_check_branch
      %192 = sbr.rel (%p189) target = $region12
    $region11: #{generator_forward.11} parent=5 // pred_region
      %s193 = ssub.s32 %s12, 1
      // Predicated region
      $region13: #{generator_forward.11} parent=11 // pred_check
        %p194 = pneg %p99
      $region14: #{generator_forward.11} parent=11 // pred_check_branch
        %196 = sbr.rel (%p194) target = $region16
      $region15: #{generator_forward.11} parent=11 // pred_region
        _
      $region16: #{generator_forward.11} parent=11 // pred_fallthru
        _
    $region12: #{generator_forward.11} parent=5 // pred_fallthru
      _
    %p197 = scmp.lt.s32.totalorder %s12, 4
    // Predicated region
    $region17: #{generator_forward.11} parent=5 // pred_check
      %p198 = pneg %p197
    $region18: #{generator_forward.11} parent=5 // pred_check_branch
      %200 = sbr.rel (%p198) target = $region20
    $region19: #{generator_forward.11} parent=5 // pred_region
      // Predicated region
      $region21: #{generator_forward.11} parent=19 // pred_check
        %p201 = pneg %p46
      $region22: #{generator_forward.11} parent=19 // pred_check_branch
        %203 = sbr.rel (%p201) target = $region24
      $region23: #{generator_forward.11} parent=19 // pred_region
        %p204 = scmp.lt.s32.totalorder %s19, 3
        %s205 = scalar_select %p204, %s19, 3
        %p206 = scmp.lt.s32.totalorder %s20, 0
        %s207 = scalar_select %p206, %s20, 0
        %s208 = smul.addr %s205, 32
        %s209 = sadd.s32 %s207, %s208
        %s210 = smul.addr %s209, 4
        %s211 = scalar_lea.vmem %s0, %s210
      $region24: #{generator_forward.11} parent=19 // pred_fallthru
        _
      // Predicated region
      $region25: #{generator_forward.11} parent=19 // pred_check
        %p212 = pneg %p72
      $region26: #{generator_forward.11} parent=19 // pred_check_branch
        %214 = sbr.rel (%p212) target = $region28
      $region27: #{generator_forward.11} parent=19 // pred_region
        %p215 = scmp.lt.s32.totalorder %s19, 3
        %s216 = scalar_select %p215, %s19, 3
        %s217 = smul.addr %s216, 8
        %s218 = smul.addr %s217, 4
        %s219 = scalar_lea.vmem %s1, %s218
      $region28: #{generator_forward.11} parent=19 // pred_fallthru
        _
    $region20: #{generator_forward.11} parent=5 // pred_fallthru
      _
    %p220 = scmp.le.s32.totalorder 1, %s12
    %p221 = scmp.lt.s32.totalorder %s12, 5
    %p222 = pnand %p220, %p221
    %p223 = pneg %p222
    // Predicated region
    $region29: #{generator_forward.11} parent=5 // pred_check
      _
    $region30: #{generator_forward.11} parent=5 // pred_check_branch
      %225 = sbr.rel (%p222) target = $region32
    $region31: #{generator_forward.11} parent=5 // pred_region
      %s226 = ssub.s32 %s12, 1
      %p227 = scmp.lt.s32.totalorder %s21, 3
      %s228 = scalar_select %p227, %s21, 3
      %p229 = scmp.lt.s32.totalorder %s22, 0
      %s230 = scalar_select %p229, %s22, 0
      %s231 = smul.addr %s228, 32
      %s232 = sadd.s32 %s230, %s231
      %s233 = smul.addr %s232, 4
      %s234 = scalar_lea.vmem %s0, %s233
      %p235 = pneg %p52
      %p236 = pneg %p49
      %p237 = scmp.lt.s32.totalorder %s21, 3
      %s238 = scalar_select %p237, %s21, 3
      %s239 = smul.addr %s238, 8
      %s240 = smul.addr %s239, 4
      %s241 = scalar_lea.vmem %s1, %s240
      %p242 = pneg %p78
      %p243 = pneg %p75
      %p244 = pneg %p99
      %p245 = pneg %p96
      %p246 = pneg %p127
      %p247 = pneg %p124
      %p248 = scmp.lt.s32.totalorder %s21, 3
      %s249 = scalar_select %p248, %s21, 3
      %p250 = scmp.lt.s32.totalorder %s22, 0
      %s251 = scalar_select %p250, %s22, 0
      %s252 = smul.addr %s249, 4
      %s253 = sadd.s32 %s251, %s252
      %s254 = smul.addr %s253, 4
      %s255 = scalar_lea.vmem %s3, %s254
      %p256 = pneg %p153
      %p257 = pneg %p150
      %p258 = scmp.lt.s32.totalorder %s21, 3
      %s259 = scalar_select %p258, %s21, 3
      %s260 = smul.addr %s259, 4
      %s261 = smul.addr %s260, 8
      %s262 = scalar_lea.vmem %s4, %s261
      %p263 = pneg %p179
      %p264 = pneg %p176
      %p265 = scmp.lt.s32.totalorder %s21, 3
      %s266 = scalar_select %p265, %s21, 3
      %s267 = smul.addr %s266, 4
      %s268 = smul.addr %s267, 8
      %s269 = scalar_lea.vmem %s5, %s268
      %p270 = scmp.lt.s32.totalorder %s21, 3
      %s271 = scalar_select %p270, %s21, 3
      %p272 = scmp.lt.s32.totalorder %s22, 0
      %s273 = scalar_select %p272, %s22, 0
      %s274 = smul.addr %s271, 32
      %s275 = sadd.s32 %s273, %s274
      %s276 = smul.addr %s275, 4
      %s277 = scalar_lea.vmem %s0, %s276
      %p278 = scmp.lt.s32.totalorder %s21, 3
      %s279 = scalar_select %p278, %s21, 3
      %s280 = smul.addr %s279, 8
      %s281 = smul.addr %s280, 4
      %s282 = scalar_lea.vmem %s1, %s281
      %p283 = scmp.lt.s32.totalorder %s21, 3
      %s284 = scalar_select %p283, %s21, 3
      %p285 = scmp.lt.s32.totalorder %s22, 0
      %s286 = scalar_select %p285, %s22, 0
      %s287 = smul.addr %s284, 4
      %s288 = sadd.s32 %s286, %s287
      %s289 = smul.addr %s288, 4
      %s290 = scalar_lea.vmem %s3, %s289
      %p291 = scmp.lt.s32.totalorder %s21, 3
      %s292 = scalar_select %p291, %s21, 3
      %s293 = smul.addr %s292, 4
      %s294 = smul.addr %s293, 8
      %s295 = scalar_lea.vmem %s4, %s294
      %p296 = scmp.lt.s32.totalorder %s21, 3
      %s297 = scalar_select %p296, %s21, 3
      %s298 = smul.addr %s297, 4
      %s299 = smul.addr %s298, 8
      %s300 = scalar_lea.vmem %s5, %s299
      %p302 = scmp.eq.s32.totalorder %s22, 0
      // Predicated region
      $region33: #{generator_forward.11} parent=31 // pred_check
        %p303 = pneg %p302
      $region34: #{generator_forward.11} parent=31 // pred_check_branch
        %305 = sbr.rel (%p303) target = $region36
      $region35: #{generator_forward.11} parent=31 // pred_region
        %vm306 = vcmask 7168
        %307 = vst.msk [vmem:[%s295] sm:$0xff] %vm306, 0.0
        %308 = vst.msk [vmem:[%s295 + $0x8] sm:$0xff] %vm306, 0.0
        %309 = vst.msk [vmem:[%s295 + $0x10] sm:$0xff] %vm306, 0.0
        %310 = vst.msk [vmem:[%s295 + $0x18] sm:$0xff] %vm306, 0.0
        %311 = vst.msk [vmem:[%s300] sm:$0xff] %vm306, 0.0
        %312 = vst.msk [vmem:[%s300 + $0x8] sm:$0xff] %vm306, 0.0
        %313 = vst.msk [vmem:[%s300 + $0x10] sm:$0xff] %vm306, 0.0
        %314 = vst.msk [vmem:[%s300 + $0x18] sm:$0xff] %vm306, 0.0
      $region36: #{generator_forward.11} parent=31 // pred_fallthru
        _
      %v315 = vld [vmem:[%s282] sm:$0xff]
      %v316 = vld [vmem:[%s282 + $0x8] sm:$0xff]
      %v317 = vld [vmem:[%s282 + $0x10] sm:$0xff]
      %v318 = vld [vmem:[%s282 + $0x18] sm:$0xff]
      %v319 = vld [vmem:[%s277] sm:$0xf]
      %v320 = vld [vmem:[%s277 + $0x4] sm:$0xf]
      %v321 = vld [vmem:[%s277 + $0x8] sm:$0xf]
      %v322 = vld [vmem:[%s277 + $0xc] sm:$0xf]
      %v323 = vld [vmem:[%s277 + $0x10] sm:$0xf]
      %v324 = vld [vmem:[%s277 + $0x14] sm:$0xf]
      %v325 = vld [vmem:[%s277 + $0x18] sm:$0xf]
      %v326 = vld [vmem:[%s277 + $0x1c] sm:$0xf]
      %v327 = vld [vmem:[%s277 + $0x20] sm:$0xf]
      %v328 = vld [vmem:[%s277 + $0x24] sm:$0xf]
      %v329 = vld [vmem:[%s277 + $0x28] sm:$0xf]
      %v330 = vld [vmem:[%s277 + $0x2c] sm:$0xf]
      %v331 = vld [vmem:[%s277 + $0x30] sm:$0xf]
      %v332 = vld [vmem:[%s277 + $0x34] sm:$0xf]
      %v333 = vld [vmem:[%s277 + $0x38] sm:$0xf]
      %v334 = vld [vmem:[%s277 + $0x3c] sm:$0xf]
      %v335 = vld [vmem:[%s277 + $0x40] sm:$0xf]
      %v336 = vld [vmem:[%s277 + $0x44] sm:$0xf]
      %v337 = vld [vmem:[%s277 + $0x48] sm:$0xf]
      %v338 = vld [vmem:[%s277 + $0x4c] sm:$0xf]
      %v339 = vld [vmem:[%s277 + $0x50] sm:$0xf]
      %v340 = vld [vmem:[%s277 + $0x54] sm:$0xf]
      %v341 = vld [vmem:[%s277 + $0x58] sm:$0xf]
      %v342 = vld [vmem:[%s277 + $0x5c] sm:$0xf]
      %v343 = vld [vmem:[%s277 + $0x60] sm:$0xf]
      %v344 = vld [vmem:[%s277 + $0x64] sm:$0xf]
      %v345 = vld [vmem:[%s277 + $0x68] sm:$0xf]
      %v346 = vld [vmem:[%s277 + $0x6c] sm:$0xf]
      %v347 = vld [vmem:[%s277 + $0x70] sm:$0xf]
      %v348 = vld [vmem:[%s277 + $0x74] sm:$0xf]
      %v349 = vld [vmem:[%s277 + $0x78] sm:$0xf]
      %v350 = vld [vmem:[%s277 + $0x7c] sm:$0xf]
      %v351 = vld [vmem:[%s2] sm:$0xff]
      %v352 = vld [vmem:[%s2 + $0x8] sm:$0xff]
      %v353 = vld [vmem:[%s2 + $0x10] sm:$0xff]
      %v354 = vld [vmem:[%s2 + $0x18] sm:$0xff]
      %356 = vset.pattern.permute.xlu0 0
      %357 = vperm.xlu0 %356, %v351
      %v358 = vpop.permute.xlu0 %357
      %361 = vset.pattern.permute.xlu0 0
      %362 = vperm.xlu0 %361, %v352
      %v363 = vpop.permute.xlu0 %362
      %366 = vset.pattern.permute.xlu0 0
      %367 = vperm.xlu0 %366, %v353
      %v368 = vpop.permute.xlu0 %367
      %371 = vset.pattern.permute.xlu0 0
      %372 = vperm.xlu0 %371, %v354
      %v373 = vpop.permute.xlu0 %372
      %v379 = vunpack.c.l.b16 %v315
      %v380 = vunpack.c.h.b16 %v315
      %v381 = vunpack.c.l.b16 %v316
      %v382 = vunpack.c.h.b16 %v316
      %v383 = vunpack.c.l.b16 %v317
      %v384 = vunpack.c.h.b16 %v317
      %v385 = vunpack.c.l.b16 %v318
      %v386 = vunpack.c.h.b16 %v318
      %v387 = vpack.c.b16 %v381, %v379
      %v388 = vpack.c.b16 %v382, %v380
      %v389 = vpack.c.b16 %v385, %v383
      %v390 = vpack.c.b16 %v386, %v384
      %v427 = vunpack.c.l.b16 %v319
      %v428 = vunpack.c.l.b16 %v320
      %v429 = vunpack.c.l.b16 %v321
      %v430 = vunpack.c.l.b16 %v322
      %v431 = vunpack.c.l.b16 %v323
      %v432 = vunpack.c.l.b16 %v324
      %v433 = vunpack.c.l.b16 %v325
      %v434 = vunpack.c.l.b16 %v326
      %v435 = vunpack.c.l.b16 %v327
      %v436 = vunpack.c.l.b16 %v328
      %v437 = vunpack.c.l.b16 %v329
      %v438 = vunpack.c.l.b16 %v330
      %v439 = vunpack.c.l.b16 %v331
      %v440 = vunpack.c.l.b16 %v332
      %v441 = vunpack.c.l.b16 %v333
      %v442 = vunpack.c.l.b16 %v334
      %v443 = vunpack.c.l.b16 %v335
      %v444 = vunpack.c.l.b16 %v336
      %v445 = vunpack.c.l.b16 %v337
      %v446 = vunpack.c.l.b16 %v338
      %v447 = vunpack.c.l.b16 %v339
      %v448 = vunpack.c.l.b16 %v340
      %v449 = vunpack.c.l.b16 %v341
      %v450 = vunpack.c.l.b16 %v342
      %v451 = vunpack.c.l.b16 %v343
      %v452 = vunpack.c.l.b16 %v344
      %v453 = vunpack.c.l.b16 %v345
      %v454 = vunpack.c.l.b16 %v346
      %v455 = vunpack.c.l.b16 %v347
      %v456 = vunpack.c.l.b16 %v348
      %v457 = vunpack.c.l.b16 %v349
      %v458 = vunpack.c.l.b16 %v350
      %v459 = vpack.c.b16 %v428, %v427
      %v460 = vpack.c.b16 %v430, %v429
      %v461 = vpack.c.b16 %v432, %v431
      %v462 = vpack.c.b16 %v434, %v433
      %v463 = vpack.c.b16 %v436, %v435
      %v464 = vpack.c.b16 %v438, %v437
      %v465 = vpack.c.b16 %v440, %v439
      %v466 = vpack.c.b16 %v442, %v441
      %v467 = vpack.c.b16 %v444, %v443
      %v468 = vpack.c.b16 %v446, %v445
      %v469 = vpack.c.b16 %v448, %v447
      %v470 = vpack.c.b16 %v450, %v449
      %v471 = vpack.c.b16 %v452, %v451
      %v472 = vpack.c.b16 %v454, %v453
      %v473 = vpack.c.b16 %v456, %v455
      %v474 = vpack.c.b16 %v458, %v457
      %491 = vmatprep.subr.bf16.mxu0 0
      %492 = vmatpush1.bf16.msra.mxu0 %v459
      %493 = vmatprep.subr.bf16.mxu0 0
      %494 = vmatpush1.bf16.msra.mxu0 %v460
      %495 = vmatprep.subr.bf16.mxu0 0
      %496 = vmatpush1.bf16.msra.mxu0 %v461
      %497 = vmatprep.subr.bf16.mxu0 0
      %498 = vmatpush1.bf16.msra.mxu0 %v462
      %499 = vmatprep.subr.bf16.mxu0 0
      %500 = vmatpush1.bf16.msra.mxu0 %v463
      %501 = vmatprep.subr.bf16.mxu0 0
      %502 = vmatpush1.bf16.msra.mxu0 %v464
      %503 = vmatprep.subr.bf16.mxu0 0
      %504 = vmatpush1.bf16.msra.mxu0 %v465
      %505 = vmatprep.subr.bf16.mxu0 0
      %506 = vmatpush1.bf16.msra.mxu0 %v466
      %507 = vmatprep.subr.bf16.mxu0 0
      %508 = vmatpush1.bf16.msra.mxu0 %v467
      %509 = vmatprep.subr.bf16.mxu0 0
      %510 = vmatpush1.bf16.msra.mxu0 %v468
      %511 = vmatprep.subr.bf16.mxu0 0
      %512 = vmatpush1.bf16.msra.mxu0 %v469
      %513 = vmatprep.subr.bf16.mxu0 0
      %514 = vmatpush1.bf16.msra.mxu0 %v470
      %515 = vmatprep.subr.bf16.mxu0 0
      %516 = vmatpush1.bf16.msra.mxu0 %v471
      %517 = vmatprep.subr.bf16.mxu0 0
      %518 = vmatpush1.bf16.msra.mxu0 %v472
      %519 = vmatprep.subr.bf16.mxu0 0
      %520 = vmatpush1.bf16.msra.mxu0 %v473
      %521 = vmatprep.subr.bf16.mxu0 0
      %522 = vmatpush1.bf16.msra.mxu0 %v474
      %523 = vmatprep.mubr.bf16.mxu0 %v388
      %524 = vmatmul.mubr.bf16.gmra.mrb[0].mxu0 %v387
      %v525 = vpop.f32.mrb[0].mxu0
      %v526 = vadd.f32 %v358, %v525
      %v527 = vpop.f32.mrb[0].mxu0
      %v528 = vpop.f32.mrb[0].mxu0
      %v529 = vadd.f32 %v363, %v528
      %v530 = vpop.f32.mrb[0].mxu0
      %531 = vmatprep.mubr.bf16.mxu0 %v390
      %532 = vmatmul.mubr.bf16.gmra.mrb[0].mxu0 %v389
      %v533 = vpop.f32.mrb[0].mxu0
      %v534 = vadd.f32 %v368, %v533
      %v535 = vpop.f32.mrb[0].mxu0
      %v536 = vpop.f32.mrb[0].mxu0
      %v537 = vadd.f32 %v373, %v536
      %v538 = vpop.f32.mrb[0].mxu0
      %539 = vdwg.mxu0
      %v540 = vpack.c.bf16 %v529, %v526
      %v541 = vpack.c.bf16 %v537, %v534
      %v544 = vunpack.c.l.b16 %v540
      %v545 = vunpack.c.h.b16 %v540
      %v546 = vunpack.c.l.b16 %v541
      %v547 = vunpack.c.h.b16 %v541
      %v548 = vpack.c.b16 %v544, %v544
      %v549 = vpack.c.b16 %v545, %v545
      %v550 = vpack.c.b16 %v546, %v546
      %v551 = vpack.c.b16 %v547, %v547
      %556 = vst [vmem:[%s290] sm:$0xf] %v548
      %557 = vst [vmem:[%s290 + $0x4] sm:$0xf] %v549
      %558 = vst [vmem:[%s290 + $0x8] sm:$0xf] %v550
      %559 = vst [vmem:[%s290 + $0xc] sm:$0xf] %v551
      %s560 = smul.u32 %s22, 128
      %v561 = vlaneseq
      %v562 = vand.u32 %v561, 127
      %v563 = vstv %s560
      %v564 = vadd.s32 %v563, %v562
      %vm565 = vcmp.lt.s32.totalorder %v564, 32
      %v566 = vsel %vm565, 1, 0
      %v567 = vcvt.s32.f32 %v566
      %v568 = vmul.f32 %v526, %v567
      %v569 = vmul.f32 %v529, %v567
      %v570 = vmul.f32 %v534, %v567
      %v571 = vmul.f32 %v537, %v567
      %v572 = vld [vmem:[%s295] sm:$0xff]
      %v573 = vld [vmem:[%s295 + $0x8] sm:$0xff]
      %v574 = vld [vmem:[%s295 + $0x10] sm:$0xff]
      %v575 = vld [vmem:[%s295 + $0x18] sm:$0xff]
      %576 = vadd.xlane.f32.xlu0 %v568
      %v577 = vpop.xlane.xlu0 %576
      %578 = vadd.xlane.f32.xlu0 %v569
      %v579 = vpop.xlane.xlu0 %578
      %580 = vadd.xlane.f32.xlu0 %v570
      %v581 = vpop.xlane.xlu0 %580
      %582 = vadd.xlane.f32.xlu0 %v571
      %v583 = vpop.xlane.xlu0 %582
      %v584 = vadd.f32 %v572, %v577
      %v585 = vadd.f32 %v573, %v579
      %v586 = vadd.f32 %v574, %v581
      %v587 = vadd.f32 %v575, %v583
      %vm588 = vcmask 7168
      %589 = vst.msk [vmem:[%s295] sm:$0xff] %vm588, %v584
      %590 = vst.msk [vmem:[%s295 + $0x8] sm:$0xff] %vm588, %v585
      %591 = vst.msk [vmem:[%s295 + $0x10] sm:$0xff] %vm588, %v586
      %592 = vst.msk [vmem:[%s295 + $0x18] sm:$0xff] %vm588, %v587
      %v593 = vld [vmem:[%s300] sm:$0xff]
      %v594 = vld [vmem:[%s300 + $0x8] sm:$0xff]
      %v595 = vld [vmem:[%s300 + $0x10] sm:$0xff]
      %v596 = vld [vmem:[%s300 + $0x18] sm:$0xff]
      %v597 = vmul.f32 %v568, %v526
      %v598 = vmul.f32 %v569, %v529
      %v599 = vmul.f32 %v570, %v534
      %v600 = vmul.f32 %v571, %v537
      %601 = vadd.xlane.f32.xlu0 %v597
      %v602 = vpop.xlane.xlu0 %601
      %603 = vadd.xlane.f32.xlu0 %v598
      %v604 = vpop.xlane.xlu0 %603
      %605 = vadd.xlane.f32.xlu0 %v599
      %v606 = vpop.xlane.xlu0 %605
      %607 = vadd.xlane.f32.xlu0 %v600
      %v608 = vpop.xlane.xlu0 %607
      %v609 = vadd.f32 %v593, %v602
      %v610 = vadd.f32 %v594, %v604
      %v611 = vadd.f32 %v595, %v606
      %v612 = vadd.f32 %v596, %v608
      %613 = vst.msk [vmem:[%s300] sm:$0xff] %vm588, %v609
      %614 = vst.msk [vmem:[%s300 + $0x8] sm:$0xff] %vm588, %v610
      %615 = vst.msk [vmem:[%s300 + $0x10] sm:$0xff] %vm588, %v611
      %616 = vst.msk [vmem:[%s300 + $0x18] sm:$0xff] %vm588, %v612
      %p617 = scmp.lt.s32.totalorder %s21, 3
      %s618 = scalar_select %p617, %s21, 3
      %p619 = scmp.lt.s32.totalorder %s22, 0
      %s620 = scalar_select %p619, %s22, 0
      %s621 = smul.addr %s618, 4
      %s622 = sadd.s32 %s620, %s621
      %s623 = smul.addr %s622, 4
      %s624 = scalar_lea.vmem %s3, %s623
      %p625 = scmp.lt.s32.totalorder %s21, 3
      %s626 = scalar_select %p625, %s21, 3
      %s627 = smul.addr %s626, 4
      %s628 = smul.addr %s627, 8
      %s629 = scalar_lea.vmem %s4, %s628
      %p630 = scmp.lt.s32.totalorder %s21, 3
      %s631 = scalar_select %p630, %s21, 3
      %s632 = smul.addr %s631, 4
      %s633 = smul.addr %s632, 8
      %s634 = scalar_lea.vmem %s5, %s633
      // Predicated region
      $region37: #{generator_forward.11} parent=31 // pred_check
        %p635 = pneg %p124
      $region38: #{generator_forward.11} parent=31 // pred_check_branch
        %637 = sbr.rel (%p635) target = $region40
      $region39: #{generator_forward.11} parent=31 // pred_region
        _
      $region40: #{generator_forward.11} parent=31 // pred_fallthru
        _
      // Predicated region
      $region41: #{generator_forward.11} parent=31 // pred_check
        %p638 = pneg %p150
      $region42: #{generator_forward.11} parent=31 // pred_check_branch
        %640 = sbr.rel (%p638) target = $region44
      $region43: #{generator_forward.11} parent=31 // pred_region
        _
      $region44: #{generator_forward.11} parent=31 // pred_fallthru
        _
      // Predicated region
      $region45: #{generator_forward.11} parent=31 // pred_check
        %p641 = pneg %p176
      $region46: #{generator_forward.11} parent=31 // pred_check_branch
        %643 = sbr.rel (%p641) target = $region48
      $region47: #{generator_forward.11} parent=31 // pred_region
        _
      $region48: #{generator_forward.11} parent=31 // pred_fallthru
        _
    $region32: #{generator_forward.11} parent=5 // pred_fallthru
      _
    %p644 = scmp.le.s32.totalorder 2, %s12
    // Predicated region
    $region49: #{generator_forward.11} parent=5 // pred_check
      %p645 = pneg %p644
    $region50: #{generator_forward.11} parent=5 // pred_check_branch
      %647 = sbr.rel (%p645) target = $region52
    $region51: #{generator_forward.11} parent=5 // pred_region
      %s648 = ssub.s32 %s12, 2
      // Predicated region
      $region53: #{generator_forward.11} parent=51 // pred_check
        %p649 = pneg %p130
      $region54: #{generator_forward.11} parent=51 // pred_check_branch
        %651 = sbr.rel (%p649) target = $region56
      $region55: #{generator_forward.11} parent=51 // pred_region
        %p652 = scmp.lt.s32.totalorder %s23, 3
        %s653 = scalar_select %p652, %s23, 3
        %p654 = scmp.lt.s32.totalorder %s24, 0
        %s655 = scalar_select %p654, %s24, 0
        %s656 = smul.addr %s653, 4
        %s657 = sadd.s32 %s655, %s656
        %s658 = smul.addr %s657, 4
        %s659 = scalar_lea.vmem %s3, %s658
      $region56: #{generator_forward.11} parent=51 // pred_fallthru
        _
      // Predicated region
      $region57: #{generator_forward.11} parent=51 // pred_check
        %p660 = pneg %p156
      $region58: #{generator_forward.11} parent=51 // pred_check_branch
        %662 = sbr.rel (%p660) target = $region60
      $region59: #{generator_forward.11} parent=51 // pred_region
        %p663 = scmp.lt.s32.totalorder %s23, 3
        %s664 = scalar_select %p663, %s23, 3
        %s665 = smul.addr %s664, 4
        %s666 = smul.addr %s665, 8
        %s667 = scalar_lea.vmem %s4, %s666
      $region60: #{generator_forward.11} parent=51 // pred_fallthru
        _
      // Predicated region
      $region61: #{generator_forward.11} parent=51 // pred_check
        %p668 = pneg %p182
      $region62: #{generator_forward.11} parent=51 // pred_check_branch
        %670 = sbr.rel (%p668) target = $region64
      $region63: #{generator_forward.11} parent=51 // pred_region
        %p671 = scmp.lt.s32.totalorder %s23, 3
        %s672 = scalar_select %p671, %s23, 3
        %s673 = smul.addr %s672, 4
        %s674 = smul.addr %s673, 8
        %s675 = scalar_lea.vmem %s5, %s674
      $region64: #{generator_forward.11} parent=51 // pred_fallthru
        _
    $region52: #{generator_forward.11} parent=5 // pred_fallthru
      _
  $region6: #{generator_forward.11} parent=0 // loop_footer
    %s16 = sadd.s32 1, %s12
  $region7: #{generator_forward.11} parent=0 // loop_footer_branch
    %11 = sbr.rel target = $region3
  $region8: #{generator_forward.11} parent=0 // loop_exit
    _

// kernel: generator_forward.13
$region0: #{generator_forward.13}
  #allocation0 [shape = 'u32[]', space=smem, size = 0x4, offset = 0x4, fixed_abs, tag = 'smem constant byte address 0x4 - core index']
  #allocation1 [shape = 'u32[144,128]{1,0:T(1,128)}', space=vmem, size = 0x12000, scoped, tag = 'internal scratch']
  %s0 = inlined_call_operand.vmem [shape: bf16[4,128,128], index: 0, kind: input, shape index: {}]
  %s1 = inlined_call_operand.vmem [shape: bf16[4,16,128], index: 1, kind: input, shape index: {}]
  %s2 = inlined_call_operand.vmem [shape: f32[16,1], index: 2, kind: input, shape index: {}]
  %s3 = inlined_call_operand.vmem [shape: bf16[4,16,128], index: 3, kind: output, shape index: {0}]
  %s4 = inlined_call_operand.vmem [shape: f32[4,16,1], index: 4, kind: output, shape index: {1}]
  %s5 = inlined_call_operand.vmem [shape: f32[4,16,1], index: 5, kind: output, shape index: {2}]
  %6 = xla_tuple %s3, %s4, %s5
  %s7 = sld [smem:[#allocation0]]
  $region65: #{generator_forward.13} parent=0
    _
  %s9 = ssub.s32 1, %s7
  %s10 = scalar_select 0, %s9, %s7
  loop: start=0, step=1, limit=6
  $region2: #{generator_forward.13} parent=0 // loop_pre_header
    _
  $region3: #{generator_forward.13} parent=0 // loop_header
    %s12 = sphi 0, %s16
    %p13 = scmp.ge.s32.totalorder %s12, 6
    %s19 = sphi 0, %s31
    %s20 = sphi 0, %s27
    %s21 = sphi 0, %s19
    %s22 = sphi 0, %s20
    %s23 = sphi 0, %s21
    %s24 = sphi 0, %s22
    %s36 = sphi 0, %s38
    %s39 = sphi 0, %s36
    %s40 = sphi 0, %s39
    %s56 = sphi 0, %s40
    %s62 = sphi 0, %s64
    %s65 = sphi 0, %s62
    %s66 = sphi 0, %s65
    %s82 = sphi 0, %s66
    %s86 = sphi 0, %s86
    %s88 = sphi 0, %s86
    %s89 = sphi 0, %s88
    %s103 = sphi 0, %s89
    %s111 = sphi 0, %s113
    %s114 = sphi 0, %s111
    %s115 = sphi 0, %s114
    %s131 = sphi 0, %s115
    %s137 = sphi 0, %s139
    %s140 = sphi 0, %s137
    %s141 = sphi 0, %s140
    %s157 = sphi 0, %s141
    %s163 = sphi 0, %s165
    %s166 = sphi 0, %s163
    %s167 = sphi 0, %s166
    %s183 = sphi 0, %s167
  $region4: #{generator_forward.13} parent=0 // loop_header_branch
    %15 = sbr.rel (%p13) target = $region8
  $region5: #{generator_forward.13} parent=0 // loop_body
    %s17 = ssub.s32 %s12, 1
    %s18 = ssub.s32 %s12, 2
    %s25 = sadd.s32 1, %s20
    %p26 = scmp.ge.s32.totalorder %s25, 1
    %s27 = scalar_select %p26, 0, %s25
    %s28 = sadd.s32 1, %s19
    %s29 = scalar_select %p26, %s28, %s19
    %p30 = scmp.ge.s32.totalorder %s29, 4
    %s31 = scalar_select %p30, 0, %s29
    %s32 = ssub.s32 %s19, %s31
    %s33 = ssub.s32 %s20, %s27
    %s34 = sor.u32 %s32, %s33
    %p35 = scmp.eq.s32.totalorder %s34, 0
    %s37 = sadd.s32 %s36, 1
    %s38 = scalar_select %p35, %s36, %s37
    %p41 = pneg %p35
    %p42 = scmp.eq.s32.totalorder %s12, 3
    %p43 = por %p41, %p42
    %p44 = scmp.ne.s32.totalorder %s36, %s39
    %p45 = scmp.eq.s32.totalorder %s12, 0
    %p46 = por %p44, %p45
    %p47 = scmp.ne.s32.totalorder %s36, %s39
    %p48 = scmp.eq.s32.totalorder %s17, 3
    %p49 = por %p47, %p48
    %p50 = scmp.ne.s32.totalorder %s39, %s40
    %p51 = scmp.eq.s32.totalorder %s17, 0
    %p52 = por %p50, %p51
    %p53 = scmp.ne.s32.totalorder %s39, %s40
    %p54 = scmp.eq.s32.totalorder %s18, 3
    %p55 = por %p53, %p54
    %p57 = scmp.ne.s32.totalorder %s40, %s56
    %p58 = scmp.eq.s32.totalorder %s18, 0
    %p59 = por %p57, %p58
    %s60 = ssub.s32 %s19, %s31
    %p61 = scmp.eq.s32.totalorder %s60, 0
    %s63 = sadd.s32 %s62, 1
    %s64 = scalar_select %p61, %s62, %s63
    %p67 = pneg %p61
    %p68 = scmp.eq.s32.totalorder %s12, 3
    %p69 = por %p67, %p68
    %p70 = scmp.ne.s32.totalorder %s62, %s65
    %p71 = scmp.eq.s32.totalorder %s12, 0
    %p72 = por %p70, %p71
    %p73 = scmp.ne.s32.totalorder %s62, %s65
    %p74 = scmp.eq.s32.totalorder %s17, 3
    %p75 = por %p73, %p74
    %p76 = scmp.ne.s32.totalorder %s65, %s66
    %p77 = scmp.eq.s32.totalorder %s17, 0
    %p78 = por %p76, %p77
    %p79 = scmp.ne.s32.totalorder %s65, %s66
    %p80 = scmp.eq.s32.totalorder %s18, 3
    %p81 = por %p79, %p80
    %p83 = scmp.ne.s32.totalorder %s66, %s82
    %p84 = scmp.eq.s32.totalorder %s18, 0
    %p85 = por %p83, %p84
    %s87 = sadd.s32 %s86, 1
    %p90 = scmp.eq.s32.totalorder %s12, 3
    %p91 = scmp.ne.s32.totalorder %s86, %s88
    %p92 = scmp.eq.s32.totalorder %s12, 0
    %p93 = por %p91, %p92
    %p94 = scmp.ne.s32.totalorder %s86, %s88
    %p95 = scmp.eq.s32.totalorder %s17, 3
    %p96 = por %p94, %p95
    %p97 = scmp.ne.s32.totalorder %s88, %s89
    %p98 = scmp.eq.s32.totalorder %s17, 0
    %p99 = por %p97, %p98
    %p100 = scmp.ne.s32.totalorder %s88, %s89
    %p101 = scmp.eq.s32.totalorder %s18, 3
    %p102 = por %p100, %p101
    %p104 = scmp.ne.s32.totalorder %s89, %s103
    %p105 = scmp.eq.s32.totalorder %s18, 0
    %p106 = por %p104, %p105
    %s107 = ssub.s32 %s19, %s31
    %s108 = ssub.s32 %s20, %s27
    %s109 = sor.u32 %s107, %s108
    %p110 = scmp.eq.s32.totalorder %s109, 0
    %s112 = sadd.s32 %s111, 1
    %s113 = scalar_select %p110, %s111, %s112
    %p116 = pneg %p110
    %p117 = scmp.eq.s32.totalorder %s12, 3
    %p118 = por %p116, %p117
    %p119 = scmp.ne.s32.totalorder %s111, %s114
    %p120 = scmp.eq.s32.totalorder %s12, 0
    %p121 = por %p119, %p120
    %p122 = scmp.ne.s32.totalorder %s111, %s114
    %p123 = scmp.eq.s32.totalorder %s17, 3
    %p124 = por %p122, %p123
    %p125 = scmp.ne.s32.totalorder %s114, %s115
    %p126 = scmp.eq.s32.totalorder %s17, 0
    %p127 = por %p125, %p126
    %p128 = scmp.ne.s32.totalorder %s114, %s115
    %p129 = scmp.eq.s32.totalorder %s18, 3
    %p130 = por %p128, %p129
    %p132 = scmp.ne.s32.totalorder %s115, %s131
    %p133 = scmp.eq.s32.totalorder %s18, 0
    %p134 = por %p132, %p133
    %s135 = ssub.s32 %s19, %s31
    %p136 = scmp.eq.s32.totalorder %s135, 0
    %s138 = sadd.s32 %s137, 1
    %s139 = scalar_select %p136, %s137, %s138
    %p142 = pneg %p136
    %p143 = scmp.eq.s32.totalorder %s12, 3
    %p144 = por %p142, %p143
    %p145 = scmp.ne.s32.totalorder %s137, %s140
    %p146 = scmp.eq.s32.totalorder %s12, 0
    %p147 = por %p145, %p146
    %p148 = scmp.ne.s32.totalorder %s137, %s140
    %p149 = scmp.eq.s32.totalorder %s17, 3
    %p150 = por %p148, %p149
    %p151 = scmp.ne.s32.totalorder %s140, %s141
    %p152 = scmp.eq.s32.totalorder %s17, 0
    %p153 = por %p151, %p152
    %p154 = scmp.ne.s32.totalorder %s140, %s141
    %p155 = scmp.eq.s32.totalorder %s18, 3
    %p156 = por %p154, %p155
    %p158 = scmp.ne.s32.totalorder %s141, %s157
    %p159 = scmp.eq.s32.totalorder %s18, 0
    %p160 = por %p158, %p159
    %s161 = ssub.s32 %s19, %s31
    %p162 = scmp.eq.s32.totalorder %s161, 0
    %s164 = sadd.s32 %s163, 1
    %s165 = scalar_select %p162, %s163, %s164
    %p168 = pneg %p162
    %p169 = scmp.eq.s32.totalorder %s12, 3
    %p170 = por %p168, %p169
    %p171 = scmp.ne.s32.totalorder %s163, %s166
    %p172 = scmp.eq.s32.totalorder %s12, 0
    %p173 = por %p171, %p172
    %p174 = scmp.ne.s32.totalorder %s163, %s166
    %p175 = scmp.eq.s32.totalorder %s17, 3
    %p176 = por %p174, %p175
    %p177 = scmp.ne.s32.totalorder %s166, %s167
    %p178 = scmp.eq.s32.totalorder %s17, 0
    %p179 = por %p177, %p178
    %p180 = scmp.ne.s32.totalorder %s166, %s167
    %p181 = scmp.eq.s32.totalorder %s18, 3
    %p182 = por %p180, %p181
    %p184 = scmp.ne.s32.totalorder %s167, %s183
    %p185 = scmp.eq.s32.totalorder %s18, 0
    %p186 = por %p184, %p185
    %p187 = scmp.le.s32.totalorder 1, %s12
    %p188 = scmp.lt.s32.totalorder %s12, 5
    %p189 = pnand %p187, %p188
    %p190 = pneg %p189
    // Predicated region
    $region9: #{generator_forward.13} parent=5 // pred_check
      _
    $region10: #{generator_forward.13} parent=5 // pred_check_branch
      %192 = sbr.rel (%p189) target = $region12
    $region11: #{generator_forward.13} parent=5 // pred_region
      %s193 = ssub.s32 %s12, 1
      // Predicated region
      $region13: #{generator_forward.13} parent=11 // pred_check
        %p194 = pneg %p99
      $region14: #{generator_forward.13} parent=11 // pred_check_branch
        %196 = sbr.rel (%p194) target = $region16
      $region15: #{generator_forward.13} parent=11 // pred_region
        _
      $region16: #{generator_forward.13} parent=11 // pred_fallthru
        _
    $region12: #{generator_forward.13} parent=5 // pred_fallthru
      _
    %p197 = scmp.lt.s32.totalorder %s12, 4
    // Predicated region
    $region17: #{generator_forward.13} parent=5 // pred_check
      %p198 = pneg %p197
    $region18: #{generator_forward.13} parent=5 // pred_check_branch
      %200 = sbr.rel (%p198) target = $region20
    $region19: #{generator_forward.13} parent=5 // pred_region
      // Predicated region
      $region21: #{generator_forward.13} parent=19 // pred_check
        %p201 = pneg %p46
      $region22: #{generator_forward.13} parent=19 // pred_check_branch
        %203 = sbr.rel (%p201) target = $region24
      $region23: #{generator_forward.13} parent=19 // pred_region
        %p204 = scmp.lt.s32.totalorder %s19, 3
        %s205 = scalar_select %p204, %s19, 3
        %p206 = scmp.lt.s32.totalorder %s20, 0
        %s207 = scalar_select %p206, %s20, 0
        %s208 = smul.addr %s205, 16
        %s209 = sadd.s32 %s207, %s208
        %s210 = smul.addr %s209, 4
        %s211 = scalar_lea.vmem %s0, %s210
      $region24: #{generator_forward.13} parent=19 // pred_fallthru
        _
      // Predicated region
      $region25: #{generator_forward.13} parent=19 // pred_check
        %p212 = pneg %p72
      $region26: #{generator_forward.13} parent=19 // pred_check_branch
        %214 = sbr.rel (%p212) target = $region28
      $region27: #{generator_forward.13} parent=19 // pred_region
        %p215 = scmp.lt.s32.totalorder %s19, 3
        %s216 = scalar_select %p215, %s19, 3
        %s217 = smul.addr %s216, 2
        %s218 = smul.addr %s217, 4
        %s219 = scalar_lea.vmem %s1, %s218
      $region28: #{generator_forward.13} parent=19 // pred_fallthru
        _
    $region20: #{generator_forward.13} parent=5 // pred_fallthru
      _
    %p220 = scmp.le.s32.totalorder 1, %s12
    %p221 = scmp.lt.s32.totalorder %s12, 5
    %p222 = pnand %p220, %p221
    %p223 = pneg %p222
    // Predicated region
    $region29: #{generator_forward.13} parent=5 // pred_check
      _
    $region30: #{generator_forward.13} parent=5 // pred_check_branch
      %225 = sbr.rel (%p222) target = $region32
    $region31: #{generator_forward.13} parent=5 // pred_region
      %s226 = ssub.s32 %s12, 1
      %p227 = scmp.lt.s32.totalorder %s21, 3
      %s228 = scalar_select %p227, %s21, 3
      %p229 = scmp.lt.s32.totalorder %s22, 0
      %s230 = scalar_select %p229, %s22, 0
      %s231 = smul.addr %s228, 16
      %s232 = sadd.s32 %s230, %s231
      %s233 = smul.addr %s232, 4
      %s234 = scalar_lea.vmem %s0, %s233
      %p235 = pneg %p52
      %p236 = pneg %p49
      %p237 = scmp.lt.s32.totalorder %s21, 3
      %s238 = scalar_select %p237, %s21, 3
      %s239 = smul.addr %s238, 2
      %s240 = smul.addr %s239, 4
      %s241 = scalar_lea.vmem %s1, %s240
      %p242 = pneg %p78
      %p243 = pneg %p75
      %p244 = pneg %p99
      %p245 = pneg %p96
      %p246 = pneg %p127
      %p247 = pneg %p124
      %p248 = scmp.lt.s32.totalorder %s21, 3
      %s249 = scalar_select %p248, %s21, 3
      %p250 = scmp.lt.s32.totalorder %s22, 0
      %s251 = scalar_select %p250, %s22, 0
      %s252 = smul.addr %s249, 2
      %s253 = sadd.s32 %s251, %s252
      %s254 = smul.addr %s253, 4
      %s255 = scalar_lea.vmem %s3, %s254
      %p256 = pneg %p153
      %p257 = pneg %p150
      %p258 = scmp.lt.s32.totalorder %s21, 3
      %s259 = scalar_select %p258, %s21, 3
      %s260 = smul.addr %s259, 2
      %s261 = smul.addr %s260, 8
      %s262 = scalar_lea.vmem %s4, %s261
      %p263 = pneg %p179
      %p264 = pneg %p176
      %p265 = scmp.lt.s32.totalorder %s21, 3
      %s266 = scalar_select %p265, %s21, 3
      %s267 = smul.addr %s266, 2
      %s268 = smul.addr %s267, 8
      %s269 = scalar_lea.vmem %s5, %s268
      %p270 = scmp.lt.s32.totalorder %s21, 3
      %s271 = scalar_select %p270, %s21, 3
      %p272 = scmp.lt.s32.totalorder %s22, 0
      %s273 = scalar_select %p272, %s22, 0
      %s274 = smul.addr %s271, 16
      %s275 = sadd.s32 %s273, %s274
      %s276 = smul.addr %s275, 4
      %s277 = scalar_lea.vmem %s0, %s276
      %p278 = scmp.lt.s32.totalorder %s21, 3
      %s279 = scalar_select %p278, %s21, 3
      %s280 = smul.addr %s279, 2
      %s281 = smul.addr %s280, 4
      %s282 = scalar_lea.vmem %s1, %s281
      %p283 = scmp.lt.s32.totalorder %s21, 3
      %s284 = scalar_select %p283, %s21, 3
      %p285 = scmp.lt.s32.totalorder %s22, 0
      %s286 = scalar_select %p285, %s22, 0
      %s287 = smul.addr %s284, 2
      %s288 = sadd.s32 %s286, %s287
      %s289 = smul.addr %s288, 4
      %s290 = scalar_lea.vmem %s3, %s289
      %p291 = scmp.lt.s32.totalorder %s21, 3
      %s292 = scalar_select %p291, %s21, 3
      %s293 = smul.addr %s292, 2
      %s294 = smul.addr %s293, 8
      %s295 = scalar_lea.vmem %s4, %s294
      %p296 = scmp.lt.s32.totalorder %s21, 3
      %s297 = scalar_select %p296, %s21, 3
      %s298 = smul.addr %s297, 2
      %s299 = smul.addr %s298, 8
      %s300 = scalar_lea.vmem %s5, %s299
      %p302 = scmp.eq.s32.totalorder %s22, 0
      // Predicated region
      $region33: #{generator_forward.13} parent=31 // pred_check
        %p303 = pneg %p302
      $region34: #{generator_forward.13} parent=31 // pred_check_branch
        %305 = sbr.rel (%p303) target = $region36
      $region35: #{generator_forward.13} parent=31 // pred_region
        %vm306 = vcmask 7168
        %307 = vst.msk [vmem:[%s295] sm:$0xff] %vm306, 0.0
        %308 = vst.msk [vmem:[%s295 + $0x8] sm:$0xff] %vm306, 0.0
        %309 = vst.msk [vmem:[%s300] sm:$0xff] %vm306, 0.0
        %310 = vst.msk [vmem:[%s300 + $0x8] sm:$0xff] %vm306, 0.0
      $region36: #{generator_forward.13} parent=31 // pred_fallthru
        _
      %v311 = vld [vmem:[%s282] sm:$0xf]
      %v312 = vld [vmem:[%s282 + $0x4] sm:$0xf]
      %v313 = vld [vmem:[%s277] sm:$0xf]
      %v314 = vld [vmem:[%s277 + $0x4] sm:$0xf]
      %v315 = vld [vmem:[%s277 + $0x8] sm:$0xf]
      %v316 = vld [vmem:[%s277 + $0xc] sm:$0xf]
      %v317 = vld [vmem:[%s277 + $0x10] sm:$0xf]
      %v318 = vld [vmem:[%s277 + $0x14] sm:$0xf]
      %v319 = vld [vmem:[%s277 + $0x18] sm:$0xf]
      %v320 = vld [vmem:[%s277 + $0x1c] sm:$0xf]
      %v321 = vld [vmem:[%s277 + $0x20] sm:$0xf]
      %v322 = vld [vmem:[%s277 + $0x24] sm:$0xf]
      %v323 = vld [vmem:[%s277 + $0x28] sm:$0xf]
      %v324 = vld [vmem:[%s277 + $0x2c] sm:$0xf]
      %v325 = vld [vmem:[%s277 + $0x30] sm:$0xf]
      %v326 = vld [vmem:[%s277 + $0x34] sm:$0xf]
      %v327 = vld [vmem:[%s277 + $0x38] sm:$0xf]
      %v328 = vld [vmem:[%s277 + $0x3c] sm:$0xf]
      %v329 = vld [vmem:[%s2] sm:$0xff]
      %v330 = vld [vmem:[%s2 + $0x8] sm:$0xff]
      %332 = vset.pattern.permute.xlu0 0
      %333 = vperm.xlu0 %332, %v329
      %v334 = vpop.permute.xlu0 %333
      %337 = vset.pattern.permute.xlu0 0
      %338 = vperm.xlu0 %337, %v330
      %v339 = vpop.permute.xlu0 %338
      %v343 = vunpack.c.l.b16 %v311
      %v344 = vunpack.c.l.b16 %v312
      %v345 = vpack.c.b16 %v344, %v343
      %v363 = vunpack.c.l.b16 %v313
      %v364 = vunpack.c.l.b16 %v314
      %v365 = vunpack.c.l.b16 %v315
      %v366 = vunpack.c.l.b16 %v316
      %v367 = vunpack.c.l.b16 %v317
      %v368 = vunpack.c.l.b16 %v318
      %v369 = vunpack.c.l.b16 %v319
      %v370 = vunpack.c.l.b16 %v320
      %v371 = vunpack.c.l.b16 %v321
      %v372 = vunpack.c.l.b16 %v322
      %v373 = vunpack.c.l.b16 %v323
      %v374 = vunpack.c.l.b16 %v324
      %v375 = vunpack.c.l.b16 %v325
      %v376 = vunpack.c.l.b16 %v326
      %v377 = vunpack.c.l.b16 %v327
      %v378 = vunpack.c.l.b16 %v328
      %v379 = vpack.c.b16 %v364, %v363
      %v380 = vpack.c.b16 %v366, %v365
      %v381 = vpack.c.b16 %v368, %v367
      %v382 = vpack.c.b16 %v370, %v369
      %v383 = vpack.c.b16 %v372, %v371
      %v384 = vpack.c.b16 %v374, %v373
      %v385 = vpack.c.b16 %v376, %v375
      %v386 = vpack.c.b16 %v378, %v377
      %395 = vmatprep.subr.bf16.mxu0 0
      %396 = vmatpush1.bf16.msra.mxu0 %v379
      %397 = vmatprep.subr.bf16.mxu0 0
      %398 = vmatpush1.bf16.msra.mxu0 %v380
      %399 = vmatprep.subr.bf16.mxu0 0
      %400 = vmatpush1.bf16.msra.mxu0 %v381
      %401 = vmatprep.subr.bf16.mxu0 0
      %402 = vmatpush1.bf16.msra.mxu0 %v382
      %403 = vmatprep.subr.bf16.mxu0 0
      %404 = vmatpush1.bf16.msra.mxu0 %v383
      %405 = vmatprep.subr.bf16.mxu0 0
      %406 = vmatpush1.bf16.msra.mxu0 %v384
      %407 = vmatprep.subr.bf16.mxu0 0
      %408 = vmatpush1.bf16.msra.mxu0 %v385
      %409 = vmatprep.subr.bf16.mxu0 0
      %410 = vmatpush1.bf16.msra.mxu0 %v386
      %411 = vmatprep.subr.bf16.mxu0 0
      %412 = vmatpush1.bf16.msra.mxu0 0
      %413 = vmatprep.subr.bf16.mxu0 0
      %414 = vmatpush1.bf16.msra.mxu0 0
      %415 = vmatprep.subr.bf16.mxu0 0
      %416 = vmatpush1.bf16.msra.mxu0 0
      %417 = vmatprep.subr.bf16.mxu0 0
      %418 = vmatpush1.bf16.msra.mxu0 0
      %419 = vmatprep.subr.bf16.mxu0 0
      %420 = vmatpush1.bf16.msra.mxu0 0
      %421 = vmatprep.subr.bf16.mxu0 0
      %422 = vmatpush1.bf16.msra.mxu0 0
      %423 = vmatprep.subr.bf16.mxu0 0
      %424 = vmatpush1.bf16.msra.mxu0 0
      %425 = vmatprep.subr.bf16.mxu0 0
      %426 = vmatpush1.bf16.msra.mxu0 0
      %427 = vmatprep.mubr.bf16.mxu0 0
      %428 = vmatmul.mubr.bf16.gmra.mrb[0].mxu0 %v345
      %v429 = vpop.f32.mrb[0].mxu0
      %v430 = vadd.f32 %v334, %v429
      %v431 = vpop.f32.mrb[0].mxu0
      %v432 = vpop.f32.mrb[0].mxu0
      %v433 = vadd.f32 %v339, %v432
      %v434 = vpop.f32.mrb[0].mxu0
      %435 = vdwg.mxu0
      %v436 = vpack.c.bf16 %v433, %v430
      %v438 = vunpack.c.l.b16 %v436
      %v439 = vunpack.c.h.b16 %v436
      %v440 = vpack.c.b16 %v438, %v438
      %v441 = vpack.c.b16 %v439, %v439
      %444 = vst [vmem:[%s290] sm:$0xf] %v440
      %445 = vst [vmem:[%s290 + $0x4] sm:$0xf] %v441
      %s446 = smul.u32 %s22, 128
      %v447 = vlaneseq
      %v448 = vand.u32 %v447, 127
      %v449 = vstv %s446
      %v450 = vadd.s32 %v449, %v448
      %vm451 = vcmp.lt.s32.totalorder %v450, 128
      %v452 = vsel %vm451, 1, 0
      %v453 = vcvt.s32.f32 %v452
      %v454 = vmul.f32 %v430, %v453
      %v455 = vmul.f32 %v433, %v453
      %v456 = vld [vmem:[%s295] sm:$0xff]
      %v457 = vld [vmem:[%s295 + $0x8] sm:$0xff]
      %458 = vadd.xlane.f32.xlu0 %v454
      %v459 = vpop.xlane.xlu0 %458
      %460 = vadd.xlane.f32.xlu0 %v455
      %v461 = vpop.xlane.xlu0 %460
      %v462 = vadd.f32 %v456, %v459
      %v463 = vadd.f32 %v457, %v461
      %vm464 = vcmask 7168
      %465 = vst.msk [vmem:[%s295] sm:$0xff] %vm464, %v462
      %466 = vst.msk [vmem:[%s295 + $0x8] sm:$0xff] %vm464, %v463
      %v467 = vld [vmem:[%s300] sm:$0xff]
      %v468 = vld [vmem:[%s300 + $0x8] sm:$0xff]
      %v469 = vmul.f32 %v454, %v430
      %v470 = vmul.f32 %v455, %v433
      %471 = vadd.xlane.f32.xlu0 %v469
      %v472 = vpop.xlane.xlu0 %471
      %473 = vadd.xlane.f32.xlu0 %v470
      %v474 = vpop.xlane.xlu0 %473
      %v475 = vadd.f32 %v467, %v472
      %v476 = vadd.f32 %v468, %v474
      %477 = vst.msk [vmem:[%s300] sm:$0xff] %vm464, %v475
      %478 = vst.msk [vmem:[%s300 + $0x8] sm:$0xff] %vm464, %v476
      %p479 = scmp.lt.s32.totalorder %s21, 3
      %s480 = scalar_select %p479, %s21, 3
      %p481 = scmp.lt.s32.totalorder %s22, 0
      %s482 = scalar_select %p481, %s22, 0
      %s483 = smul.addr %s480, 2
      %s484 = sadd.s32 %s482, %s483
      %s485 = smul.addr %s484, 4
      %s486 = scalar_lea.vmem %s3, %s485
      %p487 = scmp.lt.s32.totalorder %s21, 3
      %s488 = scalar_select %p487, %s21, 3
      %s489 = smul.addr %s488, 2
      %s490 = smul.addr %s489, 8
      %s491 = scalar_lea.vmem %s4, %s490
      %p492 = scmp.lt.s32.totalorder %s21, 3
      %s493 = scalar_select %p492, %s21, 3
      %s494 = smul.addr %s493, 2
      %s495 = smul.addr %s494, 8
      %s496 = scalar_lea.vmem %s5, %s495
      // Predicated region
      $region37: #{generator_forward.13} parent=31 // pred_check
        %p497 = pneg %p124
      $region38: #{generator_forward.13} parent=31 // pred_check_branch
        %499 = sbr.rel (%p497) target = $region40
      $region39: #{generator_forward.13} parent=31 // pred_region
        _
      $region40: #{generator_forward.13} parent=31 // pred_fallthru
        _
      // Predicated region
      $region41: #{generator_forward.13} parent=31 // pred_check
        %p500 = pneg %p150
      $region42: #{generator_forward.13} parent=31 // pred_check_branch
        %502 = sbr.rel (%p500) target = $region44
      $region43: #{generator_forward.13} parent=31 // pred_region
        _
      $region44: #{generator_forward.13} parent=31 // pred_fallthru
        _
      // Predicated region
      $region45: #{generator_forward.13} parent=31 // pred_check
        %p503 = pneg %p176
      $region46: #{generator_forward.13} parent=31 // pred_check_branch
        %505 = sbr.rel (%p503) target = $region48
      $region47: #{generator_forward.13} parent=31 // pred_region
        _
      $region48: #{generator_forward.13} parent=31 // pred_fallthru
        _
    $region32: #{generator_forward.13} parent=5 // pred_fallthru
      _
    %p506 = scmp.le.s32.totalorder 2, %s12
    // Predicated region
    $region49: #{generator_forward.13} parent=5 // pred_check
      %p507 = pneg %p506
    $region50: #{generator_forward.13} parent=5 // pred_check_branch
      %509 = sbr.rel (%p507) target = $region52
    $region51: #{generator_forward.13} parent=5 // pred_region
      %s510 = ssub.s32 %s12, 2
      // Predicated region
      $region53: #{generator_forward.13} parent=51 // pred_check
        %p511 = pneg %p130
      $region54: #{generator_forward.13} parent=51 // pred_check_branch
        %513 = sbr.rel (%p511) target = $region56
      $region55: #{generator_forward.13} parent=51 // pred_region
        %p514 = scmp.lt.s32.totalorder %s23, 3
        %s515 = scalar_select %p514, %s23, 3
        %p516 = scmp.lt.s32.totalorder %s24, 0
        %s517 = scalar_select %p516, %s24, 0
        %s518 = smul.addr %s515, 2
        %s519 = sadd.s32 %s517, %s518
        %s520 = smul.addr %s519, 4
        %s521 = scalar_lea.vmem %s3, %s520
      $region56: #{generator_forward.13} parent=51 // pred_fallthru
        _
      // Predicated region
      $region57: #{generator_forward.13} parent=51 // pred_check
        %p522 = pneg %p156
      $region58: #{generator_forward.13} parent=51 // pred_check_branch
        %524 = sbr.rel (%p522) target = $region60
      $region59: #{generator_forward.13} parent=51 // pred_region
        %p525 = scmp.lt.s32.totalorder %s23, 3
        %s526 = scalar_select %p525, %s23, 3
        %s527 = smul.addr %s526, 2
        %s528 = smul.addr %s527, 8
        %s529 = scalar_lea.vmem %s4, %s528
      $region60: #{generator_forward.13} parent=51 // pred_fallthru
        _
      // Predicated region
      $region61: #{generator_forward.13} parent=51 // pred_check
        %p530 = pneg %p182
      $region62: #{generator_forward.13} parent=51 // pred_check_branch
        %532 = sbr.rel (%p530) target = $region64
      $region63: #{generator_forward.13} parent=51 // pred_region
        %p533 = scmp.lt.s32.totalorder %s23, 3
        %s534 = scalar_select %p533, %s23, 3
        %s535 = smul.addr %s534, 2
        %s536 = smul.addr %s535, 8
        %s537 = scalar_lea.vmem %s5, %s536
      $region64: #{generator_forward.13} parent=51 // pred_fallthru
        _
    $region52: #{generator_forward.13} parent=5 // pred_fallthru
      _
  $region6: #{generator_forward.13} parent=0 // loop_footer
    %s16 = sadd.s32 1, %s12
  $region7: #{generator_forward.13} parent=0 // loop_footer_branch
    %11 = sbr.rel target = $region3
  $region8: #{generator_forward.13} parent=0 // loop_exit
    _

// kernel: generator_forward.14
$region0: #{generator_forward.14}
  #allocation0 [shape = 'u32[]', space=smem, size = 0x4, offset = 0x4, fixed_abs, tag = 'smem constant byte address 0x4 - core index']
  #allocation1 [shape = 'u32[144,128]{1,0:T(1,128)}', space=vmem, size = 0x12000, scoped, tag = 'internal scratch']
  %s0 = inlined_call_operand.vmem [shape: bf16[4,16,128], index: 0, kind: input, shape index: {}]
  %s1 = inlined_call_operand.vmem [shape: f32[16,1], index: 1, kind: input, shape index: {}]
  %s2 = inlined_call_operand.vmem [shape: f32[16,1], index: 2, kind: input, shape index: {}]
  %s3 = inlined_call_operand.vmem [shape: bf16[4,16,128], index: 3, kind: output, shape index: {}]
  %s4 = sld [smem:[#allocation0]]
  $region45: #{generator_forward.14} parent=0
    _
  %s6 = ssub.s32 1, %s4
  %s7 = scalar_select 0, %s6, %s4
  loop: start=0, step=1, limit=6
  $region2: #{generator_forward.14} parent=0 // loop_pre_header
    _
  $region3: #{generator_forward.14} parent=0 // loop_header
    %s9 = sphi 0, %s13
    %p10 = scmp.ge.s32.totalorder %s9, 6
    %s16 = sphi 0, %s28
    %s17 = sphi 0, %s24
    %s18 = sphi 0, %s16
    %s19 = sphi 0, %s17
    %s20 = sphi 0, %s18
    %s21 = sphi 0, %s19
    %s33 = sphi 0, %s35
    %s36 = sphi 0, %s33
    %s37 = sphi 0, %s36
    %s53 = sphi 0, %s37
    %s57 = sphi 0, %s57
    %s59 = sphi 0, %s57
    %s60 = sphi 0, %s59
    %s74 = sphi 0, %s60
    %s78 = sphi 0, %s78
    %s80 = sphi 0, %s78
    %s81 = sphi 0, %s80
    %s95 = sphi 0, %s81
    %s103 = sphi 0, %s105
    %s106 = sphi 0, %s103
    %s107 = sphi 0, %s106
    %s123 = sphi 0, %s107
  $region4: #{generator_forward.14} parent=0 // loop_header_branch
    %12 = sbr.rel (%p10) target = $region8
  $region5: #{generator_forward.14} parent=0 // loop_body
    %s14 = ssub.s32 %s9, 1
    %s15 = ssub.s32 %s9, 2
    %s22 = sadd.s32 1, %s17
    %p23 = scmp.ge.s32.totalorder %s22, 1
    %s24 = scalar_select %p23, 0, %s22
    %s25 = sadd.s32 1, %s16
    %s26 = scalar_select %p23, %s25, %s16
    %p27 = scmp.ge.s32.totalorder %s26, 4
    %s28 = scalar_select %p27, 0, %s26
    %s29 = ssub.s32 %s16, %s28
    %s30 = ssub.s32 %s17, %s24
    %s31 = sor.u32 %s29, %s30
    %p32 = scmp.eq.s32.totalorder %s31, 0
    %s34 = sadd.s32 %s33, 1
    %s35 = scalar_select %p32, %s33, %s34
    %p38 = pneg %p32
    %p39 = scmp.eq.s32.totalorder %s9, 3
    %p40 = por %p38, %p39
    %p41 = scmp.ne.s32.totalorder %s33, %s36
    %p42 = scmp.eq.s32.totalorder %s9, 0
    %p43 = por %p41, %p42
    %p44 = scmp.ne.s32.totalorder %s33, %s36
    %p45 = scmp.eq.s32.totalorder %s14, 3
    %p46 = por %p44, %p45
    %p47 = scmp.ne.s32.totalorder %s36, %s37
    %p48 = scmp.eq.s32.totalorder %s14, 0
    %p49 = por %p47, %p48
    %p50 = scmp.ne.s32.totalorder %s36, %s37
    %p51 = scmp.eq.s32.totalorder %s15, 3
    %p52 = por %p50, %p51
    %p54 = scmp.ne.s32.totalorder %s37, %s53
    %p55 = scmp.eq.s32.totalorder %s15, 0
    %p56 = por %p54, %p55
    %s58 = sadd.s32 %s57, 1
    %p61 = scmp.eq.s32.totalorder %s9, 3
    %p62 = scmp.ne.s32.totalorder %s57, %s59
    %p63 = scmp.eq.s32.totalorder %s9, 0
    %p64 = por %p62, %p63
    %p65 = scmp.ne.s32.totalorder %s57, %s59
    %p66 = scmp.eq.s32.totalorder %s14, 3
    %p67 = por %p65, %p66
    %p68 = scmp.ne.s32.totalorder %s59, %s60
    %p69 = scmp.eq.s32.totalorder %s14, 0
    %p70 = por %p68, %p69
    %p71 = scmp.ne.s32.totalorder %s59, %s60
    %p72 = scmp.eq.s32.totalorder %s15, 3
    %p73 = por %p71, %p72
    %p75 = scmp.ne.s32.totalorder %s60, %s74
    %p76 = scmp.eq.s32.totalorder %s15, 0
    %p77 = por %p75, %p76
    %s79 = sadd.s32 %s78, 1
    %p82 = scmp.eq.s32.totalorder %s9, 3
    %p83 = scmp.ne.s32.totalorder %s78, %s80
    %p84 = scmp.eq.s32.totalorder %s9, 0
    %p85 = por %p83, %p84
    %p86 = scmp.ne.s32.totalorder %s78, %s80
    %p87 = scmp.eq.s32.totalorder %s14, 3
    %p88 = por %p86, %p87
    %p89 = scmp.ne.s32.totalorder %s80, %s81
    %p90 = scmp.eq.s32.totalorder %s14, 0
    %p91 = por %p89, %p90
    %p92 = scmp.ne.s32.totalorder %s80, %s81
    %p93 = scmp.eq.s32.totalorder %s15, 3
    %p94 = por %p92, %p93
    %p96 = scmp.ne.s32.totalorder %s81, %s95
    %p97 = scmp.eq.s32.totalorder %s15, 0
    %p98 = por %p96, %p97
    %s99 = ssub.s32 %s16, %s28
    %s100 = ssub.s32 %s17, %s24
    %s101 = sor.u32 %s99, %s100
    %p102 = scmp.eq.s32.totalorder %s101, 0
    %s104 = sadd.s32 %s103, 1
    %s105 = scalar_select %p102, %s103, %s104
    %p108 = pneg %p102
    %p109 = scmp.eq.s32.totalorder %s9, 3
    %p110 = por %p108, %p109
    %p111 = scmp.ne.s32.totalorder %s103, %s106
    %p112 = scmp.eq.s32.totalorder %s9, 0
    %p113 = por %p111, %p112
    %p114 = scmp.ne.s32.totalorder %s103, %s106
    %p115 = scmp.eq.s32.totalorder %s14, 3
    %p116 = por %p114, %p115
    %p117 = scmp.ne.s32.totalorder %s106, %s107
    %p118 = scmp.eq.s32.totalorder %s14, 0
    %p119 = por %p117, %p118
    %p120 = scmp.ne.s32.totalorder %s106, %s107
    %p121 = scmp.eq.s32.totalorder %s15, 3
    %p122 = por %p120, %p121
    %p124 = scmp.ne.s32.totalorder %s107, %s123
    %p125 = scmp.eq.s32.totalorder %s15, 0
    %p126 = por %p124, %p125
    %p127 = scmp.le.s32.totalorder 1, %s9
    %p128 = scmp.lt.s32.totalorder %s9, 5
    %p129 = pnand %p127, %p128
    %p130 = pneg %p129
    // Predicated region
    $region9: #{generator_forward.14} parent=5 // pred_check
      _
    $region10: #{generator_forward.14} parent=5 // pred_check_branch
      %132 = sbr.rel (%p129) target = $region12
    $region11: #{generator_forward.14} parent=5 // pred_region
      %s133 = ssub.s32 %s9, 1
      // Predicated region
      $region13: #{generator_forward.14} parent=11 // pred_check
        %p134 = pneg %p70
      $region14: #{generator_forward.14} parent=11 // pred_check_branch
        %136 = sbr.rel (%p134) target = $region16
      $region15: #{generator_forward.14} parent=11 // pred_region
        _
      $region16: #{generator_forward.14} parent=11 // pred_fallthru
        _
      // Predicated region
      $region17: #{generator_forward.14} parent=11 // pred_check
        %p137 = pneg %p91
      $region18: #{generator_forward.14} parent=11 // pred_check_branch
        %139 = sbr.rel (%p137) target = $region20
      $region19: #{generator_forward.14} parent=11 // pred_region
        _
      $region20: #{generator_forward.14} parent=11 // pred_fallthru
        _
    $region12: #{generator_forward.14} parent=5 // pred_fallthru
      _
    %p140 = scmp.lt.s32.totalorder %s9, 4
    // Predicated region
    $region21: #{generator_forward.14} parent=5 // pred_check
      %p141 = pneg %p140
    $region22: #{generator_forward.14} parent=5 // pred_check_branch
      %143 = sbr.rel (%p141) target = $region24
    $region23: #{generator_forward.14} parent=5 // pred_region
      // Predicated region
      $region25: #{generator_forward.14} parent=23 // pred_check
        %p144 = pneg %p43
      $region26: #{generator_forward.14} parent=23 // pred_check_branch
        %146 = sbr.rel (%p144) target = $region28
      $region27: #{generator_forward.14} parent=23 // pred_region
        %p147 = scmp.lt.s32.totalorder %s16, 3
        %s148 = scalar_select %p147, %s16, 3
        %p149 = scmp.lt.s32.totalorder %s17, 0
        %s150 = scalar_select %p149, %s17, 0
        %s151 = smul.addr %s148, 2
        %s152 = sadd.s32 %s150, %s151
        %s153 = smul.addr %s152, 4
        %s154 = scalar_lea.vmem %s0, %s153
      $region28: #{generator_forward.14} parent=23 // pred_fallthru
        _
    $region24: #{generator_forward.14} parent=5 // pred_fallthru
      _
    %p155 = scmp.le.s32.totalorder 1, %s9
    %p156 = scmp.lt.s32.totalorder %s9, 5
    %p157 = pnand %p155, %p156
    %p158 = pneg %p157
    // Predicated region
    $region29: #{generator_forward.14} parent=5 // pred_check
      _
    $region30: #{generator_forward.14} parent=5 // pred_check_branch
      %160 = sbr.rel (%p157) target = $region32
    $region31: #{generator_forward.14} parent=5 // pred_region
      %s161 = ssub.s32 %s9, 1
      %p162 = scmp.lt.s32.totalorder %s18, 3
      %s163 = scalar_select %p162, %s18, 3
      %p164 = scmp.lt.s32.totalorder %s19, 0
      %s165 = scalar_select %p164, %s19, 0
      %s166 = smul.addr %s163, 2
      %s167 = sadd.s32 %s165, %s166
      %s168 = smul.addr %s167, 4
      %s169 = scalar_lea.vmem %s0, %s168
      %p170 = pneg %p49
      %p171 = pneg %p46
      %p172 = pneg %p70
      %p173 = pneg %p67
      %p174 = pneg %p91
      %p175 = pneg %p88
      %p176 = pneg %p119
      %p177 = pneg %p116
      %p178 = scmp.lt.s32.totalorder %s18, 3
      %s179 = scalar_select %p178, %s18, 3
      %p180 = scmp.lt.s32.totalorder %s19, 0
      %s181 = scalar_select %p180, %s19, 0
      %s182 = smul.addr %s179, 2
      %s183 = sadd.s32 %s181, %s182
      %s184 = smul.addr %s183, 4
      %s185 = scalar_lea.vmem %s3, %s184
      %p186 = scmp.lt.s32.totalorder %s18, 3
      %s187 = scalar_select %p186, %s18, 3
      %p188 = scmp.lt.s32.totalorder %s19, 0
      %s189 = scalar_select %p188, %s19, 0
      %s190 = smul.addr %s187, 2
      %s191 = sadd.s32 %s189, %s190
      %s192 = smul.addr %s191, 4
      %s193 = scalar_lea.vmem %s0, %s192
      %p194 = scmp.lt.s32.totalorder %s18, 3
      %s195 = scalar_select %p194, %s18, 3
      %p196 = scmp.lt.s32.totalorder %s19, 0
      %s197 = scalar_select %p196, %s19, 0
      %s198 = smul.addr %s195, 2
      %s199 = sadd.s32 %s197, %s198
      %s200 = smul.addr %s199, 4
      %s201 = scalar_lea.vmem %s3, %s200
      %v202 = vld [vmem:[%s193] sm:$0xf]
      %v203 = vld [vmem:[%s193 + $0x4] sm:$0xf]
      %v204 = vunpack.c.l.bf16 %v202
      %v205 = vunpack.c.l.bf16 %v203
      %v206 = vld [vmem:[%s1] sm:$0xff]
      %v207 = vld [vmem:[%s1 + $0x8] sm:$0xff]
      %209 = vset.pattern.permute.xlu0 0
      %210 = vperm.xlu0 %209, %v206
      %v211 = vpop.permute.xlu0 %210
      %214 = vset.pattern.permute.xlu0 0
      %215 = vperm.xlu0 %214, %v207
      %v216 = vpop.permute.xlu0 %215
      %v218 = vmul.f32 %v204, %v211
      %v219 = vmul.f32 %v205, %v216
      %v220 = vld [vmem:[%s2] sm:$0xff]
      %v221 = vld [vmem:[%s2 + $0x8] sm:$0xff]
      %223 = vset.pattern.permute.xlu0 0
      %224 = vperm.xlu0 %223, %v220
      %v225 = vpop.permute.xlu0 %224
      %228 = vset.pattern.permute.xlu0 0
      %229 = vperm.xlu0 %228, %v221
      %v230 = vpop.permute.xlu0 %229
      %v232 = vadd.f32 %v218, %v225
      %v233 = vadd.f32 %v219, %v230
      %v234 = vmax.f32 %v232, 0.0
      %v235 = vmax.f32 %v233, 0.0
      %v236 = vpack.c.bf16 %v235, %v234
      %v238 = vunpack.c.l.b16 %v236
      %v239 = vunpack.c.h.b16 %v236
      %v240 = vpack.c.b16 %v238, %v238
      %v241 = vpack.c.b16 %v239, %v239
      %244 = vst [vmem:[%s201] sm:$0xf] %v240
      %245 = vst [vmem:[%s201 + $0x4] sm:$0xf] %v241
      %p246 = scmp.lt.s32.totalorder %s18, 3
      %s247 = scalar_select %p246, %s18, 3
      %p248 = scmp.lt.s32.totalorder %s19, 0
      %s249 = scalar_select %p248, %s19, 0
      %s250 = smul.addr %s247, 2
      %s251 = sadd.s32 %s249, %s250
      %s252 = smul.addr %s251, 4
      %s253 = scalar_lea.vmem %s3, %s252
      // Predicated region
      $region33: #{generator_forward.14} parent=31 // pred_check
        %p254 = pneg %p116
      $region34: #{generator_forward.14} parent=31 // pred_check_branch
        %256 = sbr.rel (%p254) target = $region36
      $region35: #{generator_forward.14} parent=31 // pred_region
        _
      $region36: #{generator_forward.14} parent=31 // pred_fallthru
        _
    $region32: #{generator_forward.14} parent=5 // pred_fallthru
      _
    %p257 = scmp.le.s32.totalorder 2, %s9
    // Predicated region
    $region37: #{generator_forward.14} parent=5 // pred_check
      %p258 = pneg %p257
    $region38: #{generator_forward.14} parent=5 // pred_check_branch
      %260 = sbr.rel (%p258) target = $region40
    $region39: #{generator_forward.14} parent=5 // pred_region
      %s261 = ssub.s32 %s9, 2
      // Predicated region
      $region41: #{generator_forward.14} parent=39 // pred_check
        %p262 = pneg %p122
      $region42: #{generator_forward.14} parent=39 // pred_check_branch
        %264 = sbr.rel (%p262) target = $region44
      $region43: #{generator_forward.14} parent=39 // pred_region
        %p265 = scmp.lt.s32.totalorder %s20, 3
        %s266 = scalar_select %p265, %s20, 3
        %p267 = scmp.lt.s32.totalorder %s21, 0
        %s268 = scalar_select %p267, %s21, 0
        %s269 = smul.addr %s266, 2
        %s270 = sadd.s32 %s268, %s269
        %s271 = smul.addr %s270, 4
        %s272 = scalar_lea.vmem %s3, %s271
      $region44: #{generator_forward.14} parent=39 // pred_fallthru
        _
    $region40: #{generator_forward.14} parent=5 // pred_fallthru
      _
  $region6: #{generator_forward.14} parent=0 // loop_footer
    %s13 = sadd.s32 1, %s9
  $region7: #{generator_forward.14} parent=0 // loop_footer_branch
    %8 = sbr.rel target = $region3
  $region8: #{generator_forward.14} parent=0 // loop_exit
    _

// kernel: generator_forward.15
$region0: #{generator_forward.15}
  #allocation0 [shape = 'u32[]', space=smem, size = 0x4, offset = 0x4, fixed_abs, tag = 'smem constant byte address 0x4 - core index']
  #allocation1 [shape = 'u32[144,128]{1,0:T(1,128)}', space=vmem, size = 0x12000, scoped, tag = 'internal scratch']
  %s0 = inlined_call_operand.vmem [shape: bf16[4,64,512], index: 0, kind: input, shape index: {}]
  %s1 = inlined_call_operand.vmem [shape: bf16[4,8,64], index: 1, kind: input, shape index: {}]
  %s2 = inlined_call_operand.vmem [shape: f32[8,1], index: 2, kind: input, shape index: {}]
  %s3 = inlined_call_operand.vmem [shape: bf16[4,8,512], index: 3, kind: output, shape index: {0}]
  %s4 = inlined_call_operand.vmem [shape: f32[4,8,1], index: 4, kind: output, shape index: {1}]
  %s5 = inlined_call_operand.vmem [shape: f32[4,8,1], index: 5, kind: output, shape index: {2}]
  %6 = xla_tuple %s3, %s4, %s5
  %s7 = sld [smem:[#allocation0]]
  $region65: #{generator_forward.15} parent=0
    _
  %s9 = ssub.s32 1, %s7
  %s10 = scalar_select 0, %s9, %s7
  loop: start=0, step=1, limit=6
  $region2: #{generator_forward.15} parent=0 // loop_pre_header
    _
  $region3: #{generator_forward.15} parent=0 // loop_header
    %s12 = sphi 0, %s16
    %p13 = scmp.ge.s32.totalorder %s12, 6
    %s19 = sphi 0, %s31
    %s20 = sphi 0, %s27
    %s21 = sphi 0, %s19
    %s22 = sphi 0, %s20
    %s23 = sphi 0, %s21
    %s24 = sphi 0, %s22
    %s36 = sphi 0, %s38
    %s39 = sphi 0, %s36
    %s40 = sphi 0, %s39
    %s56 = sphi 0, %s40
    %s62 = sphi 0, %s64
    %s65 = sphi 0, %s62
    %s66 = sphi 0, %s65
    %s82 = sphi 0, %s66
    %s86 = sphi 0, %s86
    %s88 = sphi 0, %s86
    %s89 = sphi 0, %s88
    %s103 = sphi 0, %s89
    %s111 = sphi 0, %s113
    %s114 = sphi 0, %s111
    %s115 = sphi 0, %s114
    %s131 = sphi 0, %s115
    %s137 = sphi 0, %s139
    %s140 = sphi 0, %s137
    %s141 = sphi 0, %s140
    %s157 = sphi 0, %s141
    %s163 = sphi 0, %s165
    %s166 = sphi 0, %s163
    %s167 = sphi 0, %s166
    %s183 = sphi 0, %s167
  $region4: #{generator_forward.15} parent=0 // loop_header_branch
    %15 = sbr.rel (%p13) target = $region8
  $region5: #{generator_forward.15} parent=0 // loop_body
    %s17 = ssub.s32 %s12, 1
    %s18 = ssub.s32 %s12, 2
    %s25 = sadd.s32 1, %s20
    %p26 = scmp.ge.s32.totalorder %s25, 1
    %s27 = scalar_select %p26, 0, %s25
    %s28 = sadd.s32 1, %s19
    %s29 = scalar_select %p26, %s28, %s19
    %p30 = scmp.ge.s32.totalorder %s29, 4
    %s31 = scalar_select %p30, 0, %s29
    %s32 = ssub.s32 %s19, %s31
    %s33 = ssub.s32 %s20, %s27
    %s34 = sor.u32 %s32, %s33
    %p35 = scmp.eq.s32.totalorder %s34, 0
    %s37 = sadd.s32 %s36, 1
    %s38 = scalar_select %p35, %s36, %s37
    %p41 = pneg %p35
    %p42 = scmp.eq.s32.totalorder %s12, 3
    %p43 = por %p41, %p42
    %p44 = scmp.ne.s32.totalorder %s36, %s39
    %p45 = scmp.eq.s32.totalorder %s12, 0
    %p46 = por %p44, %p45
    %p47 = scmp.ne.s32.totalorder %s36, %s39
    %p48 = scmp.eq.s32.totalorder %s17, 3
    %p49 = por %p47, %p48
    %p50 = scmp.ne.s32.totalorder %s39, %s40
    %p51 = scmp.eq.s32.totalorder %s17, 0
    %p52 = por %p50, %p51
    %p53 = scmp.ne.s32.totalorder %s39, %s40
    %p54 = scmp.eq.s32.totalorder %s18, 3
    %p55 = por %p53, %p54
    %p57 = scmp.ne.s32.totalorder %s40, %s56
    %p58 = scmp.eq.s32.totalorder %s18, 0
    %p59 = por %p57, %p58
    %s60 = ssub.s32 %s19, %s31
    %p61 = scmp.eq.s32.totalorder %s60, 0
    %s63 = sadd.s32 %s62, 1
    %s64 = scalar_select %p61, %s62, %s63
    %p67 = pneg %p61
    %p68 = scmp.eq.s32.totalorder %s12, 3
    %p69 = por %p67, %p68
    %p70 = scmp.ne.s32.totalorder %s62, %s65
    %p71 = scmp.eq.s32.totalorder %s12, 0
    %p72 = por %p70, %p71
    %p73 = scmp.ne.s32.totalorder %s62, %s65
    %p74 = scmp.eq.s32.totalorder %s17, 3
    %p75 = por %p73, %p74
    %p76 = scmp.ne.s32.totalorder %s65, %s66
    %p77 = scmp.eq.s32.totalorder %s17, 0
    %p78 = por %p76, %p77
    %p79 = scmp.ne.s32.totalorder %s65, %s66
    %p80 = scmp.eq.s32.totalorder %s18, 3
    %p81 = por %p79, %p80
    %p83 = scmp.ne.s32.totalorder %s66, %s82
    %p84 = scmp.eq.s32.totalorder %s18, 0
    %p85 = por %p83, %p84
    %s87 = sadd.s32 %s86, 1
    %p90 = scmp.eq.s32.totalorder %s12, 3
    %p91 = scmp.ne.s32.totalorder %s86, %s88
    %p92 = scmp.eq.s32.totalorder %s12, 0
    %p93 = por %p91, %p92
    %p94 = scmp.ne.s32.totalorder %s86, %s88
    %p95 = scmp.eq.s32.totalorder %s17, 3
    %p96 = por %p94, %p95
    %p97 = scmp.ne.s32.totalorder %s88, %s89
    %p98 = scmp.eq.s32.totalorder %s17, 0
    %p99 = por %p97, %p98
    %p100 = scmp.ne.s32.totalorder %s88, %s89
    %p101 = scmp.eq.s32.totalorder %s18, 3
    %p102 = por %p100, %p101
    %p104 = scmp.ne.s32.totalorder %s89, %s103
    %p105 = scmp.eq.s32.totalorder %s18, 0
    %p106 = por %p104, %p105
    %s107 = ssub.s32 %s19, %s31
    %s108 = ssub.s32 %s20, %s27
    %s109 = sor.u32 %s107, %s108
    %p110 = scmp.eq.s32.totalorder %s109, 0
    %s112 = sadd.s32 %s111, 1
    %s113 = scalar_select %p110, %s111, %s112
    %p116 = pneg %p110
    %p117 = scmp.eq.s32.totalorder %s12, 3
    %p118 = por %p116, %p117
    %p119 = scmp.ne.s32.totalorder %s111, %s114
    %p120 = scmp.eq.s32.totalorder %s12, 0
    %p121 = por %p119, %p120
    %p122 = scmp.ne.s32.totalorder %s111, %s114
    %p123 = scmp.eq.s32.totalorder %s17, 3
    %p124 = por %p122, %p123
    %p125 = scmp.ne.s32.totalorder %s114, %s115
    %p126 = scmp.eq.s32.totalorder %s17, 0
    %p127 = por %p125, %p126
    %p128 = scmp.ne.s32.totalorder %s114, %s115
    %p129 = scmp.eq.s32.totalorder %s18, 3
    %p130 = por %p128, %p129
    %p132 = scmp.ne.s32.totalorder %s115, %s131
    %p133 = scmp.eq.s32.totalorder %s18, 0
    %p134 = por %p132, %p133
    %s135 = ssub.s32 %s19, %s31
    %p136 = scmp.eq.s32.totalorder %s135, 0
    %s138 = sadd.s32 %s137, 1
    %s139 = scalar_select %p136, %s137, %s138
    %p142 = pneg %p136
    %p143 = scmp.eq.s32.totalorder %s12, 3
    %p144 = por %p142, %p143
    %p145 = scmp.ne.s32.totalorder %s137, %s140
    %p146 = scmp.eq.s32.totalorder %s12, 0
    %p147 = por %p145, %p146
    %p148 = scmp.ne.s32.totalorder %s137, %s140
    %p149 = scmp.eq.s32.totalorder %s17, 3
    %p150 = por %p148, %p149
    %p151 = scmp.ne.s32.totalorder %s140, %s141
    %p152 = scmp.eq.s32.totalorder %s17, 0
    %p153 = por %p151, %p152
    %p154 = scmp.ne.s32.totalorder %s140, %s141
    %p155 = scmp.eq.s32.totalorder %s18, 3
    %p156 = por %p154, %p155
    %p158 = scmp.ne.s32.totalorder %s141, %s157
    %p159 = scmp.eq.s32.totalorder %s18, 0
    %p160 = por %p158, %p159
    %s161 = ssub.s32 %s19, %s31
    %p162 = scmp.eq.s32.totalorder %s161, 0
    %s164 = sadd.s32 %s163, 1
    %s165 = scalar_select %p162, %s163, %s164
    %p168 = pneg %p162
    %p169 = scmp.eq.s32.totalorder %s12, 3
    %p170 = por %p168, %p169
    %p171 = scmp.ne.s32.totalorder %s163, %s166
    %p172 = scmp.eq.s32.totalorder %s12, 0
    %p173 = por %p171, %p172
    %p174 = scmp.ne.s32.totalorder %s163, %s166
    %p175 = scmp.eq.s32.totalorder %s17, 3
    %p176 = por %p174, %p175
    %p177 = scmp.ne.s32.totalorder %s166, %s167
    %p178 = scmp.eq.s32.totalorder %s17, 0
    %p179 = por %p177, %p178
    %p180 = scmp.ne.s32.totalorder %s166, %s167
    %p181 = scmp.eq.s32.totalorder %s18, 3
    %p182 = por %p180, %p181
    %p184 = scmp.ne.s32.totalorder %s167, %s183
    %p185 = scmp.eq.s32.totalorder %s18, 0
    %p186 = por %p184, %p185
    %p187 = scmp.le.s32.totalorder 1, %s12
    %p188 = scmp.lt.s32.totalorder %s12, 5
    %p189 = pnand %p187, %p188
    %p190 = pneg %p189
    // Predicated region
    $region9: #{generator_forward.15} parent=5 // pred_check
      _
    $region10: #{generator_forward.15} parent=5 // pred_check_branch
      %192 = sbr.rel (%p189) target = $region12
    $region11: #{generator_forward.15} parent=5 // pred_region
      %s193 = ssub.s32 %s12, 1
      // Predicated region
      $region13: #{generator_forward.15} parent=11 // pred_check
        %p194 = pneg %p99
      $region14: #{generator_forward.15} parent=11 // pred_check_branch
        %196 = sbr.rel (%p194) target = $region16
      $region15: #{generator_forward.15} parent=11 // pred_region
        _
      $region16: #{generator_forward.15} parent=11 // pred_fallthru
        _
    $region12: #{generator_forward.15} parent=5 // pred_fallthru
      _
    %p197 = scmp.lt.s32.totalorder %s12, 4
    // Predicated region
    $region17: #{generator_forward.15} parent=5 // pred_check
      %p198 = pneg %p197
    $region18: #{generator_forward.15} parent=5 // pred_check_branch
      %200 = sbr.rel (%p198) target = $region20
    $region19: #{generator_forward.15} parent=5 // pred_region
      // Predicated region
      $region21: #{generator_forward.15} parent=19 // pred_check
        %p201 = pneg %p46
      $region22: #{generator_forward.15} parent=19 // pred_check_branch
        %203 = sbr.rel (%p201) target = $region24
      $region23: #{generator_forward.15} parent=19 // pred_region
        %s204 = smul.u32 4, %s20
        %p205 = scmp.lt.s32.totalorder %s19, 3
        %s206 = scalar_select %p205, %s19, 3
        %p207 = scmp.lt.s32.totalorder %s204, 3
        %s208 = scalar_select %p207, %s204, 3
        %s209 = smul.addr %s206, 32
        %s210 = sadd.s32 %s208, %s209
        %s211 = smul.addr %s210, 4
        %s212 = scalar_lea.vmem %s0, %s211
        %s213 = smul.u32 4, %s20
      $region24: #{generator_forward.15} parent=19 // pred_fallthru
        _
      // Predicated region
      $region25: #{generator_forward.15} parent=19 // pred_check
        %p214 = pneg %p72
      $region26: #{generator_forward.15} parent=19 // pred_check_branch
        %216 = sbr.rel (%p214) target = $region28
      $region27: #{generator_forward.15} parent=19 // pred_region
        %p217 = scmp.lt.s32.totalorder %s19, 3
        %s218 = scalar_select %p217, %s19, 3
        %s219 = smul.addr %s218, 4
        %s220 = scalar_lea.vmem %s1, %s219
      $region28: #{generator_forward.15} parent=19 // pred_fallthru
        _
    $region20: #{generator_forward.15} parent=5 // pred_fallthru
      _
    %p221 = scmp.le.s32.totalorder 1, %s12
    %p222 = scmp.lt.s32.totalorder %s12, 5
    %p223 = pnand %p221, %p222
    %p224 = pneg %p223
    // Predicated region
    $region29: #{generator_forward.15} parent=5 // pred_check
      _
    $region30: #{generator_forward.15} parent=5 // pred_check_branch
      %226 = sbr.rel (%p223) target = $region32
    $region31: #{generator_forward.15} parent=5 // pred_region
      %s227 = ssub.s32 %s12, 1
      %s228 = smul.u32 4, %s22
      %p229 = scmp.lt.s32.totalorder %s21, 3
      %s230 = scalar_select %p229, %s21, 3
      %p231 = scmp.lt.s32.totalorder %s228, 3
      %s232 = scalar_select %p231, %s228, 3
      %s233 = smul.addr %s230, 32
      %s234 = sadd.s32 %s232, %s233
      %s235 = smul.addr %s234, 4
      %s236 = scalar_lea.vmem %s0, %s235
      %p237 = pneg %p52
      %p238 = pneg %p49
      %p239 = scmp.lt.s32.totalorder %s21, 3
      %s240 = scalar_select %p239, %s21, 3
      %s241 = smul.addr %s240, 4
      %s242 = scalar_lea.vmem %s1, %s241
      %p243 = pneg %p78
      %p244 = pneg %p75
      %p245 = pneg %p99
      %p246 = pneg %p96
      %p247 = pneg %p127
      %p248 = pneg %p124
      %s249 = smul.u32 4, %s22
      %p250 = scmp.lt.s32.totalorder %s21, 3
      %s251 = scalar_select %p250, %s21, 3
      %p252 = scmp.lt.s32.totalorder %s249, 3
      %s253 = scalar_select %p252, %s249, 3
      %s254 = smul.addr %s251, 4
      %s255 = sadd.s32 %s253, %s254
      %s256 = smul.addr %s255, 4
      %s257 = scalar_lea.vmem %s3, %s256
      %p258 = pneg %p153
      %p259 = pneg %p150
      %p260 = scmp.lt.s32.totalorder %s21, 3
      %s261 = scalar_select %p260, %s21, 3
      %s262 = smul.addr %s261, 8
      %s263 = scalar_lea.vmem %s4, %s262
      %p264 = pneg %p179
      %p265 = pneg %p176
      %p266 = scmp.lt.s32.totalorder %s21, 3
      %s267 = scalar_select %p266, %s21, 3
      %s268 = smul.addr %s267, 8
      %s269 = scalar_lea.vmem %s5, %s268
      %s270 = smul.u32 4, %s22
      %p271 = scmp.lt.s32.totalorder %s21, 3
      %s272 = scalar_select %p271, %s21, 3
      %p273 = scmp.lt.s32.totalorder %s270, 3
      %s274 = scalar_select %p273, %s270, 3
      %s275 = smul.addr %s272, 32
      %s276 = sadd.s32 %s274, %s275
      %s277 = smul.addr %s276, 4
      %s278 = scalar_lea.vmem %s0, %s277
      %s279 = smul.u32 4, %s22
      %p280 = scmp.lt.s32.totalorder %s21, 3
      %s281 = scalar_select %p280, %s21, 3
      %s282 = smul.addr %s281, 4
      %s283 = scalar_lea.vmem %s1, %s282
      %s284 = smul.u32 4, %s22
      %p285 = scmp.lt.s32.totalorder %s21, 3
      %s286 = scalar_select %p285, %s21, 3
      %p287 = scmp.lt.s32.totalorder %s284, 3
      %s288 = scalar_select %p287, %s284, 3
      %s289 = smul.addr %s286, 4
      %s290 = sadd.s32 %s288, %s289
      %s291 = smul.addr %s290, 4
      %s292 = scalar_lea.vmem %s3, %s291
      %s293 = smul.u32 4, %s22
      %p294 = scmp.lt.s32.totalorder %s21, 3
      %s295 = scalar_select %p294, %s21, 3
      %s296 = smul.addr %s295, 8
      %s297 = scalar_lea.vmem %s4, %s296
      %p298 = scmp.lt.s32.totalorder %s21, 3
      %s299 = scalar_select %p298, %s21, 3
      %s300 = smul.addr %s299, 8
      %s301 = scalar_lea.vmem %s5, %s300
      %p303 = scmp.eq.s32.totalorder %s22, 0
      // Predicated region
      $region33: #{generator_forward.15} parent=31 // pred_check
        %p304 = pneg %p303
      $region34: #{generator_forward.15} parent=31 // pred_check_branch
        %306 = sbr.rel (%p304) target = $region36
      $region35: #{generator_forward.15} parent=31 // pred_region
        %vm307 = vcmask 7168
        %308 = vst.msk [vmem:[%s297] sm:$0xff] %vm307, 0.0
        %309 = vst.msk [vmem:[%s301] sm:$0xff] %vm307, 0.0
      $region36: #{generator_forward.15} parent=31 // pred_fallthru
        _
      %v310 = vld [vmem:[%s283] sm:$0xf]
      %v311 = vld [vmem:[%s278] sm:$0xff]
      %v312 = vld [vmem:[%s278 + $0x8] sm:$0xff]
      %v313 = vld [vmem:[%s278 + $0x10] sm:$0xff]
      %v314 = vld [vmem:[%s278 + $0x18] sm:$0xff]
      %v315 = vld [vmem:[%s278 + $0x20] sm:$0xff]
      %v316 = vld [vmem:[%s278 + $0x28] sm:$0xff]
      %v317 = vld [vmem:[%s278 + $0x30] sm:$0xff]
      %v318 = vld [vmem:[%s278 + $0x38] sm:$0xff]
      %v319 = vld [vmem:[%s278 + $0x40] sm:$0xff]
      %v320 = vld [vmem:[%s278 + $0x48] sm:$0xff]
      %v321 = vld [vmem:[%s278 + $0x50] sm:$0xff]
      %v322 = vld [vmem:[%s278 + $0x58] sm:$0xff]
      %v323 = vld [vmem:[%s278 + $0x60] sm:$0xff]
      %v324 = vld [vmem:[%s278 + $0x68] sm:$0xff]
      %v325 = vld [vmem:[%s278 + $0x70] sm:$0xff]
      %v326 = vld [vmem:[%s278 + $0x78] sm:$0xff]
      %v327 = vld [vmem:[%s2] sm:$0xff]
      %329 = vset.pattern.permute.xlu0 0
      %330 = vperm.xlu0 %329, %v327
      %v331 = vpop.permute.xlu0 %330
      %v349 = vunpack.c.l.b16 %v311
      %v350 = vunpack.c.h.b16 %v311
      %v351 = vunpack.c.l.b16 %v312
      %v352 = vunpack.c.h.b16 %v312
      %v353 = vunpack.c.l.b16 %v313
      %v354 = vunpack.c.h.b16 %v313
      %v355 = vunpack.c.l.b16 %v314
      %v356 = vunpack.c.h.b16 %v314
      %v357 = vunpack.c.l.b16 %v315
      %v358 = vunpack.c.h.b16 %v315
      %v359 = vunpack.c.l.b16 %v316
      %v360 = vunpack.c.h.b16 %v316
      %v361 = vunpack.c.l.b16 %v317
      %v362 = vunpack.c.h.b16 %v317
      %v363 = vunpack.c.l.b16 %v318
      %v364 = vunpack.c.h.b16 %v318
      %v365 = vunpack.c.l.b16 %v319
      %v366 = vunpack.c.h.b16 %v319
      %v367 = vunpack.c.l.b16 %v320
      %v368 = vunpack.c.h.b16 %v320
      %v369 = vunpack.c.l.b16 %v321
      %v370 = vunpack.c.h.b16 %v321
      %v371 = vunpack.c.l.b16 %v322
      %v372 = vunpack.c.h.b16 %v322
      %v373 = vunpack.c.l.b16 %v323
      %v374 = vunpack.c.h.b16 %v323
      %v375 = vunpack.c.l.b16 %v324
      %v376 = vunpack.c.h.b16 %v324
      %v377 = vunpack.c.l.b16 %v325
      %v378 = vunpack.c.h.b16 %v325
      %v379 = vunpack.c.l.b16 %v326
      %v380 = vunpack.c.h.b16 %v326
      %v381 = vpack.c.b16 %v353, %v349
      %v382 = vpack.c.b16 %v354, %v350
      %v383 = vpack.c.b16 %v355, %v351
      %v384 = vpack.c.b16 %v356, %v352
      %v385 = vpack.c.b16 %v361, %v357
      %v386 = vpack.c.b16 %v362, %v358
      %v387 = vpack.c.b16 %v363, %v359
      %v388 = vpack.c.b16 %v364, %v360
      %v389 = vpack.c.b16 %v369, %v365
      %v390 = vpack.c.b16 %v370, %v366
      %v391 = vpack.c.b16 %v371, %v367
      %v392 = vpack.c.b16 %v372, %v368
      %v393 = vpack.c.b16 %v377, %v373
      %v394 = vpack.c.b16 %v378, %v374
      %v395 = vpack.c.b16 %v379, %v375
      %v396 = vpack.c.b16 %v380, %v376
      %vm413 = vcmask 523264
      %v415 = vsel %vm413, %v310, 0
      %417 = vmatprep.subr.bf16.mxu0 %v382
      %418 = vmatpush1.bf16.msra.mxu0 %v381
      %419 = vmatprep.subr.bf16.mxu0 %v386
      %420 = vmatpush1.bf16.msra.mxu0 %v385
      %421 = vmatprep.subr.bf16.mxu0 %v390
      %422 = vmatpush1.bf16.msra.mxu0 %v389
      %423 = vmatprep.subr.bf16.mxu0 %v394
      %424 = vmatpush1.bf16.msra.mxu0 %v393
      %425 = vmatprep.subr.bf16.mxu0 0
      %426 = vmatpush1.bf16.msra.mxu0 0
      %427 = vmatprep.subr.bf16.mxu0 0
      %428 = vmatpush1.bf16.msra.mxu0 0
      %429 = vmatprep.subr.bf16.mxu0 0
      %430 = vmatpush1.bf16.msra.mxu0 0
      %431 = vmatprep.subr.bf16.mxu0 0
      %432 = vmatpush1.bf16.msra.mxu0 0
      %433 = vmatprep.subr.bf16.mxu0 0
      %434 = vmatpush1.bf16.msra.mxu0 0
      %435 = vmatprep.subr.bf16.mxu0 0
      %436 = vmatpush1.bf16.msra.mxu0 0
      %437 = vmatprep.subr.bf16.mxu0 0
      %438 = vmatpush1.bf16.msra.mxu0 0
      %439 = vmatprep.subr.bf16.mxu0 0
      %440 = vmatpush1.bf16.msra.mxu0 0
      %441 = vmatprep.subr.bf16.mxu0 0
      %442 = vmatpush1.bf16.msra.mxu0 0
      %443 = vmatprep.subr.bf16.mxu0 0
      %444 = vmatpush1.bf16.msra.mxu0 0
      %445 = vmatprep.subr.bf16.mxu0 0
      %446 = vmatpush1.bf16.msra.mxu0 0
      %447 = vmatprep.subr.bf16.mxu0 0
      %448 = vmatpush1.bf16.msra.mxu0 0
      %449 = vmatprep.mubr.bf16.mxu0 0
      %450 = vmatmul.mubr.bf16.gmra.mrb[0].mxu0 %v415
      %v451 = vpop.f32.mrb[0].mxu0
      %v452 = vadd.f32 %v331, %v451
      %v453 = vpop.f32.mrb[0].mxu0
      %v454 = vadd.f32 %v331, %v453
      %v455 = vpop.f32.mrb[0].mxu0
      %v456 = vpop.f32.mrb[0].mxu0
      %457 = vdwg.mxu0
      %458 = vmatprep.subr.bf16.mxu0 %v384
      %459 = vmatpush1.bf16.msra.mxu0 %v383
      %460 = vmatprep.subr.bf16.mxu0 %v388
      %461 = vmatpush1.bf16.msra.mxu0 %v387
      %462 = vmatprep.subr.bf16.mxu0 %v392
      %463 = vmatpush1.bf16.msra.mxu0 %v391
      %464 = vmatprep.subr.bf16.mxu0 %v396
      %465 = vmatpush1.bf16.msra.mxu0 %v395
      %466 = vmatprep.subr.bf16.mxu0 0
      %467 = vmatpush1.bf16.msra.mxu0 0
      %468 = vmatprep.subr.bf16.mxu0 0
      %469 = vmatpush1.bf16.msra.mxu0 0
      %470 = vmatprep.subr.bf16.mxu0 0
      %471 = vmatpush1.bf16.msra.mxu0 0
      %472 = vmatprep.subr.bf16.mxu0 0
      %473 = vmatpush1.bf16.msra.mxu0 0
      %474 = vmatprep.subr.bf16.mxu0 0
      %475 = vmatpush1.bf16.msra.mxu0 0
      %476 = vmatprep.subr.bf16.mxu0 0
      %477 = vmatpush1.bf16.msra.mxu0 0
      %478 = vmatprep.subr.bf16.mxu0 0
      %479 = vmatpush1.bf16.msra.mxu0 0
      %480 = vmatprep.subr.bf16.mxu0 0
      %481 = vmatpush1.bf16.msra.mxu0 0
      %482 = vmatprep.subr.bf16.mxu0 0
      %483 = vmatpush1.bf16.msra.mxu0 0
      %484 = vmatprep.subr.bf16.mxu0 0
      %485 = vmatpush1.bf16.msra.mxu0 0
      %486 = vmatprep.subr.bf16.mxu0 0
      %487 = vmatpush1.bf16.msra.mxu0 0
      %488 = vmatprep.subr.bf16.mxu0 0
      %489 = vmatpush1.bf16.msra.mxu0 0
      %490 = vmatprep.mubr.bf16.mxu0 0
      %491 = vmatmul.mubr.bf16.gmra.mrb[0].mxu0 %v415
      %v492 = vpop.f32.mrb[0].mxu0
      %v493 = vadd.f32 %v331, %v492
      %v494 = vpop.f32.mrb[0].mxu0
      %v495 = vadd.f32 %v331, %v494
      %v496 = vpop.f32.mrb[0].mxu0
      %v497 = vpop.f32.mrb[0].mxu0
      %498 = vdwg.mxu0
      %v499 = vpack.c.bf16 %v452, %v452
      %v500 = vpack.c.bf16 %v454, %v454
      %v501 = vpack.c.bf16 %v493, %v493
      %v502 = vpack.c.bf16 %v495, %v495
      %v507 = vunpack.c.l.b16 %v499
      %v508 = vunpack.c.l.b16 %v500
      %v509 = vunpack.c.l.b16 %v501
      %v510 = vunpack.c.l.b16 %v502
      %v511 = vpack.c.b16 %v508, %v507
      %v512 = vpack.c.b16 %v510, %v509
      %515 = vst [vmem:[%s292] sm:$0xff] %v511
      %516 = vst [vmem:[%s292 + $0x8] sm:$0xff] %v512
      %s517 = smul.u32 %s22, 512
      %v518 = vlaneseq
      %v519 = vand.u32 %v518, 127
      %v520 = vadd.s32 %v519, 128
      %v521 = vadd.s32 %v519, 256
      %v522 = vadd.s32 %v519, 384
      %v523 = vstv %s517
      %v524 = vadd.s32 %v523, %v519
      %v525 = vadd.s32 %v523, %v520
      %v526 = vadd.s32 %v523, %v521
      %v527 = vadd.s32 %v523, %v522
      %vm528 = vcmp.lt.s32.totalorder %v524, 512
      %vm529 = vcmp.lt.s32.totalorder %v525, 512
      %vm530 = vcmp.lt.s32.totalorder %v526, 512
      %vm531 = vcmp.lt.s32.totalorder %v527, 512
      %v532 = vsel %vm528, 1, 0
      %v533 = vsel %vm529, 1, 0
      %v534 = vsel %vm530, 1, 0
      %v535 = vsel %vm531, 1, 0
      %v536 = vcvt.s32.f32 %v532
      %v537 = vcvt.s32.f32 %v533
      %v538 = vcvt.s32.f32 %v534
      %v539 = vcvt.s32.f32 %v535
      %v540 = vmul.f32 %v452, %v536
      %v541 = vmul.f32 %v454, %v537
      %v542 = vmul.f32 %v493, %v538
      %v543 = vmul.f32 %v495, %v539
      %v544 = vld [vmem:[%s297] sm:$0xff]
      %v545 = vadd.f32 %v540, %v541
      %v546 = vadd.f32 %v545, %v542
      %v547 = vadd.f32 %v546, %v543
      %548 = vadd.xlane.f32.xlu0 %v547
      %v549 = vpop.xlane.xlu0 %548
      %v550 = vadd.f32 %v544, %v549
      %vm551 = vcmask 7168
      %552 = vst.msk [vmem:[%s297] sm:$0xff] %vm551, %v550
      %v553 = vld [vmem:[%s301] sm:$0xff]
      %v554 = vmul.f32 %v540, %v452
      %v555 = vmul.f32 %v541, %v454
      %v556 = vmul.f32 %v542, %v493
      %v557 = vmul.f32 %v543, %v495
      %v558 = vadd.f32 %v554, %v555
      %v559 = vadd.f32 %v558, %v556
      %v560 = vadd.f32 %v559, %v557
      %561 = vadd.xlane.f32.xlu0 %v560
      %v562 = vpop.xlane.xlu0 %561
      %v563 = vadd.f32 %v553, %v562
      %564 = vst.msk [vmem:[%s301] sm:$0xff] %vm551, %v563
      %s565 = smul.u32 4, %s22
      %p566 = scmp.lt.s32.totalorder %s21, 3
      %s567 = scalar_select %p566, %s21, 3
      %p568 = scmp.lt.s32.totalorder %s565, 3
      %s569 = scalar_select %p568, %s565, 3
      %s570 = smul.addr %s567, 4
      %s571 = sadd.s32 %s569, %s570
      %s572 = smul.addr %s571, 4
      %s573 = scalar_lea.vmem %s3, %s572
      %p574 = scmp.lt.s32.totalorder %s21, 3
      %s575 = scalar_select %p574, %s21, 3
      %s576 = smul.addr %s575, 8
      %s577 = scalar_lea.vmem %s4, %s576
      %p578 = scmp.lt.s32.totalorder %s21, 3
      %s579 = scalar_select %p578, %s21, 3
      %s580 = smul.addr %s579, 8
      %s581 = scalar_lea.vmem %s5, %s580
      // Predicated region
      $region37: #{generator_forward.15} parent=31 // pred_check
        %p582 = pneg %p124
      $region38: #{generator_forward.15} parent=31 // pred_check_branch
        %584 = sbr.rel (%p582) target = $region40
      $region39: #{generator_forward.15} parent=31 // pred_region
        %s585 = smul.u32 4, %s22
      $region40: #{generator_forward.15} parent=31 // pred_fallthru
        _
      // Predicated region
      $region41: #{generator_forward.15} parent=31 // pred_check
        %p586 = pneg %p150
      $region42: #{generator_forward.15} parent=31 // pred_check_branch
        %588 = sbr.rel (%p586) target = $region44
      $region43: #{generator_forward.15} parent=31 // pred_region
        _
      $region44: #{generator_forward.15} parent=31 // pred_fallthru
        _
      // Predicated region
      $region45: #{generator_forward.15} parent=31 // pred_check
        %p589 = pneg %p176
      $region46: #{generator_forward.15} parent=31 // pred_check_branch
        %591 = sbr.rel (%p589) target = $region48
      $region47: #{generator_forward.15} parent=31 // pred_region
        _
      $region48: #{generator_forward.15} parent=31 // pred_fallthru
        _
    $region32: #{generator_forward.15} parent=5 // pred_fallthru
      _
    %p592 = scmp.le.s32.totalorder 2, %s12
    // Predicated region
    $region49: #{generator_forward.15} parent=5 // pred_check
      %p593 = pneg %p592
    $region50: #{generator_forward.15} parent=5 // pred_check_branch
      %595 = sbr.rel (%p593) target = $region52
    $region51: #{generator_forward.15} parent=5 // pred_region
      %s596 = ssub.s32 %s12, 2
      // Predicated region
      $region53: #{generator_forward.15} parent=51 // pred_check
        %p597 = pneg %p130
      $region54: #{generator_forward.15} parent=51 // pred_check_branch
        %599 = sbr.rel (%p597) target = $region56
      $region55: #{generator_forward.15} parent=51 // pred_region
        %s600 = smul.u32 4, %s24
        %p601 = scmp.lt.s32.totalorder %s23, 3
        %s602 = scalar_select %p601, %s23, 3
        %p603 = scmp.lt.s32.totalorder %s600, 3
        %s604 = scalar_select %p603, %s600, 3
        %s605 = smul.addr %s602, 4
        %s606 = sadd.s32 %s604, %s605
        %s607 = smul.addr %s606, 4
        %s608 = scalar_lea.vmem %s3, %s607
      $region56: #{generator_forward.15} parent=51 // pred_fallthru
        _
      // Predicated region
      $region57: #{generator_forward.15} parent=51 // pred_check
        %p609 = pneg %p156
      $region58: #{generator_forward.15} parent=51 // pred_check_branch
        %611 = sbr.rel (%p609) target = $region60
      $region59: #{generator_forward.15} parent=51 // pred_region
        %p612 = scmp.lt.s32.totalorder %s23, 3
        %s613 = scalar_select %p612, %s23, 3
        %s614 = smul.addr %s613, 8
        %s615 = scalar_lea.vmem %s4, %s614
      $region60: #{generator_forward.15} parent=51 // pred_fallthru
        _
      // Predicated region
      $region61: #{generator_forward.15} parent=51 // pred_check
        %p616 = pneg %p182
      $region62: #{generator_forward.15} parent=51 // pred_check_branch
        %618 = sbr.rel (%p616) target = $region64
      $region63: #{generator_forward.15} parent=51 // pred_region
        %p619 = scmp.lt.s32.totalorder %s23, 3
        %s620 = scalar_select %p619, %s23, 3
        %s621 = smul.addr %s620, 8
        %s622 = scalar_lea.vmem %s5, %s621
      $region64: #{generator_forward.15} parent=51 // pred_fallthru
        _
    $region52: #{generator_forward.15} parent=5 // pred_fallthru
      _
  $region6: #{generator_forward.15} parent=0 // loop_footer
    %s16 = sadd.s32 1, %s12
  $region7: #{generator_forward.15} parent=0 // loop_footer_branch
    %11 = sbr.rel target = $region3
  $region8: #{generator_forward.15} parent=0 // loop_exit
    _

// kernel: generator_forward.16
$region0: #{generator_forward.16}
  #allocation0 [shape = 'u32[]', space=smem, size = 0x4, offset = 0x4, fixed_abs, tag = 'smem constant byte address 0x4 - core index']
  #allocation1 [shape = 'u32[144,128]{1,0:T(1,128)}', space=vmem, size = 0x12000, scoped, tag = 'internal scratch']
  %s0 = inlined_call_operand.vmem [shape: bf16[4,8,512], index: 0, kind: input, shape index: {}]
  %s1 = inlined_call_operand.vmem [shape: f32[8,1], index: 1, kind: input, shape index: {}]
  %s2 = inlined_call_operand.vmem [shape: f32[8,1], index: 2, kind: input, shape index: {}]
  %s3 = inlined_call_operand.vmem [shape: bf16[4,8,512], index: 3, kind: output, shape index: {}]
  %s4 = sld [smem:[#allocation0]]
  $region45: #{generator_forward.16} parent=0
    _
  %s6 = ssub.s32 1, %s4
  %s7 = scalar_select 0, %s6, %s4
  loop: start=0, step=1, limit=6
  $region2: #{generator_forward.16} parent=0 // loop_pre_header
    _
  $region3: #{generator_forward.16} parent=0 // loop_header
    %s9 = sphi 0, %s13
    %p10 = scmp.ge.s32.totalorder %s9, 6
    %s16 = sphi 0, %s28
    %s17 = sphi 0, %s24
    %s18 = sphi 0, %s16
    %s19 = sphi 0, %s17
    %s20 = sphi 0, %s18
    %s21 = sphi 0, %s19
    %s33 = sphi 0, %s35
    %s36 = sphi 0, %s33
    %s37 = sphi 0, %s36
    %s53 = sphi 0, %s37
    %s57 = sphi 0, %s57
    %s59 = sphi 0, %s57
    %s60 = sphi 0, %s59
    %s74 = sphi 0, %s60
    %s78 = sphi 0, %s78
    %s80 = sphi 0, %s78
    %s81 = sphi 0, %s80
    %s95 = sphi 0, %s81
    %s103 = sphi 0, %s105
    %s106 = sphi 0, %s103
    %s107 = sphi 0, %s106
    %s123 = sphi 0, %s107
  $region4: #{generator_forward.16} parent=0 // loop_header_branch
    %12 = sbr.rel (%p10) target = $region8
  $region5: #{generator_forward.16} parent=0 // loop_body
    %s14 = ssub.s32 %s9, 1
    %s15 = ssub.s32 %s9, 2
    %s22 = sadd.s32 1, %s17
    %p23 = scmp.ge.s32.totalorder %s22, 1
    %s24 = scalar_select %p23, 0, %s22
    %s25 = sadd.s32 1, %s16
    %s26 = scalar_select %p23, %s25, %s16
    %p27 = scmp.ge.s32.totalorder %s26, 4
    %s28 = scalar_select %p27, 0, %s26
    %s29 = ssub.s32 %s16, %s28
    %s30 = ssub.s32 %s17, %s24
    %s31 = sor.u32 %s29, %s30
    %p32 = scmp.eq.s32.totalorder %s31, 0
    %s34 = sadd.s32 %s33, 1
    %s35 = scalar_select %p32, %s33, %s34
    %p38 = pneg %p32
    %p39 = scmp.eq.s32.totalorder %s9, 3
    %p40 = por %p38, %p39
    %p41 = scmp.ne.s32.totalorder %s33, %s36
    %p42 = scmp.eq.s32.totalorder %s9, 0
    %p43 = por %p41, %p42
    %p44 = scmp.ne.s32.totalorder %s33, %s36
    %p45 = scmp.eq.s32.totalorder %s14, 3
    %p46 = por %p44, %p45
    %p47 = scmp.ne.s32.totalorder %s36, %s37
    %p48 = scmp.eq.s32.totalorder %s14, 0
    %p49 = por %p47, %p48
    %p50 = scmp.ne.s32.totalorder %s36, %s37
    %p51 = scmp.eq.s32.totalorder %s15, 3
    %p52 = por %p50, %p51
    %p54 = scmp.ne.s32.totalorder %s37, %s53
    %p55 = scmp.eq.s32.totalorder %s15, 0
    %p56 = por %p54, %p55
    %s58 = sadd.s32 %s57, 1
    %p61 = scmp.eq.s32.totalorder %s9, 3
    %p62 = scmp.ne.s32.totalorder %s57, %s59
    %p63 = scmp.eq.s32.totalorder %s9, 0
    %p64 = por %p62, %p63
    %p65 = scmp.ne.s32.totalorder %s57, %s59
    %p66 = scmp.eq.s32.totalorder %s14, 3
    %p67 = por %p65, %p66
    %p68 = scmp.ne.s32.totalorder %s59, %s60
    %p69 = scmp.eq.s32.totalorder %s14, 0
    %p70 = por %p68, %p69
    %p71 = scmp.ne.s32.totalorder %s59, %s60
    %p72 = scmp.eq.s32.totalorder %s15, 3
    %p73 = por %p71, %p72
    %p75 = scmp.ne.s32.totalorder %s60, %s74
    %p76 = scmp.eq.s32.totalorder %s15, 0
    %p77 = por %p75, %p76
    %s79 = sadd.s32 %s78, 1
    %p82 = scmp.eq.s32.totalorder %s9, 3
    %p83 = scmp.ne.s32.totalorder %s78, %s80
    %p84 = scmp.eq.s32.totalorder %s9, 0
    %p85 = por %p83, %p84
    %p86 = scmp.ne.s32.totalorder %s78, %s80
    %p87 = scmp.eq.s32.totalorder %s14, 3
    %p88 = por %p86, %p87
    %p89 = scmp.ne.s32.totalorder %s80, %s81
    %p90 = scmp.eq.s32.totalorder %s14, 0
    %p91 = por %p89, %p90
    %p92 = scmp.ne.s32.totalorder %s80, %s81
    %p93 = scmp.eq.s32.totalorder %s15, 3
    %p94 = por %p92, %p93
    %p96 = scmp.ne.s32.totalorder %s81, %s95
    %p97 = scmp.eq.s32.totalorder %s15, 0
    %p98 = por %p96, %p97
    %s99 = ssub.s32 %s16, %s28
    %s100 = ssub.s32 %s17, %s24
    %s101 = sor.u32 %s99, %s100
    %p102 = scmp.eq.s32.totalorder %s101, 0
    %s104 = sadd.s32 %s103, 1
    %s105 = scalar_select %p102, %s103, %s104
    %p108 = pneg %p102
    %p109 = scmp.eq.s32.totalorder %s9, 3
    %p110 = por %p108, %p109
    %p111 = scmp.ne.s32.totalorder %s103, %s106
    %p112 = scmp.eq.s32.totalorder %s9, 0
    %p113 = por %p111, %p112
    %p114 = scmp.ne.s32.totalorder %s103, %s106
    %p115 = scmp.eq.s32.totalorder %s14, 3
    %p116 = por %p114, %p115
    %p117 = scmp.ne.s32.totalorder %s106, %s107
    %p118 = scmp.eq.s32.totalorder %s14, 0
    %p119 = por %p117, %p118
    %p120 = scmp.ne.s32.totalorder %s106, %s107
    %p121 = scmp.eq.s32.totalorder %s15, 3
    %p122 = por %p120, %p121
    %p124 = scmp.ne.s32.totalorder %s107, %s123
    %p125 = scmp.eq.s32.totalorder %s15, 0
    %p126 = por %p124, %p125
    %p127 = scmp.le.s32.totalorder 1, %s9
    %p128 = scmp.lt.s32.totalorder %s9, 5
    %p129 = pnand %p127, %p128
    %p130 = pneg %p129
    // Predicated region
    $region9: #{generator_forward.16} parent=5 // pred_check
      _
    $region10: #{generator_forward.16} parent=5 // pred_check_branch
      %132 = sbr.rel (%p129) target = $region12
    $region11: #{generator_forward.16} parent=5 // pred_region
      %s133 = ssub.s32 %s9, 1
      // Predicated region
      $region13: #{generator_forward.16} parent=11 // pred_check
        %p134 = pneg %p70
      $region14: #{generator_forward.16} parent=11 // pred_check_branch
        %136 = sbr.rel (%p134) target = $region16
      $region15: #{generator_forward.16} parent=11 // pred_region
        _
      $region16: #{generator_forward.16} parent=11 // pred_fallthru
        _
      // Predicated region
      $region17: #{generator_forward.16} parent=11 // pred_check
        %p137 = pneg %p91
      $region18: #{generator_forward.16} parent=11 // pred_check_branch
        %139 = sbr.rel (%p137) target = $region20
      $region19: #{generator_forward.16} parent=11 // pred_region
        _
      $region20: #{generator_forward.16} parent=11 // pred_fallthru
        _
    $region12: #{generator_forward.16} parent=5 // pred_fallthru
      _
    %p140 = scmp.lt.s32.totalorder %s9, 4
    // Predicated region
    $region21: #{generator_forward.16} parent=5 // pred_check
      %p141 = pneg %p140
    $region22: #{generator_forward.16} parent=5 // pred_check_branch
      %143 = sbr.rel (%p141) target = $region24
    $region23: #{generator_forward.16} parent=5 // pred_region
      // Predicated region
      $region25: #{generator_forward.16} parent=23 // pred_check
        %p144 = pneg %p43
      $region26: #{generator_forward.16} parent=23 // pred_check_branch
        %146 = sbr.rel (%p144) target = $region28
      $region27: #{generator_forward.16} parent=23 // pred_region
        %s147 = smul.u32 4, %s17
        %p148 = scmp.lt.s32.totalorder %s16, 3
        %s149 = scalar_select %p148, %s16, 3
        %p150 = scmp.lt.s32.totalorder %s147, 3
        %s151 = scalar_select %p150, %s147, 3
        %s152 = smul.addr %s149, 4
        %s153 = sadd.s32 %s151, %s152
        %s154 = smul.addr %s153, 4
        %s155 = scalar_lea.vmem %s0, %s154
        %s156 = smul.u32 4, %s17
      $region28: #{generator_forward.16} parent=23 // pred_fallthru
        _
    $region24: #{generator_forward.16} parent=5 // pred_fallthru
      _
    %p157 = scmp.le.s32.totalorder 1, %s9
    %p158 = scmp.lt.s32.totalorder %s9, 5
    %p159 = pnand %p157, %p158
    %p160 = pneg %p159
    // Predicated region
    $region29: #{generator_forward.16} parent=5 // pred_check
      _
    $region30: #{generator_forward.16} parent=5 // pred_check_branch
      %162 = sbr.rel (%p159) target = $region32
    $region31: #{generator_forward.16} parent=5 // pred_region
      %s163 = ssub.s32 %s9, 1
      %s164 = smul.u32 4, %s19
      %p165 = scmp.lt.s32.totalorder %s18, 3
      %s166 = scalar_select %p165, %s18, 3
      %p167 = scmp.lt.s32.totalorder %s164, 3
      %s168 = scalar_select %p167, %s164, 3
      %s169 = smul.addr %s166, 4
      %s170 = sadd.s32 %s168, %s169
      %s171 = smul.addr %s170, 4
      %s172 = scalar_lea.vmem %s0, %s171
      %p173 = pneg %p49
      %p174 = pneg %p46
      %p175 = pneg %p70
      %p176 = pneg %p67
      %p177 = pneg %p91
      %p178 = pneg %p88
      %p179 = pneg %p119
      %p180 = pneg %p116
      %s181 = smul.u32 4, %s19
      %p182 = scmp.lt.s32.totalorder %s18, 3
      %s183 = scalar_select %p182, %s18, 3
      %p184 = scmp.lt.s32.totalorder %s181, 3
      %s185 = scalar_select %p184, %s181, 3
      %s186 = smul.addr %s183, 4
      %s187 = sadd.s32 %s185, %s186
      %s188 = smul.addr %s187, 4
      %s189 = scalar_lea.vmem %s3, %s188
      %s190 = smul.u32 4, %s19
      %p191 = scmp.lt.s32.totalorder %s18, 3
      %s192 = scalar_select %p191, %s18, 3
      %p193 = scmp.lt.s32.totalorder %s190, 3
      %s194 = scalar_select %p193, %s190, 3
      %s195 = smul.addr %s192, 4
      %s196 = sadd.s32 %s194, %s195
      %s197 = smul.addr %s196, 4
      %s198 = scalar_lea.vmem %s0, %s197
      %s199 = smul.u32 4, %s19
      %s200 = smul.u32 4, %s19
      %p201 = scmp.lt.s32.totalorder %s18, 3
      %s202 = scalar_select %p201, %s18, 3
      %p203 = scmp.lt.s32.totalorder %s200, 3
      %s204 = scalar_select %p203, %s200, 3
      %s205 = smul.addr %s202, 4
      %s206 = sadd.s32 %s204, %s205
      %s207 = smul.addr %s206, 4
      %s208 = scalar_lea.vmem %s3, %s207
      %s209 = smul.u32 4, %s19
      %v210 = vld [vmem:[%s198] sm:$0xff]
      %v211 = vld [vmem:[%s198 + $0x8] sm:$0xff]
      %v212 = vunpack.c.l.bf16 %v210
      %v213 = vunpack.c.h.bf16 %v210
      %v214 = vunpack.c.l.bf16 %v211
      %v215 = vunpack.c.h.bf16 %v211
      %v216 = vld [vmem:[%s1] sm:$0xff]
      %218 = vset.pattern.permute.xlu0 0
      %219 = vperm.xlu0 %218, %v216
      %v220 = vpop.permute.xlu0 %219
      %v222 = vmul.f32 %v212, %v220
      %v223 = vmul.f32 %v213, %v220
      %v224 = vmul.f32 %v214, %v220
      %v225 = vmul.f32 %v215, %v220
      %v226 = vld [vmem:[%s2] sm:$0xff]
      %228 = vset.pattern.permute.xlu0 0
      %229 = vperm.xlu0 %228, %v226
      %v230 = vpop.permute.xlu0 %229
      %v232 = vadd.f32 %v222, %v230
      %v233 = vadd.f32 %v223, %v230
      %v234 = vadd.f32 %v224, %v230
      %v235 = vadd.f32 %v225, %v230
      %v236 = vmax.f32 %v232, 0.0
      %v237 = vmax.f32 %v233, 0.0
      %v238 = vmax.f32 %v234, 0.0
      %v239 = vmax.f32 %v235, 0.0
      %v240 = vpack.c.bf16 %v236, %v236
      %v241 = vpack.c.bf16 %v237, %v237
      %v242 = vpack.c.bf16 %v238, %v238
      %v243 = vpack.c.bf16 %v239, %v239
      %v248 = vunpack.c.l.b16 %v240
      %v249 = vunpack.c.l.b16 %v241
      %v250 = vunpack.c.l.b16 %v242
      %v251 = vunpack.c.l.b16 %v243
      %v252 = vpack.c.b16 %v249, %v248
      %v253 = vpack.c.b16 %v251, %v250
      %256 = vst [vmem:[%s208] sm:$0xff] %v252
      %257 = vst [vmem:[%s208 + $0x8] sm:$0xff] %v253
      %s258 = smul.u32 4, %s19
      %p259 = scmp.lt.s32.totalorder %s18, 3
      %s260 = scalar_select %p259, %s18, 3
      %p261 = scmp.lt.s32.totalorder %s258, 3
      %s262 = scalar_select %p261, %s258, 3
      %s263 = smul.addr %s260, 4
      %s264 = sadd.s32 %s262, %s263
      %s265 = smul.addr %s264, 4
      %s266 = scalar_lea.vmem %s3, %s265
      // Predicated region
      $region33: #{generator_forward.16} parent=31 // pred_check
        %p267 = pneg %p116
      $region34: #{generator_forward.16} parent=31 // pred_check_branch
        %269 = sbr.rel (%p267) target = $region36
      $region35: #{generator_forward.16} parent=31 // pred_region
        %s270 = smul.u32 4, %s19
      $region36: #{generator_forward.16} parent=31 // pred_fallthru
        _
    $region32: #{generator_forward.16} parent=5 // pred_fallthru
      _
    %p271 = scmp.le.s32.totalorder 2, %s9
    // Predicated region
    $region37: #{generator_forward.16} parent=5 // pred_check
      %p272 = pneg %p271
    $region38: #{generator_forward.16} parent=5 // pred_check_branch
      %274 = sbr.rel (%p272) target = $region40
    $region39: #{generator_forward.16} parent=5 // pred_region
      %s275 = ssub.s32 %s9, 2
      // Predicated region
      $region41: #{generator_forward.16} parent=39 // pred_check
        %p276 = pneg %p122
      $region42: #{generator_forward.16} parent=39 // pred_check_branch
        %278 = sbr.rel (%p276) target = $region44
      $region43: #{generator_forward.16} parent=39 // pred_region
        %s279 = smul.u32 4, %s21
        %p280 = scmp.lt.s32.totalorder %s20, 3
        %s281 = scalar_select %p280, %s20, 3
        %p282 = scmp.lt.s32.totalorder %s279, 3
        %s283 = scalar_select %p282, %s279, 3
        %s284 = smul.addr %s281, 4
        %s285 = sadd.s32 %s283, %s284
        %s286 = smul.addr %s285, 4
        %s287 = scalar_lea.vmem %s3, %s286
      $region44: #{generator_forward.16} parent=39 // pred_fallthru
        _
    $region40: #{generator_forward.16} parent=5 // pred_fallthru
      _
  $region6: #{generator_forward.16} parent=0 // loop_footer
    %s13 = sadd.s32 1, %s9
  $region7: #{generator_forward.16} parent=0 // loop_footer_branch
    %8 = sbr.rel target = $region3
  $region8: #{generator_forward.16} parent=0 // loop_exit
    _

// kernel: generator_forward.17
$region0: #{generator_forward.17}
  #allocation0 [shape = 'u32[]', space=smem, size = 0x4, offset = 0x4, fixed_abs, tag = 'smem constant byte address 0x4 - core index']
  #allocation1 [shape = 'u32[144,128]{1,0:T(1,128)}', space=vmem, size = 0x12000, scoped, tag = 'internal scratch']
  %s0 = inlined_call_operand.vmem [shape: bf16[72,2048], index: 0, kind: input, shape index: {}]
  %s1 = inlined_call_operand.vmem [shape: bf16[8,72], index: 1, kind: input, shape index: {}]
  %s2 = inlined_call_operand.vmem [shape: f32[8,1], index: 2, kind: input, shape index: {}]
  %s3 = inlined_call_operand.vmem [shape: f32[8,2048], index: 3, kind: output, shape index: {}]
  %s4 = sld [smem:[#allocation0]]
  $region22: #{generator_forward.17} parent=0
    _
  %s6 = ssub.s32 1, %s4
  %s7 = scalar_select 0, %s6, %s4
  // Predicated region
  $region2: #{generator_forward.17} parent=0 // pred_check
    _
  $region3: #{generator_forward.17} parent=0 // pred_check_branch
    %9 = sbr.rel (0) target = $region5
  $region4: #{generator_forward.17} parent=0 // pred_region
    _
  $region5: #{generator_forward.17} parent=0 // pred_fallthru
    _
  // Predicated region
  $region6: #{generator_forward.17} parent=0 // pred_check
    _
  $region7: #{generator_forward.17} parent=0 // pred_check_branch
    %11 = sbr.rel (0) target = $region9
  $region8: #{generator_forward.17} parent=0 // pred_region
    _
  $region9: #{generator_forward.17} parent=0 // pred_fallthru
    _
  // Predicated region
  $region10: #{generator_forward.17} parent=0 // pred_check
    _
  $region11: #{generator_forward.17} parent=0 // pred_check_branch
    %13 = sbr.rel (0) target = $region13
  $region12: #{generator_forward.17} parent=0 // pred_region
    _
  $region13: #{generator_forward.17} parent=0 // pred_fallthru
    _
  %v15 = vld [vmem:[%s1] sm:$0xf]
  %v16 = vld [vmem:[%s0] sm:$0xff]
  %v17 = vld [vmem:[%s0 + $0x8] sm:$0xff]
  %v18 = vld [vmem:[%s0 + $0x10] sm:$0xff]
  %v19 = vld [vmem:[%s0 + $0x18] sm:$0xff]
  %v20 = vld [vmem:[%s0 + $0x20] sm:$0xff]
  %v21 = vld [vmem:[%s0 + $0x28] sm:$0xff]
  %v22 = vld [vmem:[%s0 + $0x30] sm:$0xff]
  %v23 = vld [vmem:[%s0 + $0x38] sm:$0xff]
  %v24 = vld [vmem:[%s0 + $0x40] sm:$0xff]
  %v25 = vld [vmem:[%s0 + $0x48] sm:$0xff]
  %v26 = vld [vmem:[%s0 + $0x50] sm:$0xff]
  %v27 = vld [vmem:[%s0 + $0x58] sm:$0xff]
  %v28 = vld [vmem:[%s0 + $0x60] sm:$0xff]
  %v29 = vld [vmem:[%s0 + $0x68] sm:$0xff]
  %v30 = vld [vmem:[%s0 + $0x70] sm:$0xff]
  %v31 = vld [vmem:[%s0 + $0x78] sm:$0xff]
  %v32 = vld [vmem:[%s0 + $0x80] sm:$0xff]
  %v33 = vld [vmem:[%s0 + $0x88] sm:$0xff]
  %v34 = vld [vmem:[%s0 + $0x90] sm:$0xff]
  %v35 = vld [vmem:[%s0 + $0x98] sm:$0xff]
  %v36 = vld [vmem:[%s0 + $0xa0] sm:$0xff]
  %v37 = vld [vmem:[%s0 + $0xa8] sm:$0xff]
  %v38 = vld [vmem:[%s0 + $0xb0] sm:$0xff]
  %v39 = vld [vmem:[%s0 + $0xb8] sm:$0xff]
  %v40 = vld [vmem:[%s0 + $0xc0] sm:$0xff]
  %v41 = vld [vmem:[%s0 + $0xc8] sm:$0xff]
  %v42 = vld [vmem:[%s0 + $0xd0] sm:$0xff]
  %v43 = vld [vmem:[%s0 + $0xd8] sm:$0xff]
  %v44 = vld [vmem:[%s0 + $0xe0] sm:$0xff]
  %v45 = vld [vmem:[%s0 + $0xe8] sm:$0xff]
  %v46 = vld [vmem:[%s0 + $0xf0] sm:$0xff]
  %v47 = vld [vmem:[%s0 + $0xf8] sm:$0xff]
  %v48 = vld [vmem:[%s0 + $0x100] sm:$0xff]
  %v49 = vld [vmem:[%s0 + $0x108] sm:$0xff]
  %v50 = vld [vmem:[%s0 + $0x110] sm:$0xff]
  %v51 = vld [vmem:[%s0 + $0x118] sm:$0xff]
  %v52 = vld [vmem:[%s0 + $0x120] sm:$0xff]
  %v53 = vld [vmem:[%s0 + $0x128] sm:$0xff]
  %v54 = vld [vmem:[%s0 + $0x130] sm:$0xff]
  %v55 = vld [vmem:[%s0 + $0x138] sm:$0xff]
  %v56 = vld [vmem:[%s0 + $0x140] sm:$0xff]
  %v57 = vld [vmem:[%s0 + $0x148] sm:$0xff]
  %v58 = vld [vmem:[%s0 + $0x150] sm:$0xff]
  %v59 = vld [vmem:[%s0 + $0x158] sm:$0xff]
  %v60 = vld [vmem:[%s0 + $0x160] sm:$0xff]
  %v61 = vld [vmem:[%s0 + $0x168] sm:$0xff]
  %v62 = vld [vmem:[%s0 + $0x170] sm:$0xff]
  %v63 = vld [vmem:[%s0 + $0x178] sm:$0xff]
  %v64 = vld [vmem:[%s0 + $0x180] sm:$0xff]
  %v65 = vld [vmem:[%s0 + $0x188] sm:$0xff]
  %v66 = vld [vmem:[%s0 + $0x190] sm:$0xff]
  %v67 = vld [vmem:[%s0 + $0x198] sm:$0xff]
  %v68 = vld [vmem:[%s0 + $0x1a0] sm:$0xff]
  %v69 = vld [vmem:[%s0 + $0x1a8] sm:$0xff]
  %v70 = vld [vmem:[%s0 + $0x1b0] sm:$0xff]
  %v71 = vld [vmem:[%s0 + $0x1b8] sm:$0xff]
  %v72 = vld [vmem:[%s0 + $0x1c0] sm:$0xff]
  %v73 = vld [vmem:[%s0 + $0x1c8] sm:$0xff]
  %v74 = vld [vmem:[%s0 + $0x1d0] sm:$0xff]
  %v75 = vld [vmem:[%s0 + $0x1d8] sm:$0xff]
  %v76 = vld [vmem:[%s0 + $0x1e0] sm:$0xff]
  %v77 = vld [vmem:[%s0 + $0x1e8] sm:$0xff]
  %v78 = vld [vmem:[%s0 + $0x1f0] sm:$0xff]
  %v79 = vld [vmem:[%s0 + $0x1f8] sm:$0xff]
  %v80 = vld [vmem:[%s0 + $0x200] sm:$0xff]
  %v81 = vld [vmem:[%s0 + $0x208] sm:$0xff]
  %v82 = vld [vmem:[%s0 + $0x210] sm:$0xff]
  %v83 = vld [vmem:[%s0 + $0x218] sm:$0xff]
  %v84 = vld [vmem:[%s0 + $0x220] sm:$0xff]
  %v85 = vld [vmem:[%s0 + $0x228] sm:$0xff]
  %v86 = vld [vmem:[%s0 + $0x230] sm:$0xff]
  %v87 = vld [vmem:[%s0 + $0x238] sm:$0xff]
  %v88 = vld [vmem:[%s2] sm:$0xff]
  %90 = vset.pattern.permute.xlu0 0
  %91 = vperm.xlu0 %90, %v88
  %v92 = vpop.permute.xlu0 %91
  %v166 = vunpack.c.l.b16 %v16
  %v167 = vunpack.c.h.b16 %v16
  %v168 = vunpack.c.l.b16 %v17
  %v169 = vunpack.c.h.b16 %v17
  %v170 = vunpack.c.l.b16 %v18
  %v171 = vunpack.c.h.b16 %v18
  %v172 = vunpack.c.l.b16 %v19
  %v173 = vunpack.c.h.b16 %v19
  %v174 = vunpack.c.l.b16 %v20
  %v175 = vunpack.c.h.b16 %v20
  %v176 = vunpack.c.l.b16 %v21
  %v177 = vunpack.c.h.b16 %v21
  %v178 = vunpack.c.l.b16 %v22
  %v179 = vunpack.c.h.b16 %v22
  %v180 = vunpack.c.l.b16 %v23
  %v181 = vunpack.c.h.b16 %v23
  %v182 = vunpack.c.l.b16 %v24
  %v183 = vunpack.c.h.b16 %v24
  %v184 = vunpack.c.l.b16 %v25
  %v185 = vunpack.c.h.b16 %v25
  %v186 = vunpack.c.l.b16 %v26
  %v187 = vunpack.c.h.b16 %v26
  %v188 = vunpack.c.l.b16 %v27
  %v189 = vunpack.c.h.b16 %v27
  %v190 = vunpack.c.l.b16 %v28
  %v191 = vunpack.c.h.b16 %v28
  %v192 = vunpack.c.l.b16 %v29
  %v193 = vunpack.c.h.b16 %v29
  %v194 = vunpack.c.l.b16 %v30
  %v195 = vunpack.c.h.b16 %v30
  %v196 = vunpack.c.l.b16 %v31
  %v197 = vunpack.c.h.b16 %v31
  %v198 = vunpack.c.l.b16 %v32
  %v199 = vunpack.c.h.b16 %v32
  %v200 = vunpack.c.l.b16 %v33
  %v201 = vunpack.c.h.b16 %v33
  %v202 = vunpack.c.l.b16 %v34
  %v203 = vunpack.c.h.b16 %v34
  %v204 = vunpack.c.l.b16 %v35
  %v205 = vunpack.c.h.b16 %v35
  %v206 = vunpack.c.l.b16 %v36
  %v207 = vunpack.c.h.b16 %v36
  %v208 = vunpack.c.l.b16 %v37
  %v209 = vunpack.c.h.b16 %v37
  %v210 = vunpack.c.l.b16 %v38
  %v211 = vunpack.c.h.b16 %v38
  %v212 = vunpack.c.l.b16 %v39
  %v213 = vunpack.c.h.b16 %v39
  %v214 = vunpack.c.l.b16 %v40
  %v215 = vunpack.c.h.b16 %v40
  %v216 = vunpack.c.l.b16 %v41
  %v217 = vunpack.c.h.b16 %v41
  %v218 = vunpack.c.l.b16 %v42
  %v219 = vunpack.c.h.b16 %v42
  %v220 = vunpack.c.l.b16 %v43
  %v221 = vunpack.c.h.b16 %v43
  %v222 = vunpack.c.l.b16 %v44
  %v223 = vunpack.c.h.b16 %v44
  %v224 = vunpack.c.l.b16 %v45
  %v225 = vunpack.c.h.b16 %v45
  %v226 = vunpack.c.l.b16 %v46
  %v227 = vunpack.c.h.b16 %v46
  %v228 = vunpack.c.l.b16 %v47
  %v229 = vunpack.c.h.b16 %v47
  %v230 = vunpack.c.l.b16 %v48
  %v231 = vunpack.c.h.b16 %v48
  %v232 = vunpack.c.l.b16 %v49
  %v233 = vunpack.c.h.b16 %v49
  %v234 = vunpack.c.l.b16 %v50
  %v235 = vunpack.c.h.b16 %v50
  %v236 = vunpack.c.l.b16 %v51
  %v237 = vunpack.c.h.b16 %v51
  %v238 = vunpack.c.l.b16 %v52
  %v239 = vunpack.c.h.b16 %v52
  %v240 = vunpack.c.l.b16 %v53
  %v241 = vunpack.c.h.b16 %v53
  %v242 = vunpack.c.l.b16 %v54
  %v243 = vunpack.c.h.b16 %v54
  %v244 = vunpack.c.l.b16 %v55
  %v245 = vunpack.c.h.b16 %v55
  %v246 = vunpack.c.l.b16 %v56
  %v247 = vunpack.c.h.b16 %v56
  %v248 = vunpack.c.l.b16 %v57
  %v249 = vunpack.c.h.b16 %v57
  %v250 = vunpack.c.l.b16 %v58
  %v251 = vunpack.c.h.b16 %v58
  %v252 = vunpack.c.l.b16 %v59
  %v253 = vunpack.c.h.b16 %v59
  %v254 = vunpack.c.l.b16 %v60
  %v255 = vunpack.c.h.b16 %v60
  %v256 = vunpack.c.l.b16 %v61
  %v257 = vunpack.c.h.b16 %v61
  %v258 = vunpack.c.l.b16 %v62
  %v259 = vunpack.c.h.b16 %v62
  %v260 = vunpack.c.l.b16 %v63
  %v261 = vunpack.c.h.b16 %v63
  %v262 = vunpack.c.l.b16 %v64
  %v263 = vunpack.c.h.b16 %v64
  %v264 = vunpack.c.l.b16 %v65
  %v265 = vunpack.c.h.b16 %v65
  %v266 = vunpack.c.l.b16 %v66
  %v267 = vunpack.c.h.b16 %v66
  %v268 = vunpack.c.l.b16 %v67
  %v269 = vunpack.c.h.b16 %v67
  %v270 = vunpack.c.l.b16 %v68
  %v271 = vunpack.c.h.b16 %v68
  %v272 = vunpack.c.l.b16 %v69
  %v273 = vunpack.c.h.b16 %v69
  %v274 = vunpack.c.l.b16 %v70
  %v275 = vunpack.c.h.b16 %v70
  %v276 = vunpack.c.l.b16 %v71
  %v277 = vunpack.c.h.b16 %v71
  %v278 = vunpack.c.l.b16 %v72
  %v279 = vunpack.c.h.b16 %v72
  %v280 = vunpack.c.l.b16 %v73
  %v281 = vunpack.c.h.b16 %v73
  %v282 = vunpack.c.l.b16 %v74
  %v283 = vunpack.c.h.b16 %v74
  %v284 = vunpack.c.l.b16 %v75
  %v285 = vunpack.c.h.b16 %v75
  %v286 = vunpack.c.l.b16 %v76
  %v287 = vunpack.c.h.b16 %v76
  %v288 = vunpack.c.l.b16 %v77
  %v289 = vunpack.c.h.b16 %v77
  %v290 = vunpack.c.l.b16 %v78
  %v291 = vunpack.c.h.b16 %v78
  %v292 = vunpack.c.l.b16 %v79
  %v293 = vunpack.c.h.b16 %v79
  %v294 = vunpack.c.l.b16 %v80
  %v295 = vunpack.c.h.b16 %v80
  %v296 = vunpack.c.l.b16 %v81
  %v297 = vunpack.c.h.b16 %v81
  %v298 = vunpack.c.l.b16 %v82
  %v299 = vunpack.c.h.b16 %v82
  %v300 = vunpack.c.l.b16 %v83
  %v301 = vunpack.c.h.b16 %v83
  %v302 = vunpack.c.l.b16 %v84
  %v303 = vunpack.c.h.b16 %v84
  %v304 = vunpack.c.l.b16 %v85
  %v305 = vunpack.c.h.b16 %v85
  %v306 = vunpack.c.l.b16 %v86
  %v307 = vunpack.c.h.b16 %v86
  %v308 = vunpack.c.l.b16 %v87
  %v309 = vunpack.c.h.b16 %v87
  %v310 = vpack.c.b16 %v182, %v166
  %v311 = vpack.c.b16 %v183, %v167
  %v312 = vpack.c.b16 %v184, %v168
  %v313 = vpack.c.b16 %v185, %v169
  %v314 = vpack.c.b16 %v186, %v170
  %v315 = vpack.c.b16 %v187, %v171
  %v316 = vpack.c.b16 %v188, %v172
  %v317 = vpack.c.b16 %v189, %v173
  %v318 = vpack.c.b16 %v190, %v174
  %v319 = vpack.c.b16 %v191, %v175
  %v320 = vpack.c.b16 %v192, %v176
  %v321 = vpack.c.b16 %v193, %v177
  %v322 = vpack.c.b16 %v194, %v178
  %v323 = vpack.c.b16 %v195, %v179
  %v324 = vpack.c.b16 %v196, %v180
  %v325 = vpack.c.b16 %v197, %v181
  %v326 = vpack.c.b16 %v214, %v198
  %v327 = vpack.c.b16 %v215, %v199
  %v328 = vpack.c.b16 %v216, %v200
  %v329 = vpack.c.b16 %v217, %v201
  %v330 = vpack.c.b16 %v218, %v202
  %v331 = vpack.c.b16 %v219, %v203
  %v332 = vpack.c.b16 %v220, %v204
  %v333 = vpack.c.b16 %v221, %v205
  %v334 = vpack.c.b16 %v222, %v206
  %v335 = vpack.c.b16 %v223, %v207
  %v336 = vpack.c.b16 %v224, %v208
  %v337 = vpack.c.b16 %v225, %v209
  %v338 = vpack.c.b16 %v226, %v210
  %v339 = vpack.c.b16 %v227, %v211
  %v340 = vpack.c.b16 %v228, %v212
  %v341 = vpack.c.b16 %v229, %v213
  %v342 = vpack.c.b16 %v246, %v230
  %v343 = vpack.c.b16 %v247, %v231
  %v344 = vpack.c.b16 %v248, %v232
  %v345 = vpack.c.b16 %v249, %v233
  %v346 = vpack.c.b16 %v250, %v234
  %v347 = vpack.c.b16 %v251, %v235
  %v348 = vpack.c.b16 %v252, %v236
  %v349 = vpack.c.b16 %v253, %v237
  %v350 = vpack.c.b16 %v254, %v238
  %v351 = vpack.c.b16 %v255, %v239
  %v352 = vpack.c.b16 %v256, %v240
  %v353 = vpack.c.b16 %v257, %v241
  %v354 = vpack.c.b16 %v258, %v242
  %v355 = vpack.c.b16 %v259, %v243
  %v356 = vpack.c.b16 %v260, %v244
  %v357 = vpack.c.b16 %v261, %v245
  %v358 = vpack.c.b16 %v278, %v262
  %v359 = vpack.c.b16 %v279, %v263
  %v360 = vpack.c.b16 %v280, %v264
  %v361 = vpack.c.b16 %v281, %v265
  %v362 = vpack.c.b16 %v282, %v266
  %v363 = vpack.c.b16 %v283, %v267
  %v364 = vpack.c.b16 %v284, %v268
  %v365 = vpack.c.b16 %v285, %v269
  %v366 = vpack.c.b16 %v286, %v270
  %v367 = vpack.c.b16 %v287, %v271
  %v368 = vpack.c.b16 %v288, %v272
  %v369 = vpack.c.b16 %v289, %v273
  %v370 = vpack.c.b16 %v290, %v274
  %v371 = vpack.c.b16 %v291, %v275
  %v372 = vpack.c.b16 %v292, %v276
  %v373 = vpack.c.b16 %v293, %v277
  %v374 = vpack.c.b16 %v294, %v294
  %v375 = vpack.c.b16 %v295, %v295
  %v376 = vpack.c.b16 %v296, %v296
  %v377 = vpack.c.b16 %v297, %v297
  %v378 = vpack.c.b16 %v298, %v298
  %v379 = vpack.c.b16 %v299, %v299
  %v380 = vpack.c.b16 %v300, %v300
  %v381 = vpack.c.b16 %v301, %v301
  %v382 = vpack.c.b16 %v302, %v302
  %v383 = vpack.c.b16 %v303, %v303
  %v384 = vpack.c.b16 %v304, %v304
  %v385 = vpack.c.b16 %v305, %v305
  %v386 = vpack.c.b16 %v306, %v306
  %v387 = vpack.c.b16 %v307, %v307
  %v388 = vpack.c.b16 %v308, %v308
  %v389 = vpack.c.b16 %v309, %v309
  %vm454 = vcmask 588800
  %v456 = vsel %vm454, %v15, 0
  %vm458 = vcmask 1043456
  %v460 = vsel %vm458, %v374, 0
  %v463 = vsel %vm458, %v375, 0
  %v466 = vsel %vm458, %v376, 0
  %v469 = vsel %vm458, %v377, 0
  %v472 = vsel %vm458, %v378, 0
  %v475 = vsel %vm458, %v379, 0
  %v478 = vsel %vm458, %v380, 0
  %v481 = vsel %vm458, %v381, 0
  %v484 = vsel %vm458, %v382, 0
  %v487 = vsel %vm458, %v383, 0
  %v490 = vsel %vm458, %v384, 0
  %v493 = vsel %vm458, %v385, 0
  %v496 = vsel %vm458, %v386, 0
  %v499 = vsel %vm458, %v387, 0
  %v502 = vsel %vm458, %v388, 0
  %v505 = vsel %vm458, %v389, 0
  %507 = vmatprep.subr.bf16.mxu0 %v311
  %508 = vmatpush1.bf16.msra.mxu0 %v310
  %509 = vmatprep.subr.bf16.mxu0 %v327
  %510 = vmatpush1.bf16.msra.mxu0 %v326
  %511 = vmatprep.subr.bf16.mxu0 %v343
  %512 = vmatpush1.bf16.msra.mxu0 %v342
  %513 = vmatprep.subr.bf16.mxu0 %v359
  %514 = vmatpush1.bf16.msra.mxu0 %v358
  %515 = vmatprep.subr.bf16.mxu0 %v463
  %516 = vmatpush1.bf16.msra.mxu0 %v460
  %517 = vmatprep.subr.bf16.mxu0 0
  %518 = vmatpush1.bf16.msra.mxu0 0
  %519 = vmatprep.subr.bf16.mxu0 0
  %520 = vmatpush1.bf16.msra.mxu0 0
  %521 = vmatprep.subr.bf16.mxu0 0
  %522 = vmatpush1.bf16.msra.mxu0 0
  %523 = vmatprep.subr.bf16.mxu0 0
  %524 = vmatpush1.bf16.msra.mxu0 0
  %525 = vmatprep.subr.bf16.mxu0 0
  %526 = vmatpush1.bf16.msra.mxu0 0
  %527 = vmatprep.subr.bf16.mxu0 0
  %528 = vmatpush1.bf16.msra.mxu0 0
  %529 = vmatprep.subr.bf16.mxu0 0
  %530 = vmatpush1.bf16.msra.mxu0 0
  %531 = vmatprep.subr.bf16.mxu0 0
  %532 = vmatpush1.bf16.msra.mxu0 0
  %533 = vmatprep.subr.bf16.mxu0 0
  %534 = vmatpush1.bf16.msra.mxu0 0
  %535 = vmatprep.subr.bf16.mxu0 0
  %536 = vmatpush1.bf16.msra.mxu0 0
  %537 = vmatprep.subr.bf16.mxu0 0
  %538 = vmatpush1.bf16.msra.mxu0 0
  %539 = vmatprep.mubr.bf16.mxu0 0
  %540 = vmatmul.mubr.bf16.gmra.mrb[0].mxu0 %v456
  %v541 = vpop.f32.mrb[0].mxu0
  %v542 = vadd.f32 %v92, %v541
  %v543 = vpop.f32.mrb[0].mxu0
  %v544 = vadd.f32 %v92, %v543
  %v545 = vpop.f32.mrb[0].mxu0
  %v546 = vpop.f32.mrb[0].mxu0
  %547 = vdwg.mxu0
  %548 = vmatprep.subr.bf16.mxu0 %v313
  %549 = vmatpush1.bf16.msra.mxu0 %v312
  %550 = vmatprep.subr.bf16.mxu0 %v329
  %551 = vmatpush1.bf16.msra.mxu0 %v328
  %552 = vmatprep.subr.bf16.mxu0 %v345
  %553 = vmatpush1.bf16.msra.mxu0 %v344
  %554 = vmatprep.subr.bf16.mxu0 %v361
  %555 = vmatpush1.bf16.msra.mxu0 %v360
  %556 = vmatprep.subr.bf16.mxu0 %v469
  %557 = vmatpush1.bf16.msra.mxu0 %v466
  %558 = vmatprep.subr.bf16.mxu0 0
  %559 = vmatpush1.bf16.msra.mxu0 0
  %560 = vmatprep.subr.bf16.mxu0 0
  %561 = vmatpush1.bf16.msra.mxu0 0
  %562 = vmatprep.subr.bf16.mxu0 0
  %563 = vmatpush1.bf16.msra.mxu0 0
  %564 = vmatprep.subr.bf16.mxu0 0
  %565 = vmatpush1.bf16.msra.mxu0 0
  %566 = vmatprep.subr.bf16.mxu0 0
  %567 = vmatpush1.bf16.msra.mxu0 0
  %568 = vmatprep.subr.bf16.mxu0 0
  %569 = vmatpush1.bf16.msra.mxu0 0
  %570 = vmatprep.subr.bf16.mxu0 0
  %571 = vmatpush1.bf16.msra.mxu0 0
  %572 = vmatprep.subr.bf16.mxu0 0
  %573 = vmatpush1.bf16.msra.mxu0 0
  %574 = vmatprep.subr.bf16.mxu0 0
  %575 = vmatpush1.bf16.msra.mxu0 0
  %576 = vmatprep.subr.bf16.mxu0 0
  %577 = vmatpush1.bf16.msra.mxu0 0
  %578 = vmatprep.subr.bf16.mxu0 0
  %579 = vmatpush1.bf16.msra.mxu0 0
  %580 = vmatprep.mubr.bf16.mxu0 0
  %581 = vmatmul.mubr.bf16.gmra.mrb[0].mxu0 %v456
  %v582 = vpop.f32.mrb[0].mxu0
  %v583 = vadd.f32 %v92, %v582
  %v584 = vpop.f32.mrb[0].mxu0
  %v585 = vadd.f32 %v92, %v584
  %v586 = vpop.f32.mrb[0].mxu0
  %v587 = vpop.f32.mrb[0].mxu0
  %588 = vdwg.mxu0
  %589 = vmatprep.subr.bf16.mxu0 %v315
  %590 = vmatpush1.bf16.msra.mxu0 %v314
  %591 = vmatprep.subr.bf16.mxu0 %v331
  %592 = vmatpush1.bf16.msra.mxu0 %v330
  %593 = vmatprep.subr.bf16.mxu0 %v347
  %594 = vmatpush1.bf16.msra.mxu0 %v346
  %595 = vmatprep.subr.bf16.mxu0 %v363
  %596 = vmatpush1.bf16.msra.mxu0 %v362
  %597 = vmatprep.subr.bf16.mxu0 %v475
  %598 = vmatpush1.bf16.msra.mxu0 %v472
  %599 = vmatprep.subr.bf16.mxu0 0
  %600 = vmatpush1.bf16.msra.mxu0 0
  %601 = vmatprep.subr.bf16.mxu0 0
  %602 = vmatpush1.bf16.msra.mxu0 0
  %603 = vmatprep.subr.bf16.mxu0 0
  %604 = vmatpush1.bf16.msra.mxu0 0
  %605 = vmatprep.subr.bf16.mxu0 0
  %606 = vmatpush1.bf16.msra.mxu0 0
  %607 = vmatprep.subr.bf16.mxu0 0
  %608 = vmatpush1.bf16.msra.mxu0 0
  %609 = vmatprep.subr.bf16.mxu0 0
  %610 = vmatpush1.bf16.msra.mxu0 0
  %611 = vmatprep.subr.bf16.mxu0 0
  %612 = vmatpush1.bf16.msra.mxu0 0
  %613 = vmatprep.subr.bf16.mxu0 0
  %614 = vmatpush1.bf16.msra.mxu0 0
  %615 = vmatprep.subr.bf16.mxu0 0
  %616 = vmatpush1.bf16.msra.mxu0 0
  %617 = vmatprep.subr.bf16.mxu0 0
  %618 = vmatpush1.bf16.msra.mxu0 0
  %619 = vmatprep.subr.bf16.mxu0 0
  %620 = vmatpush1.bf16.msra.mxu0 0
  %621 = vmatprep.mubr.bf16.mxu0 0
  %622 = vmatmul.mubr.bf16.gmra.mrb[0].mxu0 %v456
  %v623 = vpop.f32.mrb[0].mxu0
  %v624 = vadd.f32 %v92, %v623
  %v625 = vpop.f32.mrb[0].mxu0
  %v626 = vadd.f32 %v92, %v625
  %v627 = vpop.f32.mrb[0].mxu0
  %v628 = vpop.f32.mrb[0].mxu0
  %629 = vdwg.mxu0
  %630 = vmatprep.subr.bf16.mxu0 %v317
  %631 = vmatpush1.bf16.msra.mxu0 %v316
  %632 = vmatprep.subr.bf16.mxu0 %v333
  %633 = vmatpush1.bf16.msra.mxu0 %v332
  %634 = vmatprep.subr.bf16.mxu0 %v349
  %635 = vmatpush1.bf16.msra.mxu0 %v348
  %636 = vmatprep.subr.bf16.mxu0 %v365
  %637 = vmatpush1.bf16.msra.mxu0 %v364
  %638 = vmatprep.subr.bf16.mxu0 %v481
  %639 = vmatpush1.bf16.msra.mxu0 %v478
  %640 = vmatprep.subr.bf16.mxu0 0
  %641 = vmatpush1.bf16.msra.mxu0 0
  %642 = vmatprep.subr.bf16.mxu0 0
  %643 = vmatpush1.bf16.msra.mxu0 0
  %644 = vmatprep.subr.bf16.mxu0 0
  %645 = vmatpush1.bf16.msra.mxu0 0
  %646 = vmatprep.subr.bf16.mxu0 0
  %647 = vmatpush1.bf16.msra.mxu0 0
  %648 = vmatprep.subr.bf16.mxu0 0
  %649 = vmatpush1.bf16.msra.mxu0 0
  %650 = vmatprep.subr.bf16.mxu0 0
  %651 = vmatpush1.bf16.msra.mxu0 0
  %652 = vmatprep.subr.bf16.mxu0 0
  %653 = vmatpush1.bf16.msra.mxu0 0
  %654 = vmatprep.subr.bf16.mxu0 0
  %655 = vmatpush1.bf16.msra.mxu0 0
  %656 = vmatprep.subr.bf16.mxu0 0
  %657 = vmatpush1.bf16.msra.mxu0 0
  %658 = vmatprep.subr.bf16.mxu0 0
  %659 = vmatpush1.bf16.msra.mxu0 0
  %660 = vmatprep.subr.bf16.mxu0 0
  %661 = vmatpush1.bf16.msra.mxu0 0
  %662 = vmatprep.mubr.bf16.mxu0 0
  %663 = vmatmul.mubr.bf16.gmra.mrb[0].mxu0 %v456
  %v664 = vpop.f32.mrb[0].mxu0
  %v665 = vadd.f32 %v92, %v664
  %v666 = vpop.f32.mrb[0].mxu0
  %v667 = vadd.f32 %v92, %v666
  %v668 = vpop.f32.mrb[0].mxu0
  %v669 = vpop.f32.mrb[0].mxu0
  %670 = vdwg.mxu0
  %671 = vmatprep.subr.bf16.mxu0 %v319
  %672 = vmatpush1.bf16.msra.mxu0 %v318
  %673 = vmatprep.subr.bf16.mxu0 %v335
  %674 = vmatpush1.bf16.msra.mxu0 %v334
  %675 = vmatprep.subr.bf16.mxu0 %v351
  %676 = vmatpush1.bf16.msra.mxu0 %v350
  %677 = vmatprep.subr.bf16.mxu0 %v367
  %678 = vmatpush1.bf16.msra.mxu0 %v366
  %679 = vmatprep.subr.bf16.mxu0 %v487
  %680 = vmatpush1.bf16.msra.mxu0 %v484
  %681 = vmatprep.subr.bf16.mxu0 0
  %682 = vmatpush1.bf16.msra.mxu0 0
  %683 = vmatprep.subr.bf16.mxu0 0
  %684 = vmatpush1.bf16.msra.mxu0 0
  %685 = vmatprep.subr.bf16.mxu0 0
  %686 = vmatpush1.bf16.msra.mxu0 0
  %687 = vmatprep.subr.bf16.mxu0 0
  %688 = vmatpush1.bf16.msra.mxu0 0
  %689 = vmatprep.subr.bf16.mxu0 0
  %690 = vmatpush1.bf16.msra.mxu0 0
  %691 = vmatprep.subr.bf16.mxu0 0
  %692 = vmatpush1.bf16.msra.mxu0 0
  %693 = vmatprep.subr.bf16.mxu0 0
  %694 = vmatpush1.bf16.msra.mxu0 0
  %695 = vmatprep.subr.bf16.mxu0 0
  %696 = vmatpush1.bf16.msra.mxu0 0
  %697 = vmatprep.subr.bf16.mxu0 0
  %698 = vmatpush1.bf16.msra.mxu0 0
  %699 = vmatprep.subr.bf16.mxu0 0
  %700 = vmatpush1.bf16.msra.mxu0 0
  %701 = vmatprep.subr.bf16.mxu0 0
  %702 = vmatpush1.bf16.msra.mxu0 0
  %703 = vmatprep.mubr.bf16.mxu0 0
  %704 = vmatmul.mubr.bf16.gmra.mrb[0].mxu0 %v456
  %v705 = vpop.f32.mrb[0].mxu0
  %v706 = vadd.f32 %v92, %v705
  %v707 = vpop.f32.mrb[0].mxu0
  %v708 = vadd.f32 %v92, %v707
  %v709 = vpop.f32.mrb[0].mxu0
  %v710 = vpop.f32.mrb[0].mxu0
  %711 = vdwg.mxu0
  %712 = vmatprep.subr.bf16.mxu0 %v321
  %713 = vmatpush1.bf16.msra.mxu0 %v320
  %714 = vmatprep.subr.bf16.mxu0 %v337
  %715 = vmatpush1.bf16.msra.mxu0 %v336
  %716 = vmatprep.subr.bf16.mxu0 %v353
  %717 = vmatpush1.bf16.msra.mxu0 %v352
  %718 = vmatprep.subr.bf16.mxu0 %v369
  %719 = vmatpush1.bf16.msra.mxu0 %v368
  %720 = vmatprep.subr.bf16.mxu0 %v493
  %721 = vmatpush1.bf16.msra.mxu0 %v490
  %722 = vmatprep.subr.bf16.mxu0 0
  %723 = vmatpush1.bf16.msra.mxu0 0
  %724 = vmatprep.subr.bf16.mxu0 0
  %725 = vmatpush1.bf16.msra.mxu0 0
  %726 = vmatprep.subr.bf16.mxu0 0
  %727 = vmatpush1.bf16.msra.mxu0 0
  %728 = vmatprep.subr.bf16.mxu0 0
  %729 = vmatpush1.bf16.msra.mxu0 0
  %730 = vmatprep.subr.bf16.mxu0 0
  %731 = vmatpush1.bf16.msra.mxu0 0
  %732 = vmatprep.subr.bf16.mxu0 0
  %733 = vmatpush1.bf16.msra.mxu0 0
  %734 = vmatprep.subr.bf16.mxu0 0
  %735 = vmatpush1.bf16.msra.mxu0 0
  %736 = vmatprep.subr.bf16.mxu0 0
  %737 = vmatpush1.bf16.msra.mxu0 0
  %738 = vmatprep.subr.bf16.mxu0 0
  %739 = vmatpush1.bf16.msra.mxu0 0
  %740 = vmatprep.subr.bf16.mxu0 0
  %741 = vmatpush1.bf16.msra.mxu0 0
  %742 = vmatprep.subr.bf16.mxu0 0
  %743 = vmatpush1.bf16.msra.mxu0 0
  %744 = vmatprep.mubr.bf16.mxu0 0
  %745 = vmatmul.mubr.bf16.gmra.mrb[0].mxu0 %v456
  %v746 = vpop.f32.mrb[0].mxu0
  %v747 = vadd.f32 %v92, %v746
  %v748 = vpop.f32.mrb[0].mxu0
  %v749 = vadd.f32 %v92, %v748
  %v750 = vpop.f32.mrb[0].mxu0
  %v751 = vpop.f32.mrb[0].mxu0
  %752 = vdwg.mxu0
  %753 = vmatprep.subr.bf16.mxu0 %v323
  %754 = vmatpush1.bf16.msra.mxu0 %v322
  %755 = vmatprep.subr.bf16.mxu0 %v339
  %756 = vmatpush1.bf16.msra.mxu0 %v338
  %757 = vmatprep.subr.bf16.mxu0 %v355
  %758 = vmatpush1.bf16.msra.mxu0 %v354
  %759 = vmatprep.subr.bf16.mxu0 %v371
  %760 = vmatpush1.bf16.msra.mxu0 %v370
  %761 = vmatprep.subr.bf16.mxu0 %v499
  %762 = vmatpush1.bf16.msra.mxu0 %v496
  %763 = vmatprep.subr.bf16.mxu0 0
  %764 = vmatpush1.bf16.msra.mxu0 0
  %765 = vmatprep.subr.bf16.mxu0 0
  %766 = vmatpush1.bf16.msra.mxu0 0
  %767 = vmatprep.subr.bf16.mxu0 0
  %768 = vmatpush1.bf16.msra.mxu0 0
  %769 = vmatprep.subr.bf16.mxu0 0
  %770 = vmatpush1.bf16.msra.mxu0 0
  %771 = vmatprep.subr.bf16.mxu0 0
  %772 = vmatpush1.bf16.msra.mxu0 0
  %773 = vmatprep.subr.bf16.mxu0 0
  %774 = vmatpush1.bf16.msra.mxu0 0
  %775 = vmatprep.subr.bf16.mxu0 0
  %776 = vmatpush1.bf16.msra.mxu0 0
  %777 = vmatprep.subr.bf16.mxu0 0
  %778 = vmatpush1.bf16.msra.mxu0 0
  %779 = vmatprep.subr.bf16.mxu0 0
  %780 = vmatpush1.bf16.msra.mxu0 0
  %781 = vmatprep.subr.bf16.mxu0 0
  %782 = vmatpush1.bf16.msra.mxu0 0
  %783 = vmatprep.subr.bf16.mxu0 0
  %784 = vmatpush1.bf16.msra.mxu0 0
  %785 = vmatprep.mubr.bf16.mxu0 0
  %786 = vmatmul.mubr.bf16.gmra.mrb[0].mxu0 %v456
  %v787 = vpop.f32.mrb[0].mxu0
  %v788 = vadd.f32 %v92, %v787
  %v789 = vpop.f32.mrb[0].mxu0
  %v790 = vadd.f32 %v92, %v789
  %v791 = vpop.f32.mrb[0].mxu0
  %v792 = vpop.f32.mrb[0].mxu0
  %793 = vdwg.mxu0
  %794 = vmatprep.subr.bf16.mxu0 %v325
  %795 = vmatpush1.bf16.msra.mxu0 %v324
  %796 = vmatprep.subr.bf16.mxu0 %v341
  %797 = vmatpush1.bf16.msra.mxu0 %v340
  %798 = vmatprep.subr.bf16.mxu0 %v357
  %799 = vmatpush1.bf16.msra.mxu0 %v356
  %800 = vmatprep.subr.bf16.mxu0 %v373
  %801 = vmatpush1.bf16.msra.mxu0 %v372
  %802 = vmatprep.subr.bf16.mxu0 %v505
  %803 = vmatpush1.bf16.msra.mxu0 %v502
  %804 = vmatprep.subr.bf16.mxu0 0
  %805 = vmatpush1.bf16.msra.mxu0 0
  %806 = vmatprep.subr.bf16.mxu0 0
  %807 = vmatpush1.bf16.msra.mxu0 0
  %808 = vmatprep.subr.bf16.mxu0 0
  %809 = vmatpush1.bf16.msra.mxu0 0
  %810 = vmatprep.subr.bf16.mxu0 0
  %811 = vmatpush1.bf16.msra.mxu0 0
  %812 = vmatprep.subr.bf16.mxu0 0
  %813 = vmatpush1.bf16.msra.mxu0 0
  %814 = vmatprep.subr.bf16.mxu0 0
  %815 = vmatpush1.bf16.msra.mxu0 0
  %816 = vmatprep.subr.bf16.mxu0 0
  %817 = vmatpush1.bf16.msra.mxu0 0
  %818 = vmatprep.subr.bf16.mxu0 0
  %819 = vmatpush1.bf16.msra.mxu0 0
  %820 = vmatprep.subr.bf16.mxu0 0
  %821 = vmatpush1.bf16.msra.mxu0 0
  %822 = vmatprep.subr.bf16.mxu0 0
  %823 = vmatpush1.bf16.msra.mxu0 0
  %824 = vmatprep.subr.bf16.mxu0 0
  %825 = vmatpush1.bf16.msra.mxu0 0
  %826 = vmatprep.mubr.bf16.mxu0 0
  %827 = vmatmul.mubr.bf16.gmra.mrb[0].mxu0 %v456
  %v828 = vpop.f32.mrb[0].mxu0
  %v829 = vadd.f32 %v92, %v828
  %v830 = vpop.f32.mrb[0].mxu0
  %v831 = vadd.f32 %v92, %v830
  %v832 = vpop.f32.mrb[0].mxu0
  %v833 = vpop.f32.mrb[0].mxu0
  %834 = vdwg.mxu0
  %v835 = vtanh.pop %v542
  %v836 = vtanh.pop %v544
  %v837 = vtanh.pop %v583
  %v838 = vtanh.pop %v585
  %v839 = vtanh.pop %v624
  %v840 = vtanh.pop %v626
  %v841 = vtanh.pop %v665
  %v842 = vtanh.pop %v667
  %v843 = vtanh.pop %v706
  %v844 = vtanh.pop %v708
  %v845 = vtanh.pop %v747
  %v846 = vtanh.pop %v749
  %v847 = vtanh.pop %v788
  %v848 = vtanh.pop %v790
  %v849 = vtanh.pop %v829
  %v850 = vtanh.pop %v831
  %851 = vst [vmem:[%s3] sm:$0xff] %v835
  %852 = vst [vmem:[%s3 + $0x8] sm:$0xff] %v836
  %853 = vst [vmem:[%s3 + $0x10] sm:$0xff] %v837
  %854 = vst [vmem:[%s3 + $0x18] sm:$0xff] %v838
  %855 = vst [vmem:[%s3 + $0x20] sm:$0xff] %v839
  %856 = vst [vmem:[%s3 + $0x28] sm:$0xff] %v840
  %857 = vst [vmem:[%s3 + $0x30] sm:$0xff] %v841
  %858 = vst [vmem:[%s3 + $0x38] sm:$0xff] %v842
  %859 = vst [vmem:[%s3 + $0x40] sm:$0xff] %v843
  %860 = vst [vmem:[%s3 + $0x48] sm:$0xff] %v844
  %861 = vst [vmem:[%s3 + $0x50] sm:$0xff] %v845
  %862 = vst [vmem:[%s3 + $0x58] sm:$0xff] %v846
  %863 = vst [vmem:[%s3 + $0x60] sm:$0xff] %v847
  %864 = vst [vmem:[%s3 + $0x68] sm:$0xff] %v848
  %865 = vst [vmem:[%s3 + $0x70] sm:$0xff] %v849
  %866 = vst [vmem:[%s3 + $0x78] sm:$0xff] %v850
  // Predicated region
  $region14: #{generator_forward.17} parent=0 // pred_check
    _
  $region15: #{generator_forward.17} parent=0 // pred_check_branch
    %868 = sbr.rel (0) target = $region17
  $region16: #{generator_forward.17} parent=0 // pred_region
    _
  $region17: #{generator_forward.17} parent=0 // pred_fallthru
    _
  // Predicated region
  $region18: #{generator_forward.17} parent=0 // pred_check
    _
  $region19: #{generator_forward.17} parent=0 // pred_check_branch
    %870 = sbr.rel (0) target = $region21
  $region20: #{generator_forward.17} parent=0 // pred_region
    _
  $region21: #{generator_forward.17} parent=0 // pred_fallthru
    _

</llo_original>
